<compile_context>
chip_gen: v7x
topology: tpu7x:2x2x1
jax: 0.10.0
libtpu: 0.0.40
codegen_flags: <defaults>
</compile_context>

<pallas_src>
from functools import partial

import jax
import jax.numpy as jnp
from jax.experimental import pallas as pl
from jax.experimental.pallas import tpu as pltpu


# ----------------------------- Kernel 1: visual backbone -----------------------------
def visual_backbone_kernel(p_ref, w_ref, b_ref, f_ref, *, HW):
    # p_ref : (FR*HW, CKK) bf16  im2col rows of FR frames
    # w_ref : (CKK, F)     bf16  conv weight flattened (C-major, kernel-minor)
    # b_ref : (1, F)       f32
    # f_ref : (FR, F)      bf16  pooled per-frame features
    y = jnp.dot(p_ref[...], w_ref[...], preferred_element_type=jnp.float32)  # (FR*HW, F) f32
    y = jnp.maximum(y + b_ref[...], 0.0)                                      # bias + ReLU (f32)
    FR = f_ref.shape[0]
    F = y.shape[-1]
    # Per-frame global average pool as an in-kernel sublane reduce (no pooling matmul).
    pooled = jnp.sum(y.reshape(FR, HW, F), axis=1) * (1.0 / HW)               # (FR, F) f32
    f_ref[...] = pooled.astype(f_ref.dtype)


# ----------------------------- Kernel 2: fused temporal conv + heads -----------------------------
def temporal_heads_kernel(x_ref, wt_ref, bt_ref, wh_ref, bh_ref,
                          logits_ref, logp_ref, *, Vg):
    # x_ref     : (Bblk, T+2, F)   bf16  zero-padded (time) pooled features
    # wt_ref    : (3, F, F)        bf16  temporal conv taps
    # bt_ref    : (1, F)           f32
    # wh_ref    : (F, VPAD)        bf16  [gloss | right | left | zero-pad] head weights
    # bh_ref    : (1, VPAD)        f32
    # logits_ref: (Bblk, T, VPAD)  f32   lane-dense logits slab
    # logp_ref  : (Bblk, T, VPAD)  f32   log_softmax over the first Vg lanes
    Bblk, T, VPAD = logits_ref.shape
    F = x_ref.shape[-1]
    M = Bblk * T

    # --- temporal conv (k=3, same pad): three accumulating dots, f32 accumulator ---
    x0 = x_ref[:, 0:T, :].reshape(M, F)
    x1 = x_ref[:, 1:T + 1, :].reshape(M, F)
    x2 = x_ref[:, 2:T + 2, :].reshape(M, F)
    h = jnp.dot(x0, wt_ref[0], preferred_element_type=jnp.float32)
    h = h + jnp.dot(x1, wt_ref[1], preferred_element_type=jnp.float32)
    h = h + jnp.dot(x2, wt_ref[2], preferred_element_type=jnp.float32)
    h = jnp.maximum(h + bt_ref[...], 0.0)                                     # (M, F) f32

    # --- all three heads in one MXU pass, lane-dense 128-wide output ---
    logits = jnp.dot(h.astype(jnp.bfloat16), wh_ref[...],
                     preferred_element_type=jnp.float32) + bh_ref[...]        # (M, VPAD) f32
    logits_ref[...] = logits.reshape(Bblk, T, VPAD)

    # --- masked log_softmax over the gloss vocab (first Vg lanes) ---
    lane = jax.lax.broadcasted_iota(jnp.int32, logits.shape, dimension=1)
    gm = jnp.where(lane < Vg, logits, jnp.float32(-1e30))
    m = jnp.max(gm, axis=-1, keepdims=True)
    e = jnp.exp(gm - m)                                                        # 0 on padded lanes
    lse = jnp.log(jnp.sum(e, axis=-1, keepdims=True)) + m
    logp_ref[...] = (logits - lse).reshape(Bblk, T, VPAD)


# ----------------------------- glue: host-side im2col -----------------------------
def im2col_3x3(frames):
    """frames: [N, C, H, W] -> patches [N*H*W, C*9] (3x3, pad=1, stride=1), bf16."""
    N, C, H, W = frames.shape
    xp = jnp.pad(frames, ((0, 0), (0, 0), (1, 1), (1, 1)))
    cols = []
    for ky in range(3):
        for kx in range(3):
            cols.append(xp[:, :, ky:ky + H, kx:kx + W])                       # (N, C, H, W)
    patches = jnp.stack(cols, axis=-1)                                         # (N, C, H, W, 9)
    patches = jnp.transpose(patches, (0, 2, 3, 1, 4))                          # (N, H, W, C, 9)
    return patches.reshape(N * H * W, C * 9).astype(jnp.bfloat16)


# ----------------------------- wrapper: SignLanguageModel forward -----------------------------
class SignLanguageModelPallas:
    def __init__(self, C=4, F=32, Vg=64, Vh=16, key=jax.random.PRNGKey(42)):
        self.C, self.F, self.Vg, self.Vh = C, F, Vg, Vh
        ks = jax.random.split(key, 8)
        s = 0.05
        # visual backbone: 3x3 conv C->F flattened as (C*9, F), bf16 for the MXU.
        # NOTE: if real PyTorch Conv2d weights (F, C, 3, 3) are ever loaded, use
        # w.reshape(F, C*9).T to keep the same (C-major, kernel-minor) flatten order.
        self.w_conv = (jax.random.normal(ks[0], (C * 9, F)) * s).astype(jnp.bfloat16)
        self.b_conv = jnp.zeros((1, F), jnp.float32)
        # temporal conv: kernel 3, F->F, per-tap weights (3, F, F), bf16
        self.w_temp = (jax.random.normal(ks[1], (3, F, F)) * s).astype(jnp.bfloat16)
        self.b_temp = jnp.zeros((1, F), jnp.float32)
        # heads: gloss / right-hand / left-hand, concatenated and lane-padded to 128, bf16
        w_gloss = jax.random.normal(ks[2], (F, Vg)) * s
        w_hr = jax.random.normal(ks[3], (F, Vh)) * s
        w_hl = jax.random.normal(ks[4], (F, Vh)) * s
        self.VPAD = max(128, ((Vg + 2 * Vh + 127) // 128) * 128)
        w_heads = jnp.zeros((F, self.VPAD), jnp.float32)
        w_heads = w_heads.at[:, :Vg].set(w_gloss)
        w_heads = w_heads.at[:, Vg:Vg + Vh].set(w_hr)
        w_heads = w_heads.at[:, Vg + Vh:Vg + 2 * Vh].set(w_hl)
        self.w_heads = w_heads.astype(jnp.bfloat16)
        self.b_heads = jnp.zeros((1, self.VPAD), jnp.float32)
        self._recognition_jit = jax.jit(self._recognition_forward)

    # ---- tiling helpers: multiple of 8, biggest that still gives >= 2 grid steps ----
    @staticmethod
    def _pick_fr(BT):
        for fr in (32, 16, 8):       # FR capped at 32: lane-padded bf16 block stays < ~6 MiB
            if BT >= 2 * fr:
                return fr
        return 8

    @staticmethod
    def _pick_bblk(B):
        for bb in (8, 4, 2, 1):
            if B % bb == 0 and B // bb >= 2:
                return bb
        return max(B, 1)

    def _recognition_forward(self, video):
        B, T, C, H, W = video.shape
        F, Vg, Vh, VPAD = self.F, self.Vg, self.Vh, self.VPAD
        HW, CKK = H * W, C * 9
        BT = B * T

        # ---- stage 1: visual backbone (im2col matmul + in-kernel mean pool) ----
        FR = self._pick_fr(BT)
        BTpad = ((BT + FR - 1) // FR) * FR
        ROWS = FR * HW

        patches = im2col_3x3(video.reshape(BT, C, H, W))                      # (BT*HW, CKK) bf16
        if BTpad != BT:
            patches = jnp.pad(patches, ((0, (BTpad - BT) * HW), (0, 0)))

        feats_flat = pl.pallas_call(
            partial(visual_backbone_kernel, HW=HW),
            out_shape=jax.ShapeDtypeStruct((BTpad, F), jnp.bfloat16),
            grid=(BTpad // FR,),
            in_specs=[
                pl.BlockSpec((ROWS, CKK), lambda i: (i, 0)),
                pl.BlockSpec((CKK, F), lambda i: (0, 0)),
                pl.BlockSpec((1, F), lambda i: (0, 0)),
            ],
            out_specs=pl.BlockSpec((FR, F), lambda i: (i, 0)),
            compiler_params=pltpu.CompilerParams(
                dimension_semantics=("parallel",),
                vmem_limit_bytes=64 * 1024 * 1024),
        )(patches, self.w_conv, self.b_conv)
        feats = feats_flat[:BT].reshape(B, T, F)                              # (B, T, F) bf16

        # ---- stage 2: fused temporal conv + heads + gloss log_softmax ----
        Bblk = self._pick_bblk(B)
        feats_pad = jnp.pad(feats, ((0, 0), (1, 1), (0, 0)))                  # (B, T+2, F) bf16
        logits_slab, logp_slab = pl.pallas_call(
            partial(temporal_heads_kernel, Vg=Vg),
            out_shape=(
                jax.ShapeDtypeStruct((B, T, VPAD), jnp.float32),
                jax.ShapeDtypeStruct((B, T, VPAD), jnp.float32),
            ),
            grid=(B // Bblk,),
            in_specs=[
                pl.BlockSpec((Bblk, T + 2, F), lambda b: (b, 0, 0)),
                pl.BlockSpec((3, F, F), lambda b: (0, 0, 0)),
                pl.BlockSpec((1, F), lambda b: (0, 0)),
                pl.BlockSpec((F, VPAD), lambda b: (0, 0)),
                pl.BlockSpec((1, VPAD), lambda b: (0, 0)),
            ],
            out_specs=(
                pl.BlockSpec((Bblk, T, VPAD), lambda b: (b, 0, 0)),
                pl.BlockSpec((Bblk, T, VPAD), lambda b: (b, 0, 0)),
            ),
            compiler_params=pltpu.CompilerParams(
                dimension_semantics=("parallel",),
                vmem_limit_bytes=32 * 1024 * 1024),
        )(feats_pad, self.w_temp, self.b_temp, self.w_heads, self.b_heads)

        return {
            "gloss_logits": logits_slab[:, :, :Vg],
            "gloss_probabilities_log": logp_slab[:, :, :Vg],
            "handshape_right_logits": logits_slab[:, :, Vg:Vg + Vh],
            "handshape_left_logits": logits_slab[:, :, Vg + Vh:Vg + 2 * Vh],
        }

    def forward(self, is_train, step=0, translation_inputs={}, recognition_inputs={}, **kwargs):
        video = recognition_inputs["sgn_videos"]                              # [B, T, C, H, W]
        model_outputs = dict(self._recognition_jit(video))
        # Mirrors SignLanguageModel.forward: total_loss = recognition_loss if present else None.
        # TODO(synk): CTC recognition_loss not implemented in Pallas.
        model_outputs["total_loss"] = model_outputs.get("recognition_loss", None)
        return model_outputs


if __name__ == "__main__":
    B, T, C, H, W = 2, 8, 4, 16, 16
    key = jax.random.PRNGKey(0)
    video = jax.random.normal(key, (B, T, C, H, W), dtype=jnp.float32)

    model = SignLanguageModelPallas(C=C, F=32, Vg=64, Vh=16,
                                    key=jax.random.PRNGKey(42))
    outputs = model.forward(is_train=False, step=0,
                            recognition_inputs={"sgn_videos": video})

    for k in ("gloss_logits", "gloss_probabilities_log",
              "handshape_right_logits", "handshape_left_logits"):
        jax.block_until_ready(outputs[k])

    assert outputs["gloss_logits"].shape == (B, T, 64)
    assert outputs["gloss_probabilities_log"].shape == (B, T, 64)
    assert outputs["handshape_right_logits"].shape == (B, T, 16)
    assert outputs["handshape_left_logits"].shape == (B, T, 16)
    assert outputs["total_loss"] is None
    # sanity: gloss log-probabilities must normalize to ~1 per (b, t)
    psum = jnp.exp(outputs["gloss_probabilities_log"].astype(jnp.float32)).sum(-1)
    assert bool(jnp.all(jnp.abs(psum - 1.0) < 1e-2)), "log_softmax not normalized"
    print("KERNEL_OK")
</pallas_src>

<mosaic_0001>
module attributes {stable_mosaic.version = 11 : i64} {
  func.func @visual_backbone_kernel(%arg0: i32, %arg1: memref<2048x36xbf16, #tpu.memory_space<vmem>>, %arg2: memref<36x32xbf16, #tpu.memory_space<vmem>>, %arg3: memref<1x32xf32, #tpu.memory_space<vmem>>, %arg4: memref<8x32xbf16, #tpu.memory_space<vmem>>) attributes {dimension_semantics = [#tpu.dimension_semantics<parallel>], iteration_bounds = array<i64: 2>, scalar_prefetch = 0 : i64, scratch_operands = 0 : i64, tpu.core_type = #tpu.core_type<tc>, window_params = [{transform_indices = @transform_0, window_bounds = array<i64: 2048, 36>}, {pipeline_mode = #tpu.pipeline_mode<synchronous>, transform_indices = @transform_1, window_bounds = array<i64: 36, 32>}, {pipeline_mode = #tpu.pipeline_mode<synchronous>, transform_indices = @transform_2, window_bounds = array<i64: 1, 32>}, {transform_indices = @transform_3, window_bounds = array<i64: 8, 32>}]} {
    %c0 = arith.constant 0 : index
    %c0_0 = arith.constant 0 : index
    %0 = vector.load %arg1[%c0, %c0_0] : memref<2048x36xbf16, #tpu.memory_space<vmem>>, vector<2048x36xbf16>
    %c0_1 = arith.constant 0 : index
    %c0_2 = arith.constant 0 : index
    %1 = vector.load %arg2[%c0_1, %c0_2] : memref<36x32xbf16, #tpu.memory_space<vmem>>, vector<36x32xbf16>
    %cst = arith.constant dense<0.000000e+00> : vector<2048x32xf32>
    %2 = tpu.matmul %0, %1, %cst {dimension_numbers = #tpu.dot_dimension_numbers<[1], [0], [0], [1], [0, 0, 1, 1], [], []>} : vector<2048x36xbf16>, vector<36x32xbf16>, vector<2048x32xf32> -> vector<2048x32xf32>
    %c0_3 = arith.constant 0 : index
    %c0_4 = arith.constant 0 : index
    %3 = vector.load %arg3[%c0_3, %c0_4] : memref<1x32xf32, #tpu.memory_space<vmem>>, vector<1x32xf32>
    %4 = vector.broadcast %3 : vector<1x32xf32> to vector<2048x32xf32>
    %5 = arith.addf %2, %4 : vector<2048x32xf32>
    %cst_5 = arith.constant 0.000000e+00 : f32
    %6 = vector.broadcast %cst_5 : f32 to vector<2048x32xf32>
    %7 = arith.maximumf %5, %6 : vector<2048x32xf32>
    %8 = vector.shape_cast %7 : vector<2048x32xf32> to vector<8x256x32xf32>
    %cst_6 = arith.constant dense<0.000000e+00> : vector<8x32xf32>
    %9 = vector.multi_reduction <add>, %8, %cst_6 [1] : vector<8x256x32xf32> to vector<8x32xf32>
    %cst_7 = arith.constant 3.906250e-03 : f32
    %10 = vector.broadcast %cst_7 : f32 to vector<8x32xf32>
    %11 = arith.mulf %9, %10 : vector<8x32xf32>
    %12 = arith.truncf %11 : vector<8x32xf32> to vector<8x32xbf16>
    %c0_8 = arith.constant 0 : index
    %c0_9 = arith.constant 0 : index
    %13 = vector.load %arg4[%c0_8, %c0_9] : memref<8x32xbf16, #tpu.memory_space<vmem>>, vector<8x32xbf16>
    tpu.vector_store %arg4[%c0_8, %c0_9], %12 {strides = array<i32>} : memref<8x32xbf16, #tpu.memory_space<vmem>>, vector<8x32xbf16>,
    return
  }
  func.func @transform_0(%arg0: i32) -> (i32, i32) {
    %c0_i32 = arith.constant 0 : i32
    %c0_i32_0 = arith.constant 0 : i32
    return %arg0, %c0_i32 : i32, i32
  }
  func.func @transform_1(%arg0: i32) -> (i32, i32) {
    %c0_i32 = arith.constant 0 : i32
    %c0_i32_0 = arith.constant 0 : i32
    %c0_i32_1 = arith.constant 0 : i32
    return %c0_i32, %c0_i32_0 : i32, i32
  }
  func.func @transform_2(%arg0: i32) -> (i32, i32) {
    %c0_i32 = arith.constant 0 : i32
    %c0_i32_0 = arith.constant 0 : i32
    %c0_i32_1 = arith.constant 0 : i32
    return %c0_i32, %c0_i32_0 : i32, i32
  }
  func.func @transform_3(%arg0: i32) -> (i32, i32) {
    %c0_i32 = arith.constant 0 : i32
    %c0_i32_0 = arith.constant 0 : i32
    return %arg0, %c0_i32 : i32, i32
  }
}

module attributes {stable_mosaic.version = 11 : i64} {
  func.func @temporal_heads_kernel(%arg0: i32, %arg1: memref<1x10x32xbf16, #tpu.memory_space<vmem>>, %arg2: memref<3x32x32xbf16, #tpu.memory_space<vmem>>, %arg3: memref<1x32xf32, #tpu.memory_space<vmem>>, %arg4: memref<32x128xbf16, #tpu.memory_space<vmem>>, %arg5: memref<1x128xf32, #tpu.memory_space<vmem>>, %arg6: memref<1x8x128xf32, #tpu.memory_space<vmem>>, %arg7: memref<1x8x128xf32, #tpu.memory_space<vmem>>) attributes {dimension_semantics = [#tpu.dimension_semantics<parallel>], iteration_bounds = array<i64: 2>, scalar_prefetch = 0 : i64, scratch_operands = 0 : i64, tpu.core_type = #tpu.core_type<tc>, window_params = [{transform_indices = @transform_0, window_bounds = array<i64: 1, 10, 32>}, {pipeline_mode = #tpu.pipeline_mode<synchronous>, transform_indices = @transform_1, window_bounds = array<i64: 3, 32, 32>}, {pipeline_mode = #tpu.pipeline_mode<synchronous>, transform_indices = @transform_2, window_bounds = array<i64: 1, 32>}, {pipeline_mode = #tpu.pipeline_mode<synchronous>, transform_indices = @transform_3, window_bounds = array<i64: 32, 128>}, {pipeline_mode = #tpu.pipeline_mode<synchronous>, transform_indices = @transform_4, window_bounds = array<i64: 1, 128>}, {transform_indices = @transform_5, window_bounds = array<i64: 1, 8, 128>}, {transform_indices = @transform_6, window_bounds = array<i64: 1, 8, 128>}]} {
    %c0 = arith.constant 0 : index
    %c0_0 = arith.constant 0 : index
    %c0_1 = arith.constant 0 : index
    %0 = vector.load %arg1[%c0, %c0_0, %c0_1] : memref<1x10x32xbf16, #tpu.memory_space<vmem>>, vector<1x8x32xbf16>
    %1 = vector.shape_cast %0 : vector<1x8x32xbf16> to vector<8x32xbf16>
    %c0_2 = arith.constant 0 : index
    %c1 = arith.constant 1 : index
    %c0_3 = arith.constant 0 : index
    %2 = vector.load %arg1[%c0_2, %c1, %c0_3] : memref<1x10x32xbf16, #tpu.memory_space<vmem>>, vector<1x8x32xbf16>
    %3 = vector.shape_cast %2 : vector<1x8x32xbf16> to vector<8x32xbf16>
    %c0_4 = arith.constant 0 : index
    %c2 = arith.constant 2 : index
    %c0_5 = arith.constant 0 : index
    %4 = vector.load %arg1[%c0_4, %c2, %c0_5] : memref<1x10x32xbf16, #tpu.memory_space<vmem>>, vector<1x8x32xbf16>
    %5 = vector.shape_cast %4 : vector<1x8x32xbf16> to vector<8x32xbf16>
    %c0_6 = arith.constant 0 : index
    %c0_7 = arith.constant 0 : index
    %c0_8 = arith.constant 0 : index
    %6 = vector.load %arg2[%c0_6, %c0_7, %c0_8] : memref<3x32x32xbf16, #tpu.memory_space<vmem>>, vector<1x32x32xbf16>
    %7 = vector.shape_cast %6 : vector<1x32x32xbf16> to vector<32x32xbf16>
    %cst = arith.constant dense<0.000000e+00> : vector<8x32xf32>
    %8 = tpu.matmul %1, %7, %cst {dimension_numbers = #tpu.dot_dimension_numbers<[1], [0], [0], [1], [0, 0, 1, 1], [], []>} : vector<8x32xbf16>, vector<32x32xbf16>, vector<8x32xf32> -> vector<8x32xf32>
    %c1_9 = arith.constant 1 : index
    %c0_10 = arith.constant 0 : index
    %c0_11 = arith.constant 0 : index
    %9 = vector.load %arg2[%c1_9, %c0_10, %c0_11] : memref<3x32x32xbf16, #tpu.memory_space<vmem>>, vector<1x32x32xbf16>
    %10 = vector.shape_cast %9 : vector<1x32x32xbf16> to vector<32x32xbf16>
    %cst_12 = arith.constant dense<0.000000e+00> : vector<8x32xf32>
    %11 = tpu.matmul %3, %10, %cst_12 {dimension_numbers = #tpu.dot_dimension_numbers<[1], [0], [0], [1], [0, 0, 1, 1], [], []>} : vector<8x32xbf16>, vector<32x32xbf16>, vector<8x32xf32> -> vector<8x32xf32>
    %12 = arith.addf %8, %11 : vector<8x32xf32>
    %c2_13 = arith.constant 2 : index
    %c0_14 = arith.constant 0 : index
    %c0_15 = arith.constant 0 : index
    %13 = vector.load %arg2[%c2_13, %c0_14, %c0_15] : memref<3x32x32xbf16, #tpu.memory_space<vmem>>, vector<1x32x32xbf16>
    %14 = vector.shape_cast %13 : vector<1x32x32xbf16> to vector<32x32xbf16>
    %cst_16 = arith.constant dense<0.000000e+00> : vector<8x32xf32>
    %15 = tpu.matmul %5, %14, %cst_16 {dimension_numbers = #tpu.dot_dimension_numbers<[1], [0], [0], [1], [0, 0, 1, 1], [], []>} : vector<8x32xbf16>, vector<32x32xbf16>, vector<8x32xf32> -> vector<8x32xf32>
    %16 = arith.addf %12, %15 : vector<8x32xf32>
    %c0_17 = arith.constant 0 : index
    %c0_18 = arith.constant 0 : index
    %17 = vector.load %arg3[%c0_17, %c0_18] : memref<1x32xf32, #tpu.memory_space<vmem>>, vector<1x32xf32>
    %18 = vector.broadcast %17 : vector<1x32xf32> to vector<8x32xf32>
    %19 = arith.addf %16, %18 : vector<8x32xf32>
    %cst_19 = arith.constant 0.000000e+00 : f32
    %20 = vector.broadcast %cst_19 : f32 to vector<8x32xf32>
    %21 = arith.maximumf %19, %20 : vector<8x32xf32>
    %22 = arith.truncf %21 : vector<8x32xf32> to vector<8x32xbf16>
    %c0_20 = arith.constant 0 : index
    %c0_21 = arith.constant 0 : index
    %23 = vector.load %arg4[%c0_20, %c0_21] : memref<32x128xbf16, #tpu.memory_space<vmem>>, vector<32x128xbf16>
    %cst_22 = arith.constant dense<0.000000e+00> : vector<8x128xf32>
    %24 = tpu.matmul %22, %23, %cst_22 {dimension_numbers = #tpu.dot_dimension_numbers<[1], [0], [0], [1], [0, 0, 1, 1], [], []>} : vector<8x32xbf16>, vector<32x128xbf16>, vector<8x128xf32> -> vector<8x128xf32>
    %c0_23 = arith.constant 0 : index
    %c0_24 = arith.constant 0 : index
    %25 = vector.load %arg5[%c0_23, %c0_24] : memref<1x128xf32, #tpu.memory_space<vmem>>, vector<1x128xf32>
    %26 = vector.broadcast %25 : vector<1x128xf32> to vector<8x128xf32>
    %27 = arith.addf %24, %26 : vector<8x128xf32>
    %28 = vector.shape_cast %27 : vector<8x128xf32> to vector<1x8x128xf32>
    %c0_25 = arith.constant 0 : index
    %c0_26 = arith.constant 0 : index
    %c0_27 = arith.constant 0 : index
    %29 = vector.load %arg6[%c0_25, %c0_26, %c0_27] : memref<1x8x128xf32, #tpu.memory_space<vmem>>, vector<1x8x128xf32>
    tpu.vector_store %arg6[%c0_25, %c0_26, %c0_27], %28 {strides = array<i32>} : memref<1x8x128xf32, #tpu.memory_space<vmem>>, vector<1x8x128xf32>,
    %30 = tpu.iota {dimensions = array<i32: 1>} : vector<8x128xi32>
    %c64_i32 = arith.constant 64 : i32
    %31 = vector.broadcast %c64_i32 : i32 to vector<8x128xi32>
    %32 = arith.cmpi slt, %30, %31 : vector<8x128xi32>
    %cst_28 = arith.constant -1.000000e+30 : f32
    %33 = vector.broadcast %cst_28 : f32 to vector<8x128xf32>
    %34 = arith.select %32, %27, %33 : vector<8x128xi1>, vector<8x128xf32>
    %cst_29 = arith.constant dense<0xFF800000> : vector<8xf32>
    %35 = vector.multi_reduction <maximumf>, %34, %cst_29 [1] : vector<8x128xf32> to vector<8xf32>
    %36 = vector.shape_cast %35 : vector<8xf32> to vector<8x1xf32>
    %37 = vector.broadcast %36 : vector<8x1xf32> to vector<8x128xf32>
    %38 = arith.subf %34, %37 : vector<8x128xf32>
    %39 = math.exp %38 : vector<8x128xf32>
    %cst_30 = arith.constant dense<0.000000e+00> : vector<8xf32>
    %40 = vector.multi_reduction <add>, %39, %cst_30 [1] : vector<8x128xf32> to vector<8xf32>
    %41 = vector.shape_cast %40 : vector<8xf32> to vector<8x1xf32>
    %42 = math.log %41 : vector<8x1xf32>
    %43 = arith.addf %42, %36 : vector<8x1xf32>
    %44 = vector.broadcast %43 : vector<8x1xf32> to vector<8x128xf32>
    %45 = arith.subf %27, %44 : vector<8x128xf32>
    %46 = vector.shape_cast %45 : vector<8x128xf32> to vector<1x8x128xf32>
    %c0_31 = arith.constant 0 : index
    %c0_32 = arith.constant 0 : index
    %c0_33 = arith.constant 0 : index
    %47 = vector.load %arg7[%c0_31, %c0_32, %c0_33] : memref<1x8x128xf32, #tpu.memory_space<vmem>>, vector<1x8x128xf32>
    tpu.vector_store %arg7[%c0_31, %c0_32, %c0_33], %46 {strides = array<i32>} : memref<1x8x128xf32, #tpu.memory_space<vmem>>, vector<1x8x128xf32>,
    return
  }
  func.func @transform_0(%arg0: i32) -> (i32, i32, i32) {
    %c0_i32 = arith.constant 0 : i32
    %c0_i32_0 = arith.constant 0 : i32
    %c0_i32_1 = arith.constant 0 : i32
    return %arg0, %c0_i32, %c0_i32_0 : i32, i32, i32
  }
  func.func @transform_1(%arg0: i32) -> (i32, i32, i32) {
    %c0_i32 = arith.constant 0 : i32
    %c0_i32_0 = arith.constant 0 : i32
    %c0_i32_1 = arith.constant 0 : i32
    %c0_i32_2 = arith.constant 0 : i32
    return %c0_i32, %c0_i32_0, %c0_i32_1 : i32, i32, i32
  }
  func.func @transform_2(%arg0: i32) -> (i32, i32) {
    %c0_i32 = arith.constant 0 : i32
    %c0_i32_0 = arith.constant 0 : i32
    %c0_i32_1 = arith.constant 0 : i32
    return %c0_i32, %c0_i32_0 : i32, i32
  }
  func.func @transform_3(%arg0: i32) -> (i32, i32) {
    %c0_i32 = arith.constant 0 : i32
    %c0_i32_0 = arith.constant 0 : i32
    %c0_i32_1 = arith.constant 0 : i32
    return %c0_i32, %c0_i32_0 : i32, i32
  }
  func.func @transform_4(%arg0: i32) -> (i32, i32) {
    %c0_i32 = arith.constant 0 : i32
    %c0_i32_0 = arith.constant 0 : i32
    %c0_i32_1 = arith.constant 0 : i32
    return %c0_i32, %c0_i32_0 : i32, i32
  }
  func.func @transform_5(%arg0: i32) -> (i32, i32, i32) {
    %c0_i32 = arith.constant 0 : i32
    %c0_i32_0 = arith.constant 0 : i32
    %c0_i32_1 = arith.constant 0 : i32
    return %arg0, %c0_i32, %c0_i32_0 : i32, i32, i32
  }
  func.func @transform_6(%arg0: i32) -> (i32, i32, i32) {
    %c0_i32 = arith.constant 0 : i32
    %c0_i32_0 = arith.constant 0 : i32
    %c0_i32_1 = arith.constant 0 : i32
    return %arg0, %c0_i32, %c0_i32_0 : i32, i32, i32
  }
}

</mosaic_0001>

<llo_original>
// kernel: _recognition_forward.3
$region0: #{_recognition_forward.3}
  #allocation0 [shape = 'u32[]', space=smem, size = 0x4, offset = 0x4, fixed_abs, tag = 'smem constant byte address 0x4 - core index']
  #allocation1 [shape = 'u32[144,128]{1,0:T(1,128)}', space=vmem, size = 0x12000, scoped, tag = 'internal scratch']
  %s0 = inlined_call_operand.vmem [shape: bf16[2,10,32], index: 0, kind: input, shape index: {}]
  %s1 = inlined_call_operand.hbm [shape: bf16[3,32,32], index: 1, kind: input, shape index: {}]
  %s2 = inlined_call_operand.hbm [shape: f32[1,32], index: 2, kind: input, shape index: {}]
  %s3 = inlined_call_operand.hbm [shape: bf16[32,128], index: 3, kind: input, shape index: {}]
  %s4 = inlined_call_operand.vmem [shape: f32[1,128], index: 4, kind: input, shape index: {}]
  %s5 = inlined_call_operand.vmem [shape: f32[2,8,128], index: 5, kind: output, shape index: {0}]
  %s6 = inlined_call_operand.hbm [shape: f32[2,8,128], index: 6, kind: output, shape index: {1}]
  %7 = xla_tuple %s5, %s6
  %s8 = sld [smem:[#allocation0]]
  $region73: #{_recognition_forward.3} parent=0
    _
  %s10 = ssub.s32 1, %s8
  %s11 = scalar_select 0, %s10, %s8
  $region1: #{_recognition_forward.3} parent=0
    #allocation2 [shape = 'u8[24576]{0}', space=vmem, size = 0x6000, scoped, tag = 'input window, operand 1, single buffered']
    #allocation3 [shape = 's32[2]{0}', space=sflag, size = 0x8, scoped, tag = 'scoped memory for _recognition_forward.3']
    #allocation4 [shape = 's32[2]{0}', space=sflag, size = 0x8, scoped, tag = 'scoped memory for _recognition_forward.3']
    #allocation5 [shape = 'u8[512]{0}', space=vmem, size = 0x400, scoped, tag = 'input window, operand 2, single buffered']
    #allocation6 [shape = 's32[1]{0}', space=sflag, size = 0x4, scoped, tag = 'scoped memory for _recognition_forward.3']
    #allocation7 [shape = 'u8[8192]{0}', space=vmem, size = 0x2000, scoped, tag = 'input window, operand 3, single buffered']
    #allocation8 [shape = 'u8[8192]{0}', space=vmem, size = 0x2000, scoped, tag = 'output window, operand 1']
    %12 = vsyncpa [#allocation3], 0
    %13 = vsyncpa [#allocation6], 0
    %14 = vsyncpa [#allocation4], 0
    %s15 = scalar_lea.sflag [#allocation4], 1
    %16 = vsyncpa %s15, 0
    loop: start=0, step=1, limit=4
    $region2: #{_recognition_forward.3} parent=1 // loop_pre_header
      _
    $region3: #{_recognition_forward.3} parent=1 // loop_header
      %s18 = sphi 0, %s22
      %p19 = scmp.ge.s32.totalorder %s18, 4
      %s28 = sphi 0, %s30
      %s31 = sphi 0, %s28
      %s32 = sphi 0, %s31
      %s48 = sphi 0, %s32
      %s52 = sphi 0, %s52
      %s54 = sphi 0, %s52
      %s55 = sphi 0, %s54
      %s69 = sphi 0, %s55
      %s73 = sphi 0, %s73
      %s75 = sphi 0, %s73
      %s76 = sphi 0, %s75
      %s90 = sphi 0, %s76
      %s94 = sphi 0, %s94
      %s96 = sphi 0, %s94
      %s97 = sphi 0, %s96
      %s111 = sphi 0, %s97
      %s115 = sphi 0, %s115
      %s117 = sphi 0, %s115
      %s118 = sphi 0, %s117
      %s132 = sphi 0, %s118
      %s138 = sphi 0, %s140
      %s141 = sphi 0, %s138
      %s142 = sphi 0, %s141
      %s158 = sphi 0, %s142
      %s164 = sphi 0, %s166
      %s167 = sphi 0, %s164
      %s168 = sphi 0, %s167
      %s184 = sphi 0, %s168
    $region4: #{_recognition_forward.3} parent=1 // loop_header_branch
      %21 = sbr.rel (%p19) target = $region8
    $region5: #{_recognition_forward.3} parent=1 // loop_body
      %s23 = ssub.s32 %s18, 1
      %s24 = ssub.s32 %s18, 2
      %s25 = sadd.s32 %s18, 1
      %s26 = ssub.s32 %s18, %s25
      %p27 = scmp.eq.s32.totalorder %s26, 0
      %s29 = sadd.s32 %s28, 1
      %s30 = scalar_select %p27, %s28, %s29
      %p33 = pneg %p27
      %p34 = scmp.eq.s32.totalorder %s18, 1
      %p35 = por %p33, %p34
      %p36 = scmp.ne.s32.totalorder %s28, %s31
      %p37 = scmp.eq.s32.totalorder %s18, 0
      %p38 = por %p36, %p37
      %p39 = scmp.ne.s32.totalorder %s28, %s31
      %p40 = scmp.eq.s32.totalorder %s23, 1
      %p41 = por %p39, %p40
      %p42 = scmp.ne.s32.totalorder %s31, %s32
      %p43 = scmp.eq.s32.totalorder %s23, 0
      %p44 = por %p42, %p43
      %p45 = scmp.ne.s32.totalorder %s31, %s32
      %p46 = scmp.eq.s32.totalorder %s24, 1
      %p47 = por %p45, %p46
      %p49 = scmp.ne.s32.totalorder %s32, %s48
      %p50 = scmp.eq.s32.totalorder %s24, 0
      %p51 = por %p49, %p50
      %s53 = sadd.s32 %s52, 1
      %p56 = scmp.eq.s32.totalorder %s18, 1
      %p57 = scmp.ne.s32.totalorder %s52, %s54
      %p58 = scmp.eq.s32.totalorder %s18, 0
      %p59 = por %p57, %p58
      %p60 = scmp.ne.s32.totalorder %s52, %s54
      %p61 = scmp.eq.s32.totalorder %s23, 1
      %p62 = por %p60, %p61
      %p63 = scmp.ne.s32.totalorder %s54, %s55
      %p64 = scmp.eq.s32.totalorder %s23, 0
      %p65 = por %p63, %p64
      %p66 = scmp.ne.s32.totalorder %s54, %s55
      %p67 = scmp.eq.s32.totalorder %s24, 1
      %p68 = por %p66, %p67
      %p70 = scmp.ne.s32.totalorder %s55, %s69
      %p71 = scmp.eq.s32.totalorder %s24, 0
      %p72 = por %p70, %p71
      %s74 = sadd.s32 %s73, 1
      %p77 = scmp.eq.s32.totalorder %s18, 1
      %p78 = scmp.ne.s32.totalorder %s73, %s75
      %p79 = scmp.eq.s32.totalorder %s18, 0
      %p80 = por %p78, %p79
      %p81 = scmp.ne.s32.totalorder %s73, %s75
      %p82 = scmp.eq.s32.totalorder %s23, 1
      %p83 = por %p81, %p82
      %p84 = scmp.ne.s32.totalorder %s75, %s76
      %p85 = scmp.eq.s32.totalorder %s23, 0
      %p86 = por %p84, %p85
      %p87 = scmp.ne.s32.totalorder %s75, %s76
      %p88 = scmp.eq.s32.totalorder %s24, 1
      %p89 = por %p87, %p88
      %p91 = scmp.ne.s32.totalorder %s76, %s90
      %p92 = scmp.eq.s32.totalorder %s24, 0
      %p93 = por %p91, %p92
      %s95 = sadd.s32 %s94, 1
      %p98 = scmp.eq.s32.totalorder %s18, 1
      %p99 = scmp.ne.s32.totalorder %s94, %s96
      %p100 = scmp.eq.s32.totalorder %s18, 0
      %p101 = por %p99, %p100
      %p102 = scmp.ne.s32.totalorder %s94, %s96
      %p103 = scmp.eq.s32.totalorder %s23, 1
      %p104 = por %p102, %p103
      %p105 = scmp.ne.s32.totalorder %s96, %s97
      %p106 = scmp.eq.s32.totalorder %s23, 0
      %p107 = por %p105, %p106
      %p108 = scmp.ne.s32.totalorder %s96, %s97
      %p109 = scmp.eq.s32.totalorder %s24, 1
      %p110 = por %p108, %p109
      %p112 = scmp.ne.s32.totalorder %s97, %s111
      %p113 = scmp.eq.s32.totalorder %s24, 0
      %p114 = por %p112, %p113
      %s116 = sadd.s32 %s115, 1
      %p119 = scmp.eq.s32.totalorder %s18, 1
      %p120 = scmp.ne.s32.totalorder %s115, %s117
      %p121 = scmp.eq.s32.totalorder %s18, 0
      %p122 = por %p120, %p121
      %p123 = scmp.ne.s32.totalorder %s115, %s117
      %p124 = scmp.eq.s32.totalorder %s23, 1
      %p125 = por %p123, %p124
      %p126 = scmp.ne.s32.totalorder %s117, %s118
      %p127 = scmp.eq.s32.totalorder %s23, 0
      %p128 = por %p126, %p127
      %p129 = scmp.ne.s32.totalorder %s117, %s118
      %p130 = scmp.eq.s32.totalorder %s24, 1
      %p131 = por %p129, %p130
      %p133 = scmp.ne.s32.totalorder %s118, %s132
      %p134 = scmp.eq.s32.totalorder %s24, 0
      %p135 = por %p133, %p134
      %s136 = ssub.s32 %s18, %s25
      %p137 = scmp.eq.s32.totalorder %s136, 0
      %s139 = sadd.s32 %s138, 1
      %s140 = scalar_select %p137, %s138, %s139
      %p143 = pneg %p137
      %p144 = scmp.eq.s32.totalorder %s18, 1
      %p145 = por %p143, %p144
      %p146 = scmp.ne.s32.totalorder %s138, %s141
      %p147 = scmp.eq.s32.totalorder %s18, 0
      %p148 = por %p146, %p147
      %p149 = scmp.ne.s32.totalorder %s138, %s141
      %p150 = scmp.eq.s32.totalorder %s23, 1
      %p151 = por %p149, %p150
      %p152 = scmp.ne.s32.totalorder %s141, %s142
      %p153 = scmp.eq.s32.totalorder %s23, 0
      %p154 = por %p152, %p153
      %p155 = scmp.ne.s32.totalorder %s141, %s142
      %p156 = scmp.eq.s32.totalorder %s24, 1
      %p157 = por %p155, %p156
      %p159 = scmp.ne.s32.totalorder %s142, %s158
      %p160 = scmp.eq.s32.totalorder %s24, 0
      %p161 = por %p159, %p160
      %s162 = ssub.s32 %s18, %s25
      %p163 = scmp.eq.s32.totalorder %s162, 0
      %s165 = sadd.s32 %s164, 1
      %s166 = scalar_select %p163, %s164, %s165
      %p169 = pneg %p163
      %p170 = scmp.eq.s32.totalorder %s18, 1
      %p171 = por %p169, %p170
      %p172 = scmp.ne.s32.totalorder %s164, %s167
      %p173 = scmp.eq.s32.totalorder %s18, 0
      %p174 = por %p172, %p173
      %p175 = scmp.ne.s32.totalorder %s164, %s167
      %p176 = scmp.eq.s32.totalorder %s23, 1
      %p177 = por %p175, %p176
      %p178 = scmp.ne.s32.totalorder %s167, %s168
      %p179 = scmp.eq.s32.totalorder %s23, 0
      %p180 = por %p178, %p179
      %p181 = scmp.ne.s32.totalorder %s167, %s168
      %p182 = scmp.eq.s32.totalorder %s24, 1
      %p183 = por %p181, %p182
      %p185 = scmp.ne.s32.totalorder %s168, %s184
      %p186 = scmp.eq.s32.totalorder %s24, 0
      %p187 = por %p185, %p186
      %p188 = scmp.le.s32.totalorder 1, %s18
      %p189 = scmp.lt.s32.totalorder %s18, 3
      %p190 = pnand %p188, %p189
      %p191 = pneg %p190
      // Predicated region
      $region9: #{_recognition_forward.3} parent=5 // pred_check
        _
      $region10: #{_recognition_forward.3} parent=5 // pred_check_branch
        %193 = sbr.rel (%p190) target = $region12
      $region11: #{_recognition_forward.3} parent=5 // pred_region
        %s194 = ssub.s32 %s18, 1
        // Predicated region
        $region13: #{_recognition_forward.3} parent=11 // pred_check
          %p195 = pneg %p65
        $region14: #{_recognition_forward.3} parent=11 // pred_check_branch
          %197 = sbr.rel (%p195) target = $region16
        $region15: #{_recognition_forward.3} parent=11 // pred_region
          %s199 = ssub.s32 768, 768
          %200 = vsyncadd [#allocation3], %s199
          %s201 = sshll.u32 [#allocation2], 4
          %s202 = int_to_ptr.vmem [resolvable:$true] %s201
          %207 = dma.hbm_to_vmem [thread:$0]  %s1, 768, %s202, [#allocation3], 64, 64, 4
        $region16: #{_recognition_forward.3} parent=11 // pred_fallthru
          _
        // Predicated region
        $region17: #{_recognition_forward.3} parent=11 // pred_check
          %p208 = pneg %p86
        $region18: #{_recognition_forward.3} parent=11 // pred_check_branch
          %210 = sbr.rel (%p208) target = $region20
        $region19: #{_recognition_forward.3} parent=11 // pred_region
          %s212 = ssub.s32 16, 16
          %213 = vsyncadd [#allocation6], %s212
          %s215 = sshll.u32 [#allocation5], 4
          %s216 = int_to_ptr.vmem [resolvable:$true] %s215
          %218 = dma.hbm_to_vmem [thread:$0]  %s2, 16, %s216, [#allocation6]
        $region20: #{_recognition_forward.3} parent=11 // pred_fallthru
          _
        // Predicated region
        $region21: #{_recognition_forward.3} parent=11 // pred_check
          %p219 = pneg %p107
        $region22: #{_recognition_forward.3} parent=11 // pred_check_branch
          %221 = sbr.rel (%p219) target = $region24
        $region23: #{_recognition_forward.3} parent=11 // pred_region
          %s223 = ssub.s32 256, 256
          %224 = vsyncadd [#allocation6], %s223
          %s225 = sshll.u32 [#allocation7], 4
          %s226 = int_to_ptr.vmem [resolvable:$true] %s225
          %231 = dma.hbm_to_vmem [thread:$0]  %s3, 256, %s226, [#allocation6], 64, 64, 4
        $region24: #{_recognition_forward.3} parent=11 // pred_fallthru
          _
        // Predicated region
        $region25: #{_recognition_forward.3} parent=11 // pred_check
          %p232 = pneg %p128
        $region26: #{_recognition_forward.3} parent=11 // pred_check_branch
          %234 = sbr.rel (%p232) target = $region28
        $region27: #{_recognition_forward.3} parent=11 // pred_region
          _
        $region28: #{_recognition_forward.3} parent=11 // pred_fallthru
          _
      $region12: #{_recognition_forward.3} parent=5 // pred_fallthru
        _
      %p235 = scmp.lt.s32.totalorder %s18, 2
      // Predicated region
      $region29: #{_recognition_forward.3} parent=5 // pred_check
        %p236 = pneg %p235
      $region30: #{_recognition_forward.3} parent=5 // pred_check_branch
        %238 = sbr.rel (%p236) target = $region32
      $region31: #{_recognition_forward.3} parent=5 // pred_region
        // Predicated region
        $region33: #{_recognition_forward.3} parent=31 // pred_check
          %p239 = pneg %p38
        $region34: #{_recognition_forward.3} parent=31 // pred_check_branch
          %241 = sbr.rel (%p239) target = $region36
        $region35: #{_recognition_forward.3} parent=31 // pred_region
          %p242 = scmp.lt.s32.totalorder %s18, 1
          %s243 = scalar_select %p242, %s18, 1
          %s244 = smul.addr %s243, 2
          %s245 = smul.addr %s244, 4
          %s246 = scalar_lea.vmem %s0, %s245
        $region36: #{_recognition_forward.3} parent=31 // pred_fallthru
          _
      $region32: #{_recognition_forward.3} parent=5 // pred_fallthru
        _
      %p247 = scmp.le.s32.totalorder 1, %s18
      %p248 = scmp.lt.s32.totalorder %s18, 3
      %p249 = pnand %p247, %p248
      %p250 = pneg %p249
      // Predicated region
      $region37: #{_recognition_forward.3} parent=5 // pred_check
        _
      $region38: #{_recognition_forward.3} parent=5 // pred_check_branch
        %252 = sbr.rel (%p249) target = $region40
      $region39: #{_recognition_forward.3} parent=5 // pred_region
        %s253 = ssub.s32 %s18, 1
        // Predicated region
        $region41: #{_recognition_forward.3} parent=39 // pred_check
          %p254 = pneg %p65
        $region42: #{_recognition_forward.3} parent=39 // pred_check_branch
          %256 = sbr.rel (%p254) target = $region44
        $region43: #{_recognition_forward.3} parent=39 // pred_region
          %257 = dma.done [#allocation3], 768
        $region44: #{_recognition_forward.3} parent=39 // pred_fallthru
          _
        // Predicated region
        $region45: #{_recognition_forward.3} parent=39 // pred_check
          %p258 = pneg %p86
        $region46: #{_recognition_forward.3} parent=39 // pred_check_branch
          %260 = sbr.rel (%p258) target = $region48
        $region47: #{_recognition_forward.3} parent=39 // pred_region
          %261 = dma.done [#allocation6], 16
        $region48: #{_recognition_forward.3} parent=39 // pred_fallthru
          _
        // Predicated region
        $region49: #{_recognition_forward.3} parent=39 // pred_check
          %p262 = pneg %p107
        $region50: #{_recognition_forward.3} parent=39 // pred_check_branch
          %264 = sbr.rel (%p262) target = $region52
        $region51: #{_recognition_forward.3} parent=39 // pred_region
          %265 = dma.done [#allocation6], 256
        $region52: #{_recognition_forward.3} parent=39 // pred_fallthru
          _
        %p266 = scmp.lt.s32.totalorder %s23, 1
        %s267 = scalar_select %p266, %s23, 1
        %s268 = smul.addr %s267, 2
        %s269 = smul.addr %s268, 4
        %s270 = scalar_lea.vmem %s0, %s269
        %p271 = pneg %p44
        %p272 = pneg %p41
        %p273 = pneg %p65
        %p274 = pneg %p62
        %p275 = pneg %p86
        %p276 = pneg %p83
        %p277 = pneg %p107
        %p278 = pneg %p104
        %p279 = pneg %p128
        %p280 = pneg %p125
        %p281 = pneg %p154
        %p282 = pneg %p151
        %p283 = scmp.lt.s32.totalorder %s23, 1
        %s284 = scalar_select %p283, %s23, 1
        %s285 = smul.addr %s284, 8
        %s286 = scalar_lea.vmem %s5, %s285
        %p287 = pneg %p180
        %p288 = pneg %p177
        %s289 = sand.u32 %s167, 1
        %s290 = scalar_lea.sflag [#allocation4], %s289
        %s291 = sand.u32 %s167, 1
        %s292 = smul.addr %s291, 8
        %s293 = scalar_lea.vmem [#allocation8], %s292
        %p294 = scmp.lt.s32.totalorder %s23, 1
        %s295 = scalar_select %p294, %s23, 1
        %s296 = smul.addr %s295, 2
        %s297 = smul.addr %s296, 4
        %s298 = scalar_lea.vmem %s0, %s297
        %p299 = scmp.lt.s32.totalorder %s23, 1
        %s300 = scalar_select %p299, %s23, 1
        %s301 = smul.addr %s300, 8
        %s302 = scalar_lea.vmem %s5, %s301
        %v304 = vld [vmem:[%s298] sm:$0xf]
        %v305 = vld [vmem:[%s298 + $0x4] sm:$0x1]
        %v306 = vld [vmem:[%s298] sm:$0xe]
        %v307 = vld [vmem:[#allocation2] sm:$0xf]
        %v308 = vld [vmem:[#allocation2 + $0x4] sm:$0xf]
        %v309 = vld [vmem:[#allocation2 + $0x8] sm:$0xf]
        %v310 = vld [vmem:[#allocation2 + $0xc] sm:$0xf]
        %s311 = scalar_lea.vmem [#allocation2], 16
        %v312 = vld [vmem:[%s311] sm:$0xf]
        %v313 = vld [vmem:[%s311 + $0x4] sm:$0xf]
        %v314 = vld [vmem:[%s311 + $0x8] sm:$0xf]
        %v315 = vld [vmem:[%s311 + $0xc] sm:$0xf]
        %v318 = vunpack.c.l.b16 %v304
        %v319 = vunpack.c.l.b16 %v305
        %v320 = vpack.c.b16 %v319, %v318
        %v322 = vshrl.u32 %v320, 16
        %v324 = vshll.u32 %v320, 16
        %v326 = vrot.slane %v324, 1
        %v327 = vor.u32 %v322, %v326
        %v332 = vunpack.c.l.b16 %v312
        %v333 = vunpack.c.l.b16 %v313
        %v334 = vunpack.c.l.b16 %v314
        %v335 = vunpack.c.l.b16 %v315
        %v336 = vpack.c.b16 %v333, %v332
        %v337 = vpack.c.b16 %v335, %v334
        %vm340 = vcmask 261120
        %v342 = vsel %vm340, %v327, 0
        %344 = vmatprep.subr.bf16.mxu0 0
        %345 = vmatpush1.bf16.msra.mxu0 %v336
        %346 = vmatprep.subr.bf16.mxu0 0
        %347 = vmatpush1.bf16.msra.mxu0 %v337
        %348 = vmatprep.subr.bf16.mxu0 0
        %349 = vmatpush1.bf16.msra.mxu0 0
        %350 = vmatprep.subr.bf16.mxu0 0
        %351 = vmatpush1.bf16.msra.mxu0 0
        %352 = vmatprep.subr.bf16.mxu0 0
        %353 = vmatpush1.bf16.msra.mxu0 0
        %354 = vmatprep.subr.bf16.mxu0 0
        %355 = vmatpush1.bf16.msra.mxu0 0
        %356 = vmatprep.subr.bf16.mxu0 0
        %357 = vmatpush1.bf16.msra.mxu0 0
        %358 = vmatprep.subr.bf16.mxu0 0
        %359 = vmatpush1.bf16.msra.mxu0 0
        %360 = vmatprep.subr.bf16.mxu0 0
        %361 = vmatpush1.bf16.msra.mxu0 0
        %362 = vmatprep.subr.bf16.mxu0 0
        %363 = vmatpush1.bf16.msra.mxu0 0
        %364 = vmatprep.subr.bf16.mxu0 0
        %365 = vmatpush1.bf16.msra.mxu0 0
        %366 = vmatprep.subr.bf16.mxu0 0
        %367 = vmatpush1.bf16.msra.mxu0 0
        %368 = vmatprep.subr.bf16.mxu0 0
        %369 = vmatpush1.bf16.msra.mxu0 0
        %370 = vmatprep.subr.bf16.mxu0 0
        %371 = vmatpush1.bf16.msra.mxu0 0
        %372 = vmatprep.subr.bf16.mxu0 0
        %373 = vmatpush1.bf16.msra.mxu0 0
        %374 = vmatprep.subr.bf16.mxu0 0
        %375 = vmatpush1.bf16.msra.mxu0 0
        %376 = vmatprep.mubr.bf16.mxu0 0
        %377 = vmatmul.mubr.bf16.gmra.mrb[0].mxu0 %v342
        %v378 = vpop.f32.mrb[0].mxu0
        %v379 = vadd.f32 0.0, %v378
        %v380 = vpop.f32.mrb[0].mxu0
        %v381 = vpop.f32.mrb[0].mxu0
        %v382 = vpop.f32.mrb[0].mxu0
        %383 = vdwg.mxu0
        %v388 = vunpack.c.l.b16 %v307
        %v389 = vunpack.c.l.b16 %v308
        %v390 = vunpack.c.l.b16 %v309
        %v391 = vunpack.c.l.b16 %v310
        %v392 = vpack.c.b16 %v389, %v388
        %v393 = vpack.c.b16 %v391, %v390
        %v397 = vsel %vm340, %v304, 0
        %399 = vmatprep.subr.bf16.mxu0 0
        %400 = vmatpush1.bf16.msra.mxu0 %v392
        %401 = vmatprep.subr.bf16.mxu0 0
        %402 = vmatpush1.bf16.msra.mxu0 %v393
        %403 = vmatprep.subr.bf16.mxu0 0
        %404 = vmatpush1.bf16.msra.mxu0 0
        %405 = vmatprep.subr.bf16.mxu0 0
        %406 = vmatpush1.bf16.msra.mxu0 0
        %407 = vmatprep.subr.bf16.mxu0 0
        %408 = vmatpush1.bf16.msra.mxu0 0
        %409 = vmatprep.subr.bf16.mxu0 0
        %410 = vmatpush1.bf16.msra.mxu0 0
        %411 = vmatprep.subr.bf16.mxu0 0
        %412 = vmatpush1.bf16.msra.mxu0 0
        %413 = vmatprep.subr.bf16.mxu0 0
        %414 = vmatpush1.bf16.msra.mxu0 0
        %415 = vmatprep.subr.bf16.mxu0 0
        %416 = vmatpush1.bf16.msra.mxu0 0
        %417 = vmatprep.subr.bf16.mxu0 0
        %418 = vmatpush1.bf16.msra.mxu0 0
        %419 = vmatprep.subr.bf16.mxu0 0
        %420 = vmatpush1.bf16.msra.mxu0 0
        %421 = vmatprep.subr.bf16.mxu0 0
        %422 = vmatpush1.bf16.msra.mxu0 0
        %423 = vmatprep.subr.bf16.mxu0 0
        %424 = vmatpush1.bf16.msra.mxu0 0
        %425 = vmatprep.subr.bf16.mxu0 0
        %426 = vmatpush1.bf16.msra.mxu0 0
        %427 = vmatprep.subr.bf16.mxu0 0
        %428 = vmatpush1.bf16.msra.mxu0 0
        %429 = vmatprep.subr.bf16.mxu0 0
        %430 = vmatpush1.bf16.msra.mxu0 0
        %431 = vmatprep.mubr.bf16.mxu0 0
        %432 = vmatmul.mubr.bf16.gmra.mrb[0].mxu0 %v397
        %v433 = vpop.f32.mrb[0].mxu0
        %v434 = vadd.f32 %v379, %v433
        %v435 = vpop.f32.mrb[0].mxu0
        %v436 = vpop.f32.mrb[0].mxu0
        %v437 = vpop.f32.mrb[0].mxu0
        %438 = vdwg.mxu0
        %s439 = scalar_lea.vmem [#allocation2], 32
        %v440 = vld [vmem:[%s439] sm:$0xf]
        %v441 = vld [vmem:[%s439 + $0x4] sm:$0xf]
        %v442 = vld [vmem:[%s439 + $0x8] sm:$0xf]
        %v443 = vld [vmem:[%s439 + $0xc] sm:$0xf]
        %v445 = vunpack.c.l.b16 %v306
        %v446 = vpack.c.b16 %v319, %v445
        %v447 = vrot.slane %v446, 1
        %v452 = vunpack.c.l.b16 %v440
        %v453 = vunpack.c.l.b16 %v441
        %v454 = vunpack.c.l.b16 %v442
        %v455 = vunpack.c.l.b16 %v443
        %v456 = vpack.c.b16 %v453, %v452
        %v457 = vpack.c.b16 %v455, %v454
        %v461 = vsel %vm340, %v447, 0
        %463 = vmatprep.subr.bf16.mxu0 0
        %464 = vmatpush1.bf16.msra.mxu0 %v456
        %465 = vmatprep.subr.bf16.mxu0 0
        %466 = vmatpush1.bf16.msra.mxu0 %v457
        %467 = vmatprep.subr.bf16.mxu0 0
        %468 = vmatpush1.bf16.msra.mxu0 0
        %469 = vmatprep.subr.bf16.mxu0 0
        %470 = vmatpush1.bf16.msra.mxu0 0
        %471 = vmatprep.subr.bf16.mxu0 0
        %472 = vmatpush1.bf16.msra.mxu0 0
        %473 = vmatprep.subr.bf16.mxu0 0
        %474 = vmatpush1.bf16.msra.mxu0 0
        %475 = vmatprep.subr.bf16.mxu0 0
        %476 = vmatpush1.bf16.msra.mxu0 0
        %477 = vmatprep.subr.bf16.mxu0 0
        %478 = vmatpush1.bf16.msra.mxu0 0
        %479 = vmatprep.subr.bf16.mxu0 0
        %480 = vmatpush1.bf16.msra.mxu0 0
        %481 = vmatprep.subr.bf16.mxu0 0
        %482 = vmatpush1.bf16.msra.mxu0 0
        %483 = vmatprep.subr.bf16.mxu0 0
        %484 = vmatpush1.bf16.msra.mxu0 0
        %485 = vmatprep.subr.bf16.mxu0 0
        %486 = vmatpush1.bf16.msra.mxu0 0
        %487 = vmatprep.subr.bf16.mxu0 0
        %488 = vmatpush1.bf16.msra.mxu0 0
        %489 = vmatprep.subr.bf16.mxu0 0
        %490 = vmatpush1.bf16.msra.mxu0 0
        %491 = vmatprep.subr.bf16.mxu0 0
        %492 = vmatpush1.bf16.msra.mxu0 0
        %493 = vmatprep.subr.bf16.mxu0 0
        %494 = vmatpush1.bf16.msra.mxu0 0
        %495 = vmatprep.mubr.bf16.mxu0 0
        %496 = vmatmul.mubr.bf16.gmra.mrb[0].mxu0 %v461
        %v497 = vpop.f32.mrb[0].mxu0
        %v498 = vadd.f32 0.0, %v497
        %v499 = vpop.f32.mrb[0].mxu0
        %v500 = vpop.f32.mrb[0].mxu0
        %v501 = vpop.f32.mrb[0].mxu0
        %502 = vdwg.mxu0
        %v503 = vadd.f32 %v434, %v498
        %v504 = vld [vmem:[#allocation5] sm:$0x1]
        %v506 = vlaneseq
        %v507 = vshrl.u32 %v506, 7
        %v508 = vsub.s32 0, %v507
        %v509 = vrot.slane %v504, %v508
        %v511 = vadd.f32 %v503, %v509
        %v512 = vmax.f32 %v511, 0.0
        %v513 = vpack.c.bf16 %v512, %v512
        %v514 = vld [vmem:[#allocation7] sm:$0xf]
        %v515 = vld [vmem:[#allocation7 + $0x4] sm:$0xf]
        %v516 = vld [vmem:[#allocation7 + $0x8] sm:$0xf]
        %v517 = vld [vmem:[#allocation7 + $0xc] sm:$0xf]
        %v518 = vld [vmem:[%s4] sm:$0x1]
        %v520 = vlaneseq
        %v521 = vshrl.u32 %v520, 7
        %v522 = vsub.s32 0, %v521
        %v523 = vrot.slane %v518, %v522
        %v529 = vunpack.c.l.b16 %v514
        %v530 = vunpack.c.l.b16 %v515
        %v531 = vunpack.c.l.b16 %v516
        %v532 = vunpack.c.l.b16 %v517
        %v533 = vpack.c.b16 %v530, %v529
        %v534 = vpack.c.b16 %v532, %v531
        %v538 = vsel %vm340, %v513, 0
        %540 = vmatprep.subr.bf16.mxu0 0
        %541 = vmatpush1.bf16.msra.mxu0 %v533
        %542 = vmatprep.subr.bf16.mxu0 0
        %543 = vmatpush1.bf16.msra.mxu0 %v534
        %544 = vmatprep.subr.bf16.mxu0 0
        %545 = vmatpush1.bf16.msra.mxu0 0
        %546 = vmatprep.subr.bf16.mxu0 0
        %547 = vmatpush1.bf16.msra.mxu0 0
        %548 = vmatprep.subr.bf16.mxu0 0
        %549 = vmatpush1.bf16.msra.mxu0 0
        %550 = vmatprep.subr.bf16.mxu0 0
        %551 = vmatpush1.bf16.msra.mxu0 0
        %552 = vmatprep.subr.bf16.mxu0 0
        %553 = vmatpush1.bf16.msra.mxu0 0
        %554 = vmatprep.subr.bf16.mxu0 0
        %555 = vmatpush1.bf16.msra.mxu0 0
        %556 = vmatprep.subr.bf16.mxu0 0
        %557 = vmatpush1.bf16.msra.mxu0 0
        %558 = vmatprep.subr.bf16.mxu0 0
        %559 = vmatpush1.bf16.msra.mxu0 0
        %560 = vmatprep.subr.bf16.mxu0 0
        %561 = vmatpush1.bf16.msra.mxu0 0
        %562 = vmatprep.subr.bf16.mxu0 0
        %563 = vmatpush1.bf16.msra.mxu0 0
        %564 = vmatprep.subr.bf16.mxu0 0
        %565 = vmatpush1.bf16.msra.mxu0 0
        %566 = vmatprep.subr.bf16.mxu0 0
        %567 = vmatpush1.bf16.msra.mxu0 0
        %568 = vmatprep.subr.bf16.mxu0 0
        %569 = vmatpush1.bf16.msra.mxu0 0
        %570 = vmatprep.subr.bf16.mxu0 0
        %571 = vmatpush1.bf16.msra.mxu0 0
        %572 = vmatprep.mubr.bf16.mxu0 0
        %573 = vmatmul.mubr.bf16.gmra.mrb[0].mxu0 %v538
        %v574 = vpop.f32.mrb[0].mxu0
        %v575 = vadd.f32 %v523, %v574
        %v576 = vpop.f32.mrb[0].mxu0
        %v577 = vpop.f32.mrb[0].mxu0
        %v578 = vpop.f32.mrb[0].mxu0
        %579 = vdwg.mxu0
        %580 = vst [vmem:[%s302] sm:$0xff] %v575
        %v581 = vlaneseq
        %v582 = vand.u32 %v581, 127
        %vm583 = vcmp.lt.s32.totalorder %v582, 64
        %v584 = vsel %vm583, %v575, -1e+30
        %585 = vmax.xlane.f32.xlu0 %v584
        %v586 = vpop.xlane.xlu0 %585
        %v587 = vsub.f32 %v584, %v586
        %v588 = vmul.f32 %v587, 1.442695
        %v589 = vpow.pop %v588
        %590 = vadd.xlane.f32.xlu0 %v589
        %v591 = vpop.xlane.xlu0 %590
        %v592 = vlog2.pop %v591
        %v593 = vmul.f32 %v592, 0.6931472
        %v594 = vadd.f32 %v593, %v586
        %v595 = vsub.f32 %v575, %v594
        %596 = vst [vmem:[%s293] sm:$0xff] %v595
        %p597 = scmp.lt.s32.totalorder %s23, 1
        %s598 = scalar_select %p597, %s23, 1
        %s599 = smul.addr %s598, 8
        %s600 = scalar_lea.vmem %s5, %s599
        %s601 = sand.u32 %s167, 1
        %s602 = scalar_lea.sflag [#allocation4], %s601
        %s603 = sand.u32 %s167, 1
        %s604 = smul.addr %s603, 8
        %s605 = scalar_lea.vmem [#allocation8], %s604
        // Predicated region
        $region53: #{_recognition_forward.3} parent=39 // pred_check
          %p606 = pneg %p151
        $region54: #{_recognition_forward.3} parent=39 // pred_check_branch
          %608 = sbr.rel (%p606) target = $region56
        $region55: #{_recognition_forward.3} parent=39 // pred_region
          _
        $region56: #{_recognition_forward.3} parent=39 // pred_fallthru
          _
        // Predicated region
        $region57: #{_recognition_forward.3} parent=39 // pred_check
          %p609 = pneg %p177
        $region58: #{_recognition_forward.3} parent=39 // pred_check_branch
          %611 = sbr.rel (%p609) target = $region60
        $region59: #{_recognition_forward.3} parent=39 // pred_region
          %s613 = ssub.s32 128, 128
          %614 = vsyncadd %s602, %s613
          %s615 = smul.addr %s23, 128
          %s616 = scalar_lea.hbm %s6, %s615
          %s618 = sshll.u32 %s605, 4
          %s619 = int_to_ptr.vmem [resolvable:$true] %s618
          %621 = dma.vmem_to_hbm [thread:$0]  %s619, 128, %s616, %s602
        $region60: #{_recognition_forward.3} parent=39 // pred_fallthru
          _
      $region40: #{_recognition_forward.3} parent=5 // pred_fallthru
        _
      %p622 = scmp.le.s32.totalorder 2, %s18
      // Predicated region
      $region61: #{_recognition_forward.3} parent=5 // pred_check
        %p623 = pneg %p622
      $region62: #{_recognition_forward.3} parent=5 // pred_check_branch
        %625 = sbr.rel (%p623) target = $region64
      $region63: #{_recognition_forward.3} parent=5 // pred_region
        %s626 = ssub.s32 %s18, 2
        // Predicated region
        $region65: #{_recognition_forward.3} parent=63 // pred_check
          %p627 = pneg %p157
        $region66: #{_recognition_forward.3} parent=63 // pred_check_branch
          %629 = sbr.rel (%p627) target = $region68
        $region67: #{_recognition_forward.3} parent=63 // pred_region
          %p630 = scmp.lt.s32.totalorder %s24, 1
          %s631 = scalar_select %p630, %s24, 1
          %s632 = smul.addr %s631, 8
          %s633 = scalar_lea.vmem %s5, %s632
        $region68: #{_recognition_forward.3} parent=63 // pred_fallthru
          _
        // Predicated region
        $region69: #{_recognition_forward.3} parent=63 // pred_check
          %p634 = pneg %p183
        $region70: #{_recognition_forward.3} parent=63 // pred_check_branch
          %636 = sbr.rel (%p634) target = $region72
        $region71: #{_recognition_forward.3} parent=63 // pred_region
          %s637 = sand.u32 %s168, 1
          %s638 = scalar_lea.sflag [#allocation4], %s637
          %s639 = sand.u32 %s168, 1
          %s640 = smul.addr %s639, 8
          %s641 = scalar_lea.vmem [#allocation8], %s640
          %642 = dma.done %s638, 128
        $region72: #{_recognition_forward.3} parent=63 // pred_fallthru
          _
      $region64: #{_recognition_forward.3} parent=5 // pred_fallthru
        _
    $region6: #{_recognition_forward.3} parent=1 // loop_footer
      %s22 = sadd.s32 1, %s18
    $region7: #{_recognition_forward.3} parent=1 // loop_footer_branch
      %17 = sbr.rel target = $region3
    $region8: #{_recognition_forward.3} parent=1 // loop_exit
      _
    %643 = vsyncpa [#allocation3], 1
    %s644 = scalar_lea.sflag [#allocation3], 1
    %645 = vsyncpa %s644, 1
    %646 = vsyncpa [#allocation6], 1
    %647 = vsyncpa [#allocation4], 1
    %s648 = scalar_lea.sflag [#allocation4], 1
    %649 = vsyncpa %s648, 1

// kernel: _recognition_forward.2
$region0: #{_recognition_forward.2}
  #allocation0 [shape = 'u32[]', space=smem, size = 0x4, offset = 0x4, fixed_abs, tag = 'smem constant byte address 0x4 - core index']
  #allocation1 [shape = 'u32[144,128]{1,0:T(1,128)}', space=vmem, size = 0x12000, scoped, tag = 'internal scratch']
  %s0 = inlined_call_operand.hbm [shape: bf16[4096,36], index: 0, kind: input, shape index: {}]
  %s1 = inlined_call_operand.hbm [shape: bf16[36,32], index: 1, kind: input, shape index: {}]
  %s2 = inlined_call_operand.hbm [shape: f32[1,32], index: 2, kind: input, shape index: {}]
  %s3 = inlined_call_operand.hbm [shape: bf16[16,32], index: 3, kind: output, shape index: {}]
  %s4 = sld [smem:[#allocation0]]
  $region57: #{_recognition_forward.2} parent=0
    _
  %s6 = ssub.s32 1, %s4
  %s7 = scalar_select 0, %s6, %s4
  $region1: #{_recognition_forward.2} parent=0
    #allocation2 [shape = 'u8[1048576]{0}', space=vmem, size = 0x100000, scoped, tag = 'input window, operand 0']
    #allocation3 [shape = 's32[2]{0}', space=sflag, size = 0x8, scoped, tag = 'scoped memory for _recognition_forward.2']
    #allocation4 [shape = 's32[2]{0}', space=sflag, size = 0x8, scoped, tag = 'scoped memory for _recognition_forward.2']
    #allocation5 [shape = 'u8[10240]{0}', space=vmem, size = 0x2800, scoped, tag = 'input window, operand 1, single buffered']
    #allocation6 [shape = 's32[1]{0}', space=sflag, size = 0x4, scoped, tag = 'scoped memory for _recognition_forward.2']
    #allocation7 [shape = 'u8[512]{0}', space=vmem, size = 0x400, scoped, tag = 'input window, operand 2, single buffered']
    #allocation8 [shape = 'u8[4096]{0}', space=vmem, size = 0x1000, scoped, tag = 'output window, operand 0']
    %8 = vsyncpa [#allocation3], 0
    %s9 = scalar_lea.sflag [#allocation3], 1
    %10 = vsyncpa %s9, 0
    %11 = vsyncpa [#allocation6], 0
    %12 = vsyncpa [#allocation4], 0
    %s13 = scalar_lea.sflag [#allocation4], 1
    %14 = vsyncpa %s13, 0
    loop: start=0, step=1, limit=4
    $region2: #{_recognition_forward.2} parent=1 // loop_pre_header
      _
    $region3: #{_recognition_forward.2} parent=1 // loop_header
      %s16 = sphi 0, %s20
      %p17 = scmp.ge.s32.totalorder %s16, 4
      %s26 = sphi 0, %s28
      %s29 = sphi 0, %s26
      %s30 = sphi 0, %s29
      %s46 = sphi 0, %s30
      %s50 = sphi 0, %s50
      %s52 = sphi 0, %s50
      %s53 = sphi 0, %s52
      %s67 = sphi 0, %s53
      %s71 = sphi 0, %s71
      %s73 = sphi 0, %s71
      %s74 = sphi 0, %s73
      %s88 = sphi 0, %s74
      %s94 = sphi 0, %s96
      %s97 = sphi 0, %s94
      %s98 = sphi 0, %s97
      %s114 = sphi 0, %s98
    $region4: #{_recognition_forward.2} parent=1 // loop_header_branch
      %19 = sbr.rel (%p17) target = $region8
    $region5: #{_recognition_forward.2} parent=1 // loop_body
      %s21 = ssub.s32 %s16, 1
      %s22 = ssub.s32 %s16, 2
      %s23 = sadd.s32 %s16, 1
      %s24 = ssub.s32 %s16, %s23
      %p25 = scmp.eq.s32.totalorder %s24, 0
      %s27 = sadd.s32 %s26, 1
      %s28 = scalar_select %p25, %s26, %s27
      %p31 = pneg %p25
      %p32 = scmp.eq.s32.totalorder %s16, 1
      %p33 = por %p31, %p32
      %p34 = scmp.ne.s32.totalorder %s26, %s29
      %p35 = scmp.eq.s32.totalorder %s16, 0
      %p36 = por %p34, %p35
      %p37 = scmp.ne.s32.totalorder %s26, %s29
      %p38 = scmp.eq.s32.totalorder %s21, 1
      %p39 = por %p37, %p38
      %p40 = scmp.ne.s32.totalorder %s29, %s30
      %p41 = scmp.eq.s32.totalorder %s21, 0
      %p42 = por %p40, %p41
      %p43 = scmp.ne.s32.totalorder %s29, %s30
      %p44 = scmp.eq.s32.totalorder %s22, 1
      %p45 = por %p43, %p44
      %p47 = scmp.ne.s32.totalorder %s30, %s46
      %p48 = scmp.eq.s32.totalorder %s22, 0
      %p49 = por %p47, %p48
      %s51 = sadd.s32 %s50, 1
      %p54 = scmp.eq.s32.totalorder %s16, 1
      %p55 = scmp.ne.s32.totalorder %s50, %s52
      %p56 = scmp.eq.s32.totalorder %s16, 0
      %p57 = por %p55, %p56
      %p58 = scmp.ne.s32.totalorder %s50, %s52
      %p59 = scmp.eq.s32.totalorder %s21, 1
      %p60 = por %p58, %p59
      %p61 = scmp.ne.s32.totalorder %s52, %s53
      %p62 = scmp.eq.s32.totalorder %s21, 0
      %p63 = por %p61, %p62
      %p64 = scmp.ne.s32.totalorder %s52, %s53
      %p65 = scmp.eq.s32.totalorder %s22, 1
      %p66 = por %p64, %p65
      %p68 = scmp.ne.s32.totalorder %s53, %s67
      %p69 = scmp.eq.s32.totalorder %s22, 0
      %p70 = por %p68, %p69
      %s72 = sadd.s32 %s71, 1
      %p75 = scmp.eq.s32.totalorder %s16, 1
      %p76 = scmp.ne.s32.totalorder %s71, %s73
      %p77 = scmp.eq.s32.totalorder %s16, 0
      %p78 = por %p76, %p77
      %p79 = scmp.ne.s32.totalorder %s71, %s73
      %p80 = scmp.eq.s32.totalorder %s21, 1
      %p81 = por %p79, %p80
      %p82 = scmp.ne.s32.totalorder %s73, %s74
      %p83 = scmp.eq.s32.totalorder %s21, 0
      %p84 = por %p82, %p83
      %p85 = scmp.ne.s32.totalorder %s73, %s74
      %p86 = scmp.eq.s32.totalorder %s22, 1
      %p87 = por %p85, %p86
      %p89 = scmp.ne.s32.totalorder %s74, %s88
      %p90 = scmp.eq.s32.totalorder %s22, 0
      %p91 = por %p89, %p90
      %s92 = ssub.s32 %s16, %s23
      %p93 = scmp.eq.s32.totalorder %s92, 0
      %s95 = sadd.s32 %s94, 1
      %s96 = scalar_select %p93, %s94, %s95
      %p99 = pneg %p93
      %p100 = scmp.eq.s32.totalorder %s16, 1
      %p101 = por %p99, %p100
      %p102 = scmp.ne.s32.totalorder %s94, %s97
      %p103 = scmp.eq.s32.totalorder %s16, 0
      %p104 = por %p102, %p103
      %p105 = scmp.ne.s32.totalorder %s94, %s97
      %p106 = scmp.eq.s32.totalorder %s21, 1
      %p107 = por %p105, %p106
      %p108 = scmp.ne.s32.totalorder %s97, %s98
      %p109 = scmp.eq.s32.totalorder %s21, 0
      %p110 = por %p108, %p109
      %p111 = scmp.ne.s32.totalorder %s97, %s98
      %p112 = scmp.eq.s32.totalorder %s22, 1
      %p113 = por %p111, %p112
      %p115 = scmp.ne.s32.totalorder %s98, %s114
      %p116 = scmp.eq.s32.totalorder %s22, 0
      %p117 = por %p115, %p116
      %p118 = scmp.le.s32.totalorder 1, %s16
      %p119 = scmp.lt.s32.totalorder %s16, 3
      %p120 = pnand %p118, %p119
      %p121 = pneg %p120
      // Predicated region
      $region9: #{_recognition_forward.2} parent=5 // pred_check
        _
      $region10: #{_recognition_forward.2} parent=5 // pred_check_branch
        %123 = sbr.rel (%p120) target = $region12
      $region11: #{_recognition_forward.2} parent=5 // pred_region
        %s124 = ssub.s32 %s16, 1
        // Predicated region
        $region13: #{_recognition_forward.2} parent=11 // pred_check
          %p125 = pneg %p63
        $region14: #{_recognition_forward.2} parent=11 // pred_check_branch
          %127 = sbr.rel (%p125) target = $region16
        $region15: #{_recognition_forward.2} parent=11 // pred_region
          %s129 = ssub.s32 320, 320
          %130 = vsyncadd [#allocation6], %s129
          %s131 = sshll.u32 [#allocation5], 4
          %s132 = int_to_ptr.vmem [resolvable:$true] %s131
          %137 = dma.hbm_to_vmem [thread:$0]  %s1, 320, %s132, [#allocation6], 64, 64, 4
        $region16: #{_recognition_forward.2} parent=11 // pred_fallthru
          _
        // Predicated region
        $region17: #{_recognition_forward.2} parent=11 // pred_check
          %p138 = pneg %p84
        $region18: #{_recognition_forward.2} parent=11 // pred_check_branch
          %140 = sbr.rel (%p138) target = $region20
        $region19: #{_recognition_forward.2} parent=11 // pred_region
          %s142 = ssub.s32 16, 16
          %143 = vsyncadd [#allocation6], %s142
          %s145 = sshll.u32 [#allocation7], 4
          %s146 = int_to_ptr.vmem [resolvable:$true] %s145
          %148 = dma.hbm_to_vmem [thread:$0]  %s2, 16, %s146, [#allocation6]
        $region20: #{_recognition_forward.2} parent=11 // pred_fallthru
          _
      $region12: #{_recognition_forward.2} parent=5 // pred_fallthru
        _
      %p149 = scmp.lt.s32.totalorder %s16, 2
      // Predicated region
      $region21: #{_recognition_forward.2} parent=5 // pred_check
        %p150 = pneg %p149
      $region22: #{_recognition_forward.2} parent=5 // pred_check_branch
        %152 = sbr.rel (%p150) target = $region24
      $region23: #{_recognition_forward.2} parent=5 // pred_region
        // Predicated region
        $region25: #{_recognition_forward.2} parent=23 // pred_check
          %p153 = pneg %p36
        $region26: #{_recognition_forward.2} parent=23 // pred_check_branch
          %155 = sbr.rel (%p153) target = $region28
        $region27: #{_recognition_forward.2} parent=23 // pred_region
          %s156 = sand.u32 %s26, 1
          %s157 = scalar_lea.sflag [#allocation3], %s156
          %s158 = sand.u32 %s26, 1
          %s159 = smul.addr %s158, 1024
          %s160 = scalar_lea.vmem [#allocation2], %s159
          %s161 = smul.u32 256, %s16
          %s163 = ssub.s32 16384, 16384
          %164 = vsyncadd %s157, %s163
          %s165 = smul.addr %s161, 64
          %s166 = scalar_lea.hbm %s0, %s165
          %s167 = sshll.u32 %s160, 4
          %s168 = int_to_ptr.vmem [resolvable:$true] %s167
          %173 = dma.hbm_to_vmem [thread:$0]  %s166, 16384, %s168, %s157, 64, 64, 4
        $region28: #{_recognition_forward.2} parent=23 // pred_fallthru
          _
      $region24: #{_recognition_forward.2} parent=5 // pred_fallthru
        _
      %p174 = scmp.le.s32.totalorder 1, %s16
      %p175 = scmp.lt.s32.totalorder %s16, 3
      %p176 = pnand %p174, %p175
      %p177 = pneg %p176
      // Predicated region
      $region29: #{_recognition_forward.2} parent=5 // pred_check
        _
      $region30: #{_recognition_forward.2} parent=5 // pred_check_branch
        %179 = sbr.rel (%p176) target = $region32
      $region31: #{_recognition_forward.2} parent=5 // pred_region
        %s180 = ssub.s32 %s16, 1
        %s181 = sand.u32 %s29, 1
        %s182 = scalar_lea.sflag [#allocation3], %s181
        %s183 = sand.u32 %s29, 1
        %s184 = smul.addr %s183, 1024
        %s185 = scalar_lea.vmem [#allocation2], %s184
        // Predicated region
        $region33: #{_recognition_forward.2} parent=31 // pred_check
          %p186 = pneg %p42
        $region34: #{_recognition_forward.2} parent=31 // pred_check_branch
          %188 = sbr.rel (%p186) target = $region36
        $region35: #{_recognition_forward.2} parent=31 // pred_region
          %189 = dma.done %s182, 16384
        $region36: #{_recognition_forward.2} parent=31 // pred_fallthru
          _
        // Predicated region
        $region37: #{_recognition_forward.2} parent=31 // pred_check
          %p190 = pneg %p63
        $region38: #{_recognition_forward.2} parent=31 // pred_check_branch
          %192 = sbr.rel (%p190) target = $region40
        $region39: #{_recognition_forward.2} parent=31 // pred_region
          %193 = dma.done [#allocation6], 320
        $region40: #{_recognition_forward.2} parent=31 // pred_fallthru
          _
        // Predicated region
        $region41: #{_recognition_forward.2} parent=31 // pred_check
          %p194 = pneg %p84
        $region42: #{_recognition_forward.2} parent=31 // pred_check_branch
          %196 = sbr.rel (%p194) target = $region44
        $region43: #{_recognition_forward.2} parent=31 // pred_region
          %197 = dma.done [#allocation6], 16
        $region44: #{_recognition_forward.2} parent=31 // pred_fallthru
          _
        %s198 = sand.u32 %s29, 1
        %s199 = scalar_lea.sflag [#allocation3], %s198
        %s200 = sand.u32 %s29, 1
        %s201 = smul.addr %s200, 1024
        %s202 = scalar_lea.vmem [#allocation2], %s201
        %p203 = pneg %p42
        %p204 = pneg %p39
        %p205 = pneg %p63
        %p206 = pneg %p60
        %p207 = pneg %p84
        %p208 = pneg %p81
        %p209 = pneg %p110
        %p210 = pneg %p107
        %s211 = sand.u32 %s97, 1
        %s212 = scalar_lea.sflag [#allocation4], %s211
        %s213 = sand.u32 %s97, 1
        %s214 = smul.addr %s213, 4
        %s215 = scalar_lea.vmem [#allocation8], %s214
        %s216 = smul.u32 256, %s21
        %v218 = vld [vmem:[%s185] sm:$0xf]
        %v219 = vld [vmem:[%s185 + $0x4] sm:$0xf]
        %v220 = vld [vmem:[%s185 + $0x8] sm:$0xf]
        %v221 = vld [vmem:[%s185 + $0xc] sm:$0xf]
        %v222 = vld [vmem:[%s185 + $0x10] sm:$0xf]
        %v223 = vld [vmem:[%s185 + $0x14] sm:$0xf]
        %v224 = vld [vmem:[%s185 + $0x18] sm:$0xf]
        %v225 = vld [vmem:[%s185 + $0x1c] sm:$0xf]
        %v226 = vld [vmem:[%s185 + $0x20] sm:$0xf]
        %v227 = vld [vmem:[%s185 + $0x24] sm:$0xf]
        %v228 = vld [vmem:[%s185 + $0x28] sm:$0xf]
        %v229 = vld [vmem:[%s185 + $0x2c] sm:$0xf]
        %v230 = vld [vmem:[%s185 + $0x30] sm:$0xf]
        %v231 = vld [vmem:[%s185 + $0x34] sm:$0xf]
        %v232 = vld [vmem:[%s185 + $0x38] sm:$0xf]
        %v233 = vld [vmem:[%s185 + $0x3c] sm:$0xf]
        %v234 = vld [vmem:[%s185 + $0x40] sm:$0xf]
        %v235 = vld [vmem:[%s185 + $0x44] sm:$0xf]
        %v236 = vld [vmem:[%s185 + $0x48] sm:$0xf]
        %v237 = vld [vmem:[%s185 + $0x4c] sm:$0xf]
        %v238 = vld [vmem:[%s185 + $0x50] sm:$0xf]
        %v239 = vld [vmem:[%s185 + $0x54] sm:$0xf]
        %v240 = vld [vmem:[%s185 + $0x58] sm:$0xf]
        %v241 = vld [vmem:[%s185 + $0x5c] sm:$0xf]
        %v242 = vld [vmem:[%s185 + $0x60] sm:$0xf]
        %v243 = vld [vmem:[%s185 + $0x64] sm:$0xf]
        %v244 = vld [vmem:[%s185 + $0x68] sm:$0xf]
        %v245 = vld [vmem:[%s185 + $0x6c] sm:$0xf]
        %v246 = vld [vmem:[%s185 + $0x70] sm:$0xf]
        %v247 = vld [vmem:[%s185 + $0x74] sm:$0xf]
        %v248 = vld [vmem:[%s185 + $0x78] sm:$0xf]
        %v249 = vld [vmem:[%s185 + $0x7c] sm:$0xf]
        %v250 = vld [vmem:[%s185 + $0x80] sm:$0xf]
        %v251 = vld [vmem:[%s185 + $0x84] sm:$0xf]
        %v252 = vld [vmem:[%s185 + $0x88] sm:$0xf]
        %v253 = vld [vmem:[%s185 + $0x8c] sm:$0xf]
        %v254 = vld [vmem:[%s185 + $0x90] sm:$0xf]
        %v255 = vld [vmem:[%s185 + $0x94] sm:$0xf]
        %v256 = vld [vmem:[%s185 + $0x98] sm:$0xf]
        %v257 = vld [vmem:[%s185 + $0x9c] sm:$0xf]
        %v258 = vld [vmem:[%s185 + $0xa0] sm:$0xf]
        %v259 = vld [vmem:[%s185 + $0xa4] sm:$0xf]
        %v260 = vld [vmem:[%s185 + $0xa8] sm:$0xf]
        %v261 = vld [vmem:[%s185 + $0xac] sm:$0xf]
        %v262 = vld [vmem:[%s185 + $0xb0] sm:$0xf]
        %v263 = vld [vmem:[%s185 + $0xb4] sm:$0xf]
        %v264 = vld [vmem:[%s185 + $0xb8] sm:$0xf]
        %v265 = vld [vmem:[%s185 + $0xbc] sm:$0xf]
        %v266 = vld [vmem:[%s185 + $0xc0] sm:$0xf]
        %v267 = vld [vmem:[%s185 + $0xc4] sm:$0xf]
        %v268 = vld [vmem:[%s185 + $0xc8] sm:$0xf]
        %v269 = vld [vmem:[%s185 + $0xcc] sm:$0xf]
        %v270 = vld [vmem:[%s185 + $0xd0] sm:$0xf]
        %v271 = vld [vmem:[%s185 + $0xd4] sm:$0xf]
        %v272 = vld [vmem:[%s185 + $0xd8] sm:$0xf]
        %v273 = vld [vmem:[%s185 + $0xdc] sm:$0xf]
        %v274 = vld [vmem:[%s185 + $0xe0] sm:$0xf]
        %v275 = vld [vmem:[%s185 + $0xe4] sm:$0xf]
        %v276 = vld [vmem:[%s185 + $0xe8] sm:$0xf]
        %v277 = vld [vmem:[%s185 + $0xec] sm:$0xf]
        %v278 = vld [vmem:[%s185 + $0xf0] sm:$0xf]
        %v279 = vld [vmem:[%s185 + $0xf4] sm:$0xf]
        %v280 = vld [vmem:[%s185 + $0xf8] sm:$0xf]
        %v281 = vld [vmem:[%s185 + $0xfc] sm:$0xf]
        %v282 = vld [vmem:[%s185 + $0x100] sm:$0xf]
        %v283 = vld [vmem:[%s185 + $0x104] sm:$0xf]
        %v284 = vld [vmem:[%s185 + $0x108] sm:$0xf]
        %v285 = vld [vmem:[%s185 + $0x10c] sm:$0xf]
        %v286 = vld [vmem:[%s185 + $0x110] sm:$0xf]
        %v287 = vld [vmem:[%s185 + $0x114] sm:$0xf]
        %v288 = vld [vmem:[%s185 + $0x118] sm:$0xf]
        %v289 = vld [vmem:[%s185 + $0x11c] sm:$0xf]
        %v290 = vld [vmem:[%s185 + $0x120] sm:$0xf]
        %v291 = vld [vmem:[%s185 + $0x124] sm:$0xf]
        %v292 = vld [vmem:[%s185 + $0x128] sm:$0xf]
        %v293 = vld [vmem:[%s185 + $0x12c] sm:$0xf]
        %v294 = vld [vmem:[%s185 + $0x130] sm:$0xf]
        %v295 = vld [vmem:[%s185 + $0x134] sm:$0xf]
        %v296 = vld [vmem:[%s185 + $0x138] sm:$0xf]
        %v297 = vld [vmem:[%s185 + $0x13c] sm:$0xf]
        %v298 = vld [vmem:[%s185 + $0x140] sm:$0xf]
        %v299 = vld [vmem:[%s185 + $0x144] sm:$0xf]
        %v300 = vld [vmem:[%s185 + $0x148] sm:$0xf]
        %v301 = vld [vmem:[%s185 + $0x14c] sm:$0xf]
        %v302 = vld [vmem:[%s185 + $0x150] sm:$0xf]
        %v303 = vld [vmem:[%s185 + $0x154] sm:$0xf]
        %v304 = vld [vmem:[%s185 + $0x158] sm:$0xf]
        %v305 = vld [vmem:[%s185 + $0x15c] sm:$0xf]
        %v306 = vld [vmem:[%s185 + $0x160] sm:$0xf]
        %v307 = vld [vmem:[%s185 + $0x164] sm:$0xf]
        %v308 = vld [vmem:[%s185 + $0x168] sm:$0xf]
        %v309 = vld [vmem:[%s185 + $0x16c] sm:$0xf]
        %v310 = vld [vmem:[%s185 + $0x170] sm:$0xf]
        %v311 = vld [vmem:[%s185 + $0x174] sm:$0xf]
        %v312 = vld [vmem:[%s185 + $0x178] sm:$0xf]
        %v313 = vld [vmem:[%s185 + $0x17c] sm:$0xf]
        %v314 = vld [vmem:[%s185 + $0x180] sm:$0xf]
        %v315 = vld [vmem:[%s185 + $0x184] sm:$0xf]
        %v316 = vld [vmem:[%s185 + $0x188] sm:$0xf]
        %v317 = vld [vmem:[%s185 + $0x18c] sm:$0xf]
        %v318 = vld [vmem:[%s185 + $0x190] sm:$0xf]
        %v319 = vld [vmem:[%s185 + $0x194] sm:$0xf]
        %v320 = vld [vmem:[%s185 + $0x198] sm:$0xf]
        %v321 = vld [vmem:[%s185 + $0x19c] sm:$0xf]
        %v322 = vld [vmem:[%s185 + $0x1a0] sm:$0xf]
        %v323 = vld [vmem:[%s185 + $0x1a4] sm:$0xf]
        %v324 = vld [vmem:[%s185 + $0x1a8] sm:$0xf]
        %v325 = vld [vmem:[%s185 + $0x1ac] sm:$0xf]
        %v326 = vld [vmem:[%s185 + $0x1b0] sm:$0xf]
        %v327 = vld [vmem:[%s185 + $0x1b4] sm:$0xf]
        %v328 = vld [vmem:[%s185 + $0x1b8] sm:$0xf]
        %v329 = vld [vmem:[%s185 + $0x1bc] sm:$0xf]
        %v330 = vld [vmem:[%s185 + $0x1c0] sm:$0xf]
        %v331 = vld [vmem:[%s185 + $0x1c4] sm:$0xf]
        %v332 = vld [vmem:[%s185 + $0x1c8] sm:$0xf]
        %v333 = vld [vmem:[%s185 + $0x1cc] sm:$0xf]
        %v334 = vld [vmem:[%s185 + $0x1d0] sm:$0xf]
        %v335 = vld [vmem:[%s185 + $0x1d4] sm:$0xf]
        %v336 = vld [vmem:[%s185 + $0x1d8] sm:$0xf]
        %v337 = vld [vmem:[%s185 + $0x1dc] sm:$0xf]
        %v338 = vld [vmem:[%s185 + $0x1e0] sm:$0xf]
        %v339 = vld [vmem:[%s185 + $0x1e4] sm:$0xf]
        %v340 = vld [vmem:[%s185 + $0x1e8] sm:$0xf]
        %v341 = vld [vmem:[%s185 + $0x1ec] sm:$0xf]
        %v342 = vld [vmem:[%s185 + $0x1f0] sm:$0xf]
        %v343 = vld [vmem:[%s185 + $0x1f4] sm:$0xf]
        %v344 = vld [vmem:[%s185 + $0x1f8] sm:$0xf]
        %v345 = vld [vmem:[%s185 + $0x1fc] sm:$0xf]
        %v346 = vld [vmem:[%s185 + $0x200] sm:$0xf]
        %v347 = vld [vmem:[%s185 + $0x204] sm:$0xf]
        %v348 = vld [vmem:[%s185 + $0x208] sm:$0xf]
        %v349 = vld [vmem:[%s185 + $0x20c] sm:$0xf]
        %v350 = vld [vmem:[%s185 + $0x210] sm:$0xf]
        %v351 = vld [vmem:[%s185 + $0x214] sm:$0xf]
        %v352 = vld [vmem:[%s185 + $0x218] sm:$0xf]
        %v353 = vld [vmem:[%s185 + $0x21c] sm:$0xf]
        %v354 = vld [vmem:[%s185 + $0x220] sm:$0xf]
        %v355 = vld [vmem:[%s185 + $0x224] sm:$0xf]
        %v356 = vld [vmem:[%s185 + $0x228] sm:$0xf]
        %v357 = vld [vmem:[%s185 + $0x22c] sm:$0xf]
        %v358 = vld [vmem:[%s185 + $0x230] sm:$0xf]
        %v359 = vld [vmem:[%s185 + $0x234] sm:$0xf]
        %v360 = vld [vmem:[%s185 + $0x238] sm:$0xf]
        %v361 = vld [vmem:[%s185 + $0x23c] sm:$0xf]
        %v362 = vld [vmem:[%s185 + $0x240] sm:$0xf]
        %v363 = vld [vmem:[%s185 + $0x244] sm:$0xf]
        %v364 = vld [vmem:[%s185 + $0x248] sm:$0xf]
        %v365 = vld [vmem:[%s185 + $0x24c] sm:$0xf]
        %v366 = vld [vmem:[%s185 + $0x250] sm:$0xf]
        %v367 = vld [vmem:[%s185 + $0x254] sm:$0xf]
        %v368 = vld [vmem:[%s185 + $0x258] sm:$0xf]
        %v369 = vld [vmem:[%s185 + $0x25c] sm:$0xf]
        %v370 = vld [vmem:[%s185 + $0x260] sm:$0xf]
        %v371 = vld [vmem:[%s185 + $0x264] sm:$0xf]
        %v372 = vld [vmem:[%s185 + $0x268] sm:$0xf]
        %v373 = vld [vmem:[%s185 + $0x26c] sm:$0xf]
        %v374 = vld [vmem:[%s185 + $0x270] sm:$0xf]
        %v375 = vld [vmem:[%s185 + $0x274] sm:$0xf]
        %v376 = vld [vmem:[%s185 + $0x278] sm:$0xf]
        %v377 = vld [vmem:[%s185 + $0x27c] sm:$0xf]
        %v378 = vld [vmem:[%s185 + $0x280] sm:$0xf]
        %v379 = vld [vmem:[%s185 + $0x284] sm:$0xf]
        %v380 = vld [vmem:[%s185 + $0x288] sm:$0xf]
        %v381 = vld [vmem:[%s185 + $0x28c] sm:$0xf]
        %v382 = vld [vmem:[%s185 + $0x290] sm:$0xf]
        %v383 = vld [vmem:[%s185 + $0x294] sm:$0xf]
        %v384 = vld [vmem:[%s185 + $0x298] sm:$0xf]
        %v385 = vld [vmem:[%s185 + $0x29c] sm:$0xf]
        %v386 = vld [vmem:[%s185 + $0x2a0] sm:$0xf]
        %v387 = vld [vmem:[%s185 + $0x2a4] sm:$0xf]
        %v388 = vld [vmem:[%s185 + $0x2a8] sm:$0xf]
        %v389 = vld [vmem:[%s185 + $0x2ac] sm:$0xf]
        %v390 = vld [vmem:[%s185 + $0x2b0] sm:$0xf]
        %v391 = vld [vmem:[%s185 + $0x2b4] sm:$0xf]
        %v392 = vld [vmem:[%s185 + $0x2b8] sm:$0xf]
        %v393 = vld [vmem:[%s185 + $0x2bc] sm:$0xf]
        %v394 = vld [vmem:[%s185 + $0x2c0] sm:$0xf]
        %v395 = vld [vmem:[%s185 + $0x2c4] sm:$0xf]
        %v396 = vld [vmem:[%s185 + $0x2c8] sm:$0xf]
        %v397 = vld [vmem:[%s185 + $0x2cc] sm:$0xf]
        %v398 = vld [vmem:[%s185 + $0x2d0] sm:$0xf]
        %v399 = vld [vmem:[%s185 + $0x2d4] sm:$0xf]
        %v400 = vld [vmem:[%s185 + $0x2d8] sm:$0xf]
        %v401 = vld [vmem:[%s185 + $0x2dc] sm:$0xf]
        %v402 = vld [vmem:[%s185 + $0x2e0] sm:$0xf]
        %v403 = vld [vmem:[%s185 + $0x2e4] sm:$0xf]
        %v404 = vld [vmem:[%s185 + $0x2e8] sm:$0xf]
        %v405 = vld [vmem:[%s185 + $0x2ec] sm:$0xf]
        %v406 = vld [vmem:[%s185 + $0x2f0] sm:$0xf]
        %v407 = vld [vmem:[%s185 + $0x2f4] sm:$0xf]
        %v408 = vld [vmem:[%s185 + $0x2f8] sm:$0xf]
        %v409 = vld [vmem:[%s185 + $0x2fc] sm:$0xf]
        %v410 = vld [vmem:[%s185 + $0x300] sm:$0xf]
        %v411 = vld [vmem:[%s185 + $0x304] sm:$0xf]
        %v412 = vld [vmem:[%s185 + $0x308] sm:$0xf]
        %v413 = vld [vmem:[%s185 + $0x30c] sm:$0xf]
        %v414 = vld [vmem:[%s185 + $0x310] sm:$0xf]
        %v415 = vld [vmem:[%s185 + $0x314] sm:$0xf]
        %v416 = vld [vmem:[%s185 + $0x318] sm:$0xf]
        %v417 = vld [vmem:[%s185 + $0x31c] sm:$0xf]
        %v418 = vld [vmem:[%s185 + $0x320] sm:$0xf]
        %v419 = vld [vmem:[%s185 + $0x324] sm:$0xf]
        %v420 = vld [vmem:[%s185 + $0x328] sm:$0xf]
        %v421 = vld [vmem:[%s185 + $0x32c] sm:$0xf]
        %v422 = vld [vmem:[%s185 + $0x330] sm:$0xf]
        %v423 = vld [vmem:[%s185 + $0x334] sm:$0xf]
        %v424 = vld [vmem:[%s185 + $0x338] sm:$0xf]
        %v425 = vld [vmem:[%s185 + $0x33c] sm:$0xf]
        %v426 = vld [vmem:[%s185 + $0x340] sm:$0xf]
        %v427 = vld [vmem:[%s185 + $0x344] sm:$0xf]
        %v428 = vld [vmem:[%s185 + $0x348] sm:$0xf]
        %v429 = vld [vmem:[%s185 + $0x34c] sm:$0xf]
        %v430 = vld [vmem:[%s185 + $0x350] sm:$0xf]
        %v431 = vld [vmem:[%s185 + $0x354] sm:$0xf]
        %v432 = vld [vmem:[%s185 + $0x358] sm:$0xf]
        %v433 = vld [vmem:[%s185 + $0x35c] sm:$0xf]
        %v434 = vld [vmem:[%s185 + $0x360] sm:$0xf]
        %v435 = vld [vmem:[%s185 + $0x364] sm:$0xf]
        %v436 = vld [vmem:[%s185 + $0x368] sm:$0xf]
        %v437 = vld [vmem:[%s185 + $0x36c] sm:$0xf]
        %v438 = vld [vmem:[%s185 + $0x370] sm:$0xf]
        %v439 = vld [vmem:[%s185 + $0x374] sm:$0xf]
        %v440 = vld [vmem:[%s185 + $0x378] sm:$0xf]
        %v441 = vld [vmem:[%s185 + $0x37c] sm:$0xf]
        %v442 = vld [vmem:[%s185 + $0x380] sm:$0xf]
        %v443 = vld [vmem:[%s185 + $0x384] sm:$0xf]
        %v444 = vld [vmem:[%s185 + $0x388] sm:$0xf]
        %v445 = vld [vmem:[%s185 + $0x38c] sm:$0xf]
        %v446 = vld [vmem:[%s185 + $0x390] sm:$0xf]
        %v447 = vld [vmem:[%s185 + $0x394] sm:$0xf]
        %v448 = vld [vmem:[%s185 + $0x398] sm:$0xf]
        %v449 = vld [vmem:[%s185 + $0x39c] sm:$0xf]
        %v450 = vld [vmem:[%s185 + $0x3a0] sm:$0xf]
        %v451 = vld [vmem:[%s185 + $0x3a4] sm:$0xf]
        %v452 = vld [vmem:[%s185 + $0x3a8] sm:$0xf]
        %v453 = vld [vmem:[%s185 + $0x3ac] sm:$0xf]
        %v454 = vld [vmem:[%s185 + $0x3b0] sm:$0xf]
        %v455 = vld [vmem:[%s185 + $0x3b4] sm:$0xf]
        %v456 = vld [vmem:[%s185 + $0x3b8] sm:$0xf]
        %v457 = vld [vmem:[%s185 + $0x3bc] sm:$0xf]
        %v458 = vld [vmem:[%s185 + $0x3c0] sm:$0xf]
        %v459 = vld [vmem:[%s185 + $0x3c4] sm:$0xf]
        %v460 = vld [vmem:[%s185 + $0x3c8] sm:$0xf]
        %v461 = vld [vmem:[%s185 + $0x3cc] sm:$0xf]
        %v462 = vld [vmem:[%s185 + $0x3d0] sm:$0xf]
        %v463 = vld [vmem:[%s185 + $0x3d4] sm:$0xf]
        %v464 = vld [vmem:[%s185 + $0x3d8] sm:$0xf]
        %v465 = vld [vmem:[%s185 + $0x3dc] sm:$0xf]
        %v466 = vld [vmem:[%s185 + $0x3e0] sm:$0xf]
        %v467 = vld [vmem:[%s185 + $0x3e4] sm:$0xf]
        %v468 = vld [vmem:[%s185 + $0x3e8] sm:$0xf]
        %v469 = vld [vmem:[%s185 + $0x3ec] sm:$0xf]
        %v470 = vld [vmem:[%s185 + $0x3f0] sm:$0xf]
        %v471 = vld [vmem:[%s185 + $0x3f4] sm:$0xf]
        %v472 = vld [vmem:[%s185 + $0x3f8] sm:$0xf]
        %v473 = vld [vmem:[%s185 + $0x3fc] sm:$0xf]
        %v474 = vld [vmem:[#allocation5] sm:$0xf]
        %v475 = vld [vmem:[#allocation5 + $0x4] sm:$0xf]
        %v476 = vld [vmem:[#allocation5 + $0x8] sm:$0xf]
        %v477 = vld [vmem:[#allocation5 + $0xc] sm:$0xf]
        %v478 = vld [vmem:[#allocation5 + $0x10] sm:$0x3]
        %v479 = vld [vmem:[#allocation7] sm:$0x1]
        %v481 = vlaneseq
        %v482 = vshrl.u32 %v481, 7
        %v483 = vsub.s32 0, %v482
        %v484 = vrot.slane %v479, %v483
        %v742 = vunpack.c.l.b16 %v218
        %v743 = vunpack.c.l.b16 %v219
        %v744 = vunpack.c.l.b16 %v220
        %v745 = vunpack.c.l.b16 %v221
        %v746 = vunpack.c.l.b16 %v222
        %v747 = vunpack.c.l.b16 %v223
        %v748 = vunpack.c.l.b16 %v224
        %v749 = vunpack.c.l.b16 %v225
        %v750 = vunpack.c.l.b16 %v226
        %v751 = vunpack.c.l.b16 %v227
        %v752 = vunpack.c.l.b16 %v228
        %v753 = vunpack.c.l.b16 %v229
        %v754 = vunpack.c.l.b16 %v230
        %v755 = vunpack.c.l.b16 %v231
        %v756 = vunpack.c.l.b16 %v232
        %v757 = vunpack.c.l.b16 %v233
        %v758 = vunpack.c.l.b16 %v234
        %v759 = vunpack.c.l.b16 %v235
        %v760 = vunpack.c.l.b16 %v236
        %v761 = vunpack.c.l.b16 %v237
        %v762 = vunpack.c.l.b16 %v238
        %v763 = vunpack.c.l.b16 %v239
        %v764 = vunpack.c.l.b16 %v240
        %v765 = vunpack.c.l.b16 %v241
        %v766 = vunpack.c.l.b16 %v242
        %v767 = vunpack.c.l.b16 %v243
        %v768 = vunpack.c.l.b16 %v244
        %v769 = vunpack.c.l.b16 %v245
        %v770 = vunpack.c.l.b16 %v246
        %v771 = vunpack.c.l.b16 %v247
        %v772 = vunpack.c.l.b16 %v248
        %v773 = vunpack.c.l.b16 %v249
        %v774 = vunpack.c.l.b16 %v250
        %v775 = vunpack.c.l.b16 %v251
        %v776 = vunpack.c.l.b16 %v252
        %v777 = vunpack.c.l.b16 %v253
        %v778 = vunpack.c.l.b16 %v254
        %v779 = vunpack.c.l.b16 %v255
        %v780 = vunpack.c.l.b16 %v256
        %v781 = vunpack.c.l.b16 %v257
        %v782 = vunpack.c.l.b16 %v258
        %v783 = vunpack.c.l.b16 %v259
        %v784 = vunpack.c.l.b16 %v260
        %v785 = vunpack.c.l.b16 %v261
        %v786 = vunpack.c.l.b16 %v262
        %v787 = vunpack.c.l.b16 %v263
        %v788 = vunpack.c.l.b16 %v264
        %v789 = vunpack.c.l.b16 %v265
        %v790 = vunpack.c.l.b16 %v266
        %v791 = vunpack.c.l.b16 %v267
        %v792 = vunpack.c.l.b16 %v268
        %v793 = vunpack.c.l.b16 %v269
        %v794 = vunpack.c.l.b16 %v270
        %v795 = vunpack.c.l.b16 %v271
        %v796 = vunpack.c.l.b16 %v272
        %v797 = vunpack.c.l.b16 %v273
        %v798 = vunpack.c.l.b16 %v274
        %v799 = vunpack.c.l.b16 %v275
        %v800 = vunpack.c.l.b16 %v276
        %v801 = vunpack.c.l.b16 %v277
        %v802 = vunpack.c.l.b16 %v278
        %v803 = vunpack.c.l.b16 %v279
        %v804 = vunpack.c.l.b16 %v280
        %v805 = vunpack.c.l.b16 %v281
        %v806 = vunpack.c.l.b16 %v282
        %v807 = vunpack.c.l.b16 %v283
        %v808 = vunpack.c.l.b16 %v284
        %v809 = vunpack.c.l.b16 %v285
        %v810 = vunpack.c.l.b16 %v286
        %v811 = vunpack.c.l.b16 %v287
        %v812 = vunpack.c.l.b16 %v288
        %v813 = vunpack.c.l.b16 %v289
        %v814 = vunpack.c.l.b16 %v290
        %v815 = vunpack.c.l.b16 %v291
        %v816 = vunpack.c.l.b16 %v292
        %v817 = vunpack.c.l.b16 %v293
        %v818 = vunpack.c.l.b16 %v294
        %v819 = vunpack.c.l.b16 %v295
        %v820 = vunpack.c.l.b16 %v296
        %v821 = vunpack.c.l.b16 %v297
        %v822 = vunpack.c.l.b16 %v298
        %v823 = vunpack.c.l.b16 %v299
        %v824 = vunpack.c.l.b16 %v300
        %v825 = vunpack.c.l.b16 %v301
        %v826 = vunpack.c.l.b16 %v302
        %v827 = vunpack.c.l.b16 %v303
        %v828 = vunpack.c.l.b16 %v304
        %v829 = vunpack.c.l.b16 %v305
        %v830 = vunpack.c.l.b16 %v306
        %v831 = vunpack.c.l.b16 %v307
        %v832 = vunpack.c.l.b16 %v308
        %v833 = vunpack.c.l.b16 %v309
        %v834 = vunpack.c.l.b16 %v310
        %v835 = vunpack.c.l.b16 %v311
        %v836 = vunpack.c.l.b16 %v312
        %v837 = vunpack.c.l.b16 %v313
        %v838 = vunpack.c.l.b16 %v314
        %v839 = vunpack.c.l.b16 %v315
        %v840 = vunpack.c.l.b16 %v316
        %v841 = vunpack.c.l.b16 %v317
        %v842 = vunpack.c.l.b16 %v318
        %v843 = vunpack.c.l.b16 %v319
        %v844 = vunpack.c.l.b16 %v320
        %v845 = vunpack.c.l.b16 %v321
        %v846 = vunpack.c.l.b16 %v322
        %v847 = vunpack.c.l.b16 %v323
        %v848 = vunpack.c.l.b16 %v324
        %v849 = vunpack.c.l.b16 %v325
        %v850 = vunpack.c.l.b16 %v326
        %v851 = vunpack.c.l.b16 %v327
        %v852 = vunpack.c.l.b16 %v328
        %v853 = vunpack.c.l.b16 %v329
        %v854 = vunpack.c.l.b16 %v330
        %v855 = vunpack.c.l.b16 %v331
        %v856 = vunpack.c.l.b16 %v332
        %v857 = vunpack.c.l.b16 %v333
        %v858 = vunpack.c.l.b16 %v334
        %v859 = vunpack.c.l.b16 %v335
        %v860 = vunpack.c.l.b16 %v336
        %v861 = vunpack.c.l.b16 %v337
        %v862 = vunpack.c.l.b16 %v338
        %v863 = vunpack.c.l.b16 %v339
        %v864 = vunpack.c.l.b16 %v340
        %v865 = vunpack.c.l.b16 %v341
        %v866 = vunpack.c.l.b16 %v342
        %v867 = vunpack.c.l.b16 %v343
        %v868 = vunpack.c.l.b16 %v344
        %v869 = vunpack.c.l.b16 %v345
        %v870 = vunpack.c.l.b16 %v346
        %v871 = vunpack.c.l.b16 %v347
        %v872 = vunpack.c.l.b16 %v348
        %v873 = vunpack.c.l.b16 %v349
        %v874 = vunpack.c.l.b16 %v350
        %v875 = vunpack.c.l.b16 %v351
        %v876 = vunpack.c.l.b16 %v352
        %v877 = vunpack.c.l.b16 %v353
        %v878 = vunpack.c.l.b16 %v354
        %v879 = vunpack.c.l.b16 %v355
        %v880 = vunpack.c.l.b16 %v356
        %v881 = vunpack.c.l.b16 %v357
        %v882 = vunpack.c.l.b16 %v358
        %v883 = vunpack.c.l.b16 %v359
        %v884 = vunpack.c.l.b16 %v360
        %v885 = vunpack.c.l.b16 %v361
        %v886 = vunpack.c.l.b16 %v362
        %v887 = vunpack.c.l.b16 %v363
        %v888 = vunpack.c.l.b16 %v364
        %v889 = vunpack.c.l.b16 %v365
        %v890 = vunpack.c.l.b16 %v366
        %v891 = vunpack.c.l.b16 %v367
        %v892 = vunpack.c.l.b16 %v368
        %v893 = vunpack.c.l.b16 %v369
        %v894 = vunpack.c.l.b16 %v370
        %v895 = vunpack.c.l.b16 %v371
        %v896 = vunpack.c.l.b16 %v372
        %v897 = vunpack.c.l.b16 %v373
        %v898 = vunpack.c.l.b16 %v374
        %v899 = vunpack.c.l.b16 %v375
        %v900 = vunpack.c.l.b16 %v376
        %v901 = vunpack.c.l.b16 %v377
        %v902 = vunpack.c.l.b16 %v378
        %v903 = vunpack.c.l.b16 %v379
        %v904 = vunpack.c.l.b16 %v380
        %v905 = vunpack.c.l.b16 %v381
        %v906 = vunpack.c.l.b16 %v382
        %v907 = vunpack.c.l.b16 %v383
        %v908 = vunpack.c.l.b16 %v384
        %v909 = vunpack.c.l.b16 %v385
        %v910 = vunpack.c.l.b16 %v386
        %v911 = vunpack.c.l.b16 %v387
        %v912 = vunpack.c.l.b16 %v388
        %v913 = vunpack.c.l.b16 %v389
        %v914 = vunpack.c.l.b16 %v390
        %v915 = vunpack.c.l.b16 %v391
        %v916 = vunpack.c.l.b16 %v392
        %v917 = vunpack.c.l.b16 %v393
        %v918 = vunpack.c.l.b16 %v394
        %v919 = vunpack.c.l.b16 %v395
        %v920 = vunpack.c.l.b16 %v396
        %v921 = vunpack.c.l.b16 %v397
        %v922 = vunpack.c.l.b16 %v398
        %v923 = vunpack.c.l.b16 %v399
        %v924 = vunpack.c.l.b16 %v400
        %v925 = vunpack.c.l.b16 %v401
        %v926 = vunpack.c.l.b16 %v402
        %v927 = vunpack.c.l.b16 %v403
        %v928 = vunpack.c.l.b16 %v404
        %v929 = vunpack.c.l.b16 %v405
        %v930 = vunpack.c.l.b16 %v406
        %v931 = vunpack.c.l.b16 %v407
        %v932 = vunpack.c.l.b16 %v408
        %v933 = vunpack.c.l.b16 %v409
        %v934 = vunpack.c.l.b16 %v410
        %v935 = vunpack.c.l.b16 %v411
        %v936 = vunpack.c.l.b16 %v412
        %v937 = vunpack.c.l.b16 %v413
        %v938 = vunpack.c.l.b16 %v414
        %v939 = vunpack.c.l.b16 %v415
        %v940 = vunpack.c.l.b16 %v416
        %v941 = vunpack.c.l.b16 %v417
        %v942 = vunpack.c.l.b16 %v418
        %v943 = vunpack.c.l.b16 %v419
        %v944 = vunpack.c.l.b16 %v420
        %v945 = vunpack.c.l.b16 %v421
        %v946 = vunpack.c.l.b16 %v422
        %v947 = vunpack.c.l.b16 %v423
        %v948 = vunpack.c.l.b16 %v424
        %v949 = vunpack.c.l.b16 %v425
        %v950 = vunpack.c.l.b16 %v426
        %v951 = vunpack.c.l.b16 %v427
        %v952 = vunpack.c.l.b16 %v428
        %v953 = vunpack.c.l.b16 %v429
        %v954 = vunpack.c.l.b16 %v430
        %v955 = vunpack.c.l.b16 %v431
        %v956 = vunpack.c.l.b16 %v432
        %v957 = vunpack.c.l.b16 %v433
        %v958 = vunpack.c.l.b16 %v434
        %v959 = vunpack.c.l.b16 %v435
        %v960 = vunpack.c.l.b16 %v436
        %v961 = vunpack.c.l.b16 %v437
        %v962 = vunpack.c.l.b16 %v438
        %v963 = vunpack.c.l.b16 %v439
        %v964 = vunpack.c.l.b16 %v440
        %v965 = vunpack.c.l.b16 %v441
        %v966 = vunpack.c.l.b16 %v442
        %v967 = vunpack.c.l.b16 %v443
        %v968 = vunpack.c.l.b16 %v444
        %v969 = vunpack.c.l.b16 %v445
        %v970 = vunpack.c.l.b16 %v446
        %v971 = vunpack.c.l.b16 %v447
        %v972 = vunpack.c.l.b16 %v448
        %v973 = vunpack.c.l.b16 %v449
        %v974 = vunpack.c.l.b16 %v450
        %v975 = vunpack.c.l.b16 %v451
        %v976 = vunpack.c.l.b16 %v452
        %v977 = vunpack.c.l.b16 %v453
        %v978 = vunpack.c.l.b16 %v454
        %v979 = vunpack.c.l.b16 %v455
        %v980 = vunpack.c.l.b16 %v456
        %v981 = vunpack.c.l.b16 %v457
        %v982 = vunpack.c.l.b16 %v458
        %v983 = vunpack.c.l.b16 %v459
        %v984 = vunpack.c.l.b16 %v460
        %v985 = vunpack.c.l.b16 %v461
        %v986 = vunpack.c.l.b16 %v462
        %v987 = vunpack.c.l.b16 %v463
        %v988 = vunpack.c.l.b16 %v464
        %v989 = vunpack.c.l.b16 %v465
        %v990 = vunpack.c.l.b16 %v466
        %v991 = vunpack.c.l.b16 %v467
        %v992 = vunpack.c.l.b16 %v468
        %v993 = vunpack.c.l.b16 %v469
        %v994 = vunpack.c.l.b16 %v470
        %v995 = vunpack.c.l.b16 %v471
        %v996 = vunpack.c.l.b16 %v472
        %v997 = vunpack.c.l.b16 %v473
        %v998 = vpack.c.b16 %v743, %v742
        %v999 = vpack.c.b16 %v745, %v744
        %v1000 = vpack.c.b16 %v747, %v746
        %v1001 = vpack.c.b16 %v749, %v748
        %v1002 = vpack.c.b16 %v751, %v750
        %v1003 = vpack.c.b16 %v753, %v752
        %v1004 = vpack.c.b16 %v755, %v754
        %v1005 = vpack.c.b16 %v757, %v756
        %v1006 = vpack.c.b16 %v759, %v758
        %v1007 = vpack.c.b16 %v761, %v760
        %v1008 = vpack.c.b16 %v763, %v762
        %v1009 = vpack.c.b16 %v765, %v764
        %v1010 = vpack.c.b16 %v767, %v766
        %v1011 = vpack.c.b16 %v769, %v768
        %v1012 = vpack.c.b16 %v771, %v770
        %v1013 = vpack.c.b16 %v773, %v772
        %v1014 = vpack.c.b16 %v775, %v774
        %v1015 = vpack.c.b16 %v777, %v776
        %v1016 = vpack.c.b16 %v779, %v778
        %v1017 = vpack.c.b16 %v781, %v780
        %v1018 = vpack.c.b16 %v783, %v782
        %v1019 = vpack.c.b16 %v785, %v784
        %v1020 = vpack.c.b16 %v787, %v786
        %v1021 = vpack.c.b16 %v789, %v788
        %v1022 = vpack.c.b16 %v791, %v790
        %v1023 = vpack.c.b16 %v793, %v792
        %v1024 = vpack.c.b16 %v795, %v794
        %v1025 = vpack.c.b16 %v797, %v796
        %v1026 = vpack.c.b16 %v799, %v798
        %v1027 = vpack.c.b16 %v801, %v800
        %v1028 = vpack.c.b16 %v803, %v802
        %v1029 = vpack.c.b16 %v805, %v804
        %v1030 = vpack.c.b16 %v807, %v806
        %v1031 = vpack.c.b16 %v809, %v808
        %v1032 = vpack.c.b16 %v811, %v810
        %v1033 = vpack.c.b16 %v813, %v812
        %v1034 = vpack.c.b16 %v815, %v814
        %v1035 = vpack.c.b16 %v817, %v816
        %v1036 = vpack.c.b16 %v819, %v818
        %v1037 = vpack.c.b16 %v821, %v820
        %v1038 = vpack.c.b16 %v823, %v822
        %v1039 = vpack.c.b16 %v825, %v824
        %v1040 = vpack.c.b16 %v827, %v826
        %v1041 = vpack.c.b16 %v829, %v828
        %v1042 = vpack.c.b16 %v831, %v830
        %v1043 = vpack.c.b16 %v833, %v832
        %v1044 = vpack.c.b16 %v835, %v834
        %v1045 = vpack.c.b16 %v837, %v836
        %v1046 = vpack.c.b16 %v839, %v838
        %v1047 = vpack.c.b16 %v841, %v840
        %v1048 = vpack.c.b16 %v843, %v842
        %v1049 = vpack.c.b16 %v845, %v844
        %v1050 = vpack.c.b16 %v847, %v846
        %v1051 = vpack.c.b16 %v849, %v848
        %v1052 = vpack.c.b16 %v851, %v850
        %v1053 = vpack.c.b16 %v853, %v852
        %v1054 = vpack.c.b16 %v855, %v854
        %v1055 = vpack.c.b16 %v857, %v856
        %v1056 = vpack.c.b16 %v859, %v858
        %v1057 = vpack.c.b16 %v861, %v860
        %v1058 = vpack.c.b16 %v863, %v862
        %v1059 = vpack.c.b16 %v865, %v864
        %v1060 = vpack.c.b16 %v867, %v866
        %v1061 = vpack.c.b16 %v869, %v868
        %v1062 = vpack.c.b16 %v871, %v870
        %v1063 = vpack.c.b16 %v873, %v872
        %v1064 = vpack.c.b16 %v875, %v874
        %v1065 = vpack.c.b16 %v877, %v876
        %v1066 = vpack.c.b16 %v879, %v878
        %v1067 = vpack.c.b16 %v881, %v880
        %v1068 = vpack.c.b16 %v883, %v882
        %v1069 = vpack.c.b16 %v885, %v884
        %v1070 = vpack.c.b16 %v887, %v886
        %v1071 = vpack.c.b16 %v889, %v888
        %v1072 = vpack.c.b16 %v891, %v890
        %v1073 = vpack.c.b16 %v893, %v892
        %v1074 = vpack.c.b16 %v895, %v894
        %v1075 = vpack.c.b16 %v897, %v896
        %v1076 = vpack.c.b16 %v899, %v898
        %v1077 = vpack.c.b16 %v901, %v900
        %v1078 = vpack.c.b16 %v903, %v902
        %v1079 = vpack.c.b16 %v905, %v904
        %v1080 = vpack.c.b16 %v907, %v906
        %v1081 = vpack.c.b16 %v909, %v908
        %v1082 = vpack.c.b16 %v911, %v910
        %v1083 = vpack.c.b16 %v913, %v912
        %v1084 = vpack.c.b16 %v915, %v914
        %v1085 = vpack.c.b16 %v917, %v916
        %v1086 = vpack.c.b16 %v919, %v918
        %v1087 = vpack.c.b16 %v921, %v920
        %v1088 = vpack.c.b16 %v923, %v922
        %v1089 = vpack.c.b16 %v925, %v924
        %v1090 = vpack.c.b16 %v927, %v926
        %v1091 = vpack.c.b16 %v929, %v928
        %v1092 = vpack.c.b16 %v931, %v930
        %v1093 = vpack.c.b16 %v933, %v932
        %v1094 = vpack.c.b16 %v935, %v934
        %v1095 = vpack.c.b16 %v937, %v936
        %v1096 = vpack.c.b16 %v939, %v938
        %v1097 = vpack.c.b16 %v941, %v940
        %v1098 = vpack.c.b16 %v943, %v942
        %v1099 = vpack.c.b16 %v945, %v944
        %v1100 = vpack.c.b16 %v947, %v946
        %v1101 = vpack.c.b16 %v949, %v948
        %v1102 = vpack.c.b16 %v951, %v950
        %v1103 = vpack.c.b16 %v953, %v952
        %v1104 = vpack.c.b16 %v955, %v954
        %v1105 = vpack.c.b16 %v957, %v956
        %v1106 = vpack.c.b16 %v959, %v958
        %v1107 = vpack.c.b16 %v961, %v960
        %v1108 = vpack.c.b16 %v963, %v962
        %v1109 = vpack.c.b16 %v965, %v964
        %v1110 = vpack.c.b16 %v967, %v966
        %v1111 = vpack.c.b16 %v969, %v968
        %v1112 = vpack.c.b16 %v971, %v970
        %v1113 = vpack.c.b16 %v973, %v972
        %v1114 = vpack.c.b16 %v975, %v974
        %v1115 = vpack.c.b16 %v977, %v976
        %v1116 = vpack.c.b16 %v979, %v978
        %v1117 = vpack.c.b16 %v981, %v980
        %v1118 = vpack.c.b16 %v983, %v982
        %v1119 = vpack.c.b16 %v985, %v984
        %v1120 = vpack.c.b16 %v987, %v986
        %v1121 = vpack.c.b16 %v989, %v988
        %v1122 = vpack.c.b16 %v991, %v990
        %v1123 = vpack.c.b16 %v993, %v992
        %v1124 = vpack.c.b16 %v995, %v994
        %v1125 = vpack.c.b16 %v997, %v996
        %v1131 = vunpack.c.l.b16 %v474
        %v1132 = vunpack.c.l.b16 %v475
        %v1133 = vunpack.c.l.b16 %v476
        %v1134 = vunpack.c.l.b16 %v477
        %v1135 = vunpack.c.l.b16 %v478
        %v1136 = vpack.c.b16 %v1132, %v1131
        %v1137 = vpack.c.b16 %v1134, %v1133
        %v1138 = vpack.c.b16 %v1135, %v1135
        %vm1141 = vcmask 293888
        %v1143 = vsel %vm1141, %v998, 0
        %v1146 = vsel %vm1141, %v999, 0
        %v1149 = vsel %vm1141, %v1000, 0
        %v1152 = vsel %vm1141, %v1001, 0
        %v1155 = vsel %vm1141, %v1002, 0
        %v1158 = vsel %vm1141, %v1003, 0
        %v1161 = vsel %vm1141, %v1004, 0
        %v1164 = vsel %vm1141, %v1005, 0
        %v1167 = vsel %vm1141, %v1006, 0
        %v1170 = vsel %vm1141, %v1007, 0
        %v1173 = vsel %vm1141, %v1008, 0
        %v1176 = vsel %vm1141, %v1009, 0
        %v1179 = vsel %vm1141, %v1010, 0
        %v1182 = vsel %vm1141, %v1011, 0
        %v1185 = vsel %vm1141, %v1012, 0
        %v1188 = vsel %vm1141, %v1013, 0
        %v1191 = vsel %vm1141, %v1014, 0
        %v1194 = vsel %vm1141, %v1015, 0
        %v1197 = vsel %vm1141, %v1016, 0
        %v1200 = vsel %vm1141, %v1017, 0
        %v1203 = vsel %vm1141, %v1018, 0
        %v1206 = vsel %vm1141, %v1019, 0
        %v1209 = vsel %vm1141, %v1020, 0
        %v1212 = vsel %vm1141, %v1021, 0
        %v1215 = vsel %vm1141, %v1022, 0
        %v1218 = vsel %vm1141, %v1023, 0
        %v1221 = vsel %vm1141, %v1024, 0
        %v1224 = vsel %vm1141, %v1025, 0
        %v1227 = vsel %vm1141, %v1026, 0
        %v1230 = vsel %vm1141, %v1027, 0
        %v1233 = vsel %vm1141, %v1028, 0
        %v1236 = vsel %vm1141, %v1029, 0
        %v1239 = vsel %vm1141, %v1030, 0
        %v1242 = vsel %vm1141, %v1031, 0
        %v1245 = vsel %vm1141, %v1032, 0
        %v1248 = vsel %vm1141, %v1033, 0
        %v1251 = vsel %vm1141, %v1034, 0
        %v1254 = vsel %vm1141, %v1035, 0
        %v1257 = vsel %vm1141, %v1036, 0
        %v1260 = vsel %vm1141, %v1037, 0
        %v1263 = vsel %vm1141, %v1038, 0
        %v1266 = vsel %vm1141, %v1039, 0
        %v1269 = vsel %vm1141, %v1040, 0
        %v1272 = vsel %vm1141, %v1041, 0
        %v1275 = vsel %vm1141, %v1042, 0
        %v1278 = vsel %vm1141, %v1043, 0
        %v1281 = vsel %vm1141, %v1044, 0
        %v1284 = vsel %vm1141, %v1045, 0
        %v1287 = vsel %vm1141, %v1046, 0
        %v1290 = vsel %vm1141, %v1047, 0
        %v1293 = vsel %vm1141, %v1048, 0
        %v1296 = vsel %vm1141, %v1049, 0
        %v1299 = vsel %vm1141, %v1050, 0
        %v1302 = vsel %vm1141, %v1051, 0
        %v1305 = vsel %vm1141, %v1052, 0
        %v1308 = vsel %vm1141, %v1053, 0
        %v1311 = vsel %vm1141, %v1054, 0
        %v1314 = vsel %vm1141, %v1055, 0
        %v1317 = vsel %vm1141, %v1056, 0
        %v1320 = vsel %vm1141, %v1057, 0
        %v1323 = vsel %vm1141, %v1058, 0
        %v1326 = vsel %vm1141, %v1059, 0
        %v1329 = vsel %vm1141, %v1060, 0
        %v1332 = vsel %vm1141, %v1061, 0
        %v1335 = vsel %vm1141, %v1062, 0
        %v1338 = vsel %vm1141, %v1063, 0
        %v1341 = vsel %vm1141, %v1064, 0
        %v1344 = vsel %vm1141, %v1065, 0
        %v1347 = vsel %vm1141, %v1066, 0
        %v1350 = vsel %vm1141, %v1067, 0
        %v1353 = vsel %vm1141, %v1068, 0
        %v1356 = vsel %vm1141, %v1069, 0
        %v1359 = vsel %vm1141, %v1070, 0
        %v1362 = vsel %vm1141, %v1071, 0
        %v1365 = vsel %vm1141, %v1072, 0
        %v1368 = vsel %vm1141, %v1073, 0
        %v1371 = vsel %vm1141, %v1074, 0
        %v1374 = vsel %vm1141, %v1075, 0
        %v1377 = vsel %vm1141, %v1076, 0
        %v1380 = vsel %vm1141, %v1077, 0
        %v1383 = vsel %vm1141, %v1078, 0
        %v1386 = vsel %vm1141, %v1079, 0
        %v1389 = vsel %vm1141, %v1080, 0
        %v1392 = vsel %vm1141, %v1081, 0
        %v1395 = vsel %vm1141, %v1082, 0
        %v1398 = vsel %vm1141, %v1083, 0
        %v1401 = vsel %vm1141, %v1084, 0
        %v1404 = vsel %vm1141, %v1085, 0
        %v1407 = vsel %vm1141, %v1086, 0
        %v1410 = vsel %vm1141, %v1087, 0
        %v1413 = vsel %vm1141, %v1088, 0
        %v1416 = vsel %vm1141, %v1089, 0
        %v1419 = vsel %vm1141, %v1090, 0
        %v1422 = vsel %vm1141, %v1091, 0
        %v1425 = vsel %vm1141, %v1092, 0
        %v1428 = vsel %vm1141, %v1093, 0
        %v1431 = vsel %vm1141, %v1094, 0
        %v1434 = vsel %vm1141, %v1095, 0
        %v1437 = vsel %vm1141, %v1096, 0
        %v1440 = vsel %vm1141, %v1097, 0
        %v1443 = vsel %vm1141, %v1098, 0
        %v1446 = vsel %vm1141, %v1099, 0
        %v1449 = vsel %vm1141, %v1100, 0
        %v1452 = vsel %vm1141, %v1101, 0
        %v1455 = vsel %vm1141, %v1102, 0
        %v1458 = vsel %vm1141, %v1103, 0
        %v1461 = vsel %vm1141, %v1104, 0
        %v1464 = vsel %vm1141, %v1105, 0
        %v1467 = vsel %vm1141, %v1106, 0
        %v1470 = vsel %vm1141, %v1107, 0
        %v1473 = vsel %vm1141, %v1108, 0
        %v1476 = vsel %vm1141, %v1109, 0
        %v1479 = vsel %vm1141, %v1110, 0
        %v1482 = vsel %vm1141, %v1111, 0
        %v1485 = vsel %vm1141, %v1112, 0
        %v1488 = vsel %vm1141, %v1113, 0
        %v1491 = vsel %vm1141, %v1114, 0
        %v1494 = vsel %vm1141, %v1115, 0
        %v1497 = vsel %vm1141, %v1116, 0
        %v1500 = vsel %vm1141, %v1117, 0
        %v1503 = vsel %vm1141, %v1118, 0
        %v1506 = vsel %vm1141, %v1119, 0
        %v1509 = vsel %vm1141, %v1120, 0
        %v1512 = vsel %vm1141, %v1121, 0
        %v1515 = vsel %vm1141, %v1122, 0
        %v1518 = vsel %vm1141, %v1123, 0
        %v1521 = vsel %vm1141, %v1124, 0
        %v1524 = vsel %vm1141, %v1125, 0
        %vm1526 = vcmask 1041408
        %v1528 = vsel %vm1526, %v1138, 0
        %1530 = vmatprep.subr.bf16.mxu0 0
        %1531 = vmatpush1.bf16.msra.mxu0 %v1136
        %1532 = vmatprep.subr.bf16.mxu0 0
        %1533 = vmatpush1.bf16.msra.mxu0 %v1137
        %1534 = vmatprep.subr.bf16.mxu0 0
        %1535 = vmatpush1.bf16.msra.mxu0 %v1528
        %1536 = vmatprep.subr.bf16.mxu0 0
        %1537 = vmatpush1.bf16.msra.mxu0 0
        %1538 = vmatprep.subr.bf16.mxu0 0
        %1539 = vmatpush1.bf16.msra.mxu0 0
        %1540 = vmatprep.subr.bf16.mxu0 0
        %1541 = vmatpush1.bf16.msra.mxu0 0
        %1542 = vmatprep.subr.bf16.mxu0 0
        %1543 = vmatpush1.bf16.msra.mxu0 0
        %1544 = vmatprep.subr.bf16.mxu0 0
        %1545 = vmatpush1.bf16.msra.mxu0 0
        %1546 = vmatprep.subr.bf16.mxu0 0
        %1547 = vmatpush1.bf16.msra.mxu0 0
        %1548 = vmatprep.subr.bf16.mxu0 0
        %1549 = vmatpush1.bf16.msra.mxu0 0
        %1550 = vmatprep.subr.bf16.mxu0 0
        %1551 = vmatpush1.bf16.msra.mxu0 0
        %1552 = vmatprep.subr.bf16.mxu0 0
        %1553 = vmatpush1.bf16.msra.mxu0 0
        %1554 = vmatprep.subr.bf16.mxu0 0
        %1555 = vmatpush1.bf16.msra.mxu0 0
        %1556 = vmatprep.subr.bf16.mxu0 0
        %1557 = vmatpush1.bf16.msra.mxu0 0
        %1558 = vmatprep.subr.bf16.mxu0 0
        %1559 = vmatpush1.bf16.msra.mxu0 0
        %1560 = vmatprep.subr.bf16.mxu0 0
        %1561 = vmatpush1.bf16.msra.mxu0 0
        %1562 = vmatprep.mubr.bf16.mxu0 0
        %1563 = vmatmul.mubr.bf16.gmra.mrb[0].mxu0 %v1143
        %v1564 = vpop.f32.mrb[0].mxu0
        %v1565 = vadd.f32 %v484, %v1564
        %v1566 = vpop.f32.mrb[0].mxu0
        %v1567 = vpop.f32.mrb[0].mxu0
        %v1568 = vadd.f32 %v484, %v1567
        %v1569 = vpop.f32.mrb[0].mxu0
        %1570 = vmatprep.mubr.bf16.mxu0 0
        %1571 = vmatmul.mubr.bf16.gmra.mrb[0].mxu0 %v1146
        %v1572 = vpop.f32.mrb[0].mxu0
        %v1573 = vadd.f32 %v484, %v1572
        %v1574 = vpop.f32.mrb[0].mxu0
        %v1575 = vpop.f32.mrb[0].mxu0
        %v1576 = vadd.f32 %v484, %v1575
        %v1577 = vpop.f32.mrb[0].mxu0
        %1578 = vmatprep.mubr.bf16.mxu0 0
        %1579 = vmatmul.mubr.bf16.gmra.mrb[0].mxu0 %v1149
        %v1580 = vpop.f32.mrb[0].mxu0
        %v1581 = vadd.f32 %v484, %v1580
        %v1582 = vpop.f32.mrb[0].mxu0
        %v1583 = vpop.f32.mrb[0].mxu0
        %v1584 = vadd.f32 %v484, %v1583
        %v1585 = vpop.f32.mrb[0].mxu0
        %1586 = vmatprep.mubr.bf16.mxu0 0
        %1587 = vmatmul.mubr.bf16.gmra.mrb[0].mxu0 %v1152
        %v1588 = vpop.f32.mrb[0].mxu0
        %v1589 = vadd.f32 %v484, %v1588
        %v1590 = vpop.f32.mrb[0].mxu0
        %v1591 = vpop.f32.mrb[0].mxu0
        %v1592 = vadd.f32 %v484, %v1591
        %v1593 = vpop.f32.mrb[0].mxu0
        %1594 = vmatprep.mubr.bf16.mxu0 0
        %1595 = vmatmul.mubr.bf16.gmra.mrb[0].mxu0 %v1155
        %v1596 = vpop.f32.mrb[0].mxu0
        %v1597 = vadd.f32 %v484, %v1596
        %v1598 = vpop.f32.mrb[0].mxu0
        %v1599 = vpop.f32.mrb[0].mxu0
        %v1600 = vadd.f32 %v484, %v1599
        %v1601 = vpop.f32.mrb[0].mxu0
        %1602 = vmatprep.mubr.bf16.mxu0 0
        %1603 = vmatmul.mubr.bf16.gmra.mrb[0].mxu0 %v1158
        %v1604 = vpop.f32.mrb[0].mxu0
        %v1605 = vadd.f32 %v484, %v1604
        %v1606 = vpop.f32.mrb[0].mxu0
        %v1607 = vpop.f32.mrb[0].mxu0
        %v1608 = vadd.f32 %v484, %v1607
        %v1609 = vpop.f32.mrb[0].mxu0
        %1610 = vmatprep.mubr.bf16.mxu0 0
        %1611 = vmatmul.mubr.bf16.gmra.mrb[0].mxu0 %v1161
        %v1612 = vpop.f32.mrb[0].mxu0
        %v1613 = vadd.f32 %v484, %v1612
        %v1614 = vpop.f32.mrb[0].mxu0
        %v1615 = vpop.f32.mrb[0].mxu0
        %v1616 = vadd.f32 %v484, %v1615
        %v1617 = vpop.f32.mrb[0].mxu0
        %1618 = vmatprep.mubr.bf16.mxu0 0
        %1619 = vmatmul.mubr.bf16.gmra.mrb[0].mxu0 %v1164
        %v1620 = vpop.f32.mrb[0].mxu0
        %v1621 = vadd.f32 %v484, %v1620
        %v1622 = vpop.f32.mrb[0].mxu0
        %v1623 = vpop.f32.mrb[0].mxu0
        %v1624 = vadd.f32 %v484, %v1623
        %v1625 = vpop.f32.mrb[0].mxu0
        %1626 = vmatprep.mubr.bf16.mxu0 0
        %1627 = vmatmul.mubr.bf16.gmra.mrb[0].mxu0 %v1167
        %v1628 = vpop.f32.mrb[0].mxu0
        %v1629 = vadd.f32 %v484, %v1628
        %v1630 = vpop.f32.mrb[0].mxu0
        %v1631 = vpop.f32.mrb[0].mxu0
        %v1632 = vadd.f32 %v484, %v1631
        %v1633 = vpop.f32.mrb[0].mxu0
        %1634 = vmatprep.mubr.bf16.mxu0 0
        %1635 = vmatmul.mubr.bf16.gmra.mrb[0].mxu0 %v1170
        %v1636 = vpop.f32.mrb[0].mxu0
        %v1637 = vadd.f32 %v484, %v1636
        %v1638 = vpop.f32.mrb[0].mxu0
        %v1639 = vpop.f32.mrb[0].mxu0
        %v1640 = vadd.f32 %v484, %v1639
        %v1641 = vpop.f32.mrb[0].mxu0
        %1642 = vmatprep.mubr.bf16.mxu0 0
        %1643 = vmatmul.mubr.bf16.gmra.mrb[0].mxu0 %v1173
        %v1644 = vpop.f32.mrb[0].mxu0
        %v1645 = vadd.f32 %v484, %v1644
        %v1646 = vpop.f32.mrb[0].mxu0
        %v1647 = vpop.f32.mrb[0].mxu0
        %v1648 = vadd.f32 %v484, %v1647
        %v1649 = vpop.f32.mrb[0].mxu0
        %1650 = vmatprep.mubr.bf16.mxu0 0
        %1651 = vmatmul.mubr.bf16.gmra.mrb[0].mxu0 %v1176
        %v1652 = vpop.f32.mrb[0].mxu0
        %v1653 = vadd.f32 %v484, %v1652
        %v1654 = vpop.f32.mrb[0].mxu0
        %v1655 = vpop.f32.mrb[0].mxu0
        %v1656 = vadd.f32 %v484, %v1655
        %v1657 = vpop.f32.mrb[0].mxu0
        %1658 = vmatprep.mubr.bf16.mxu0 0
        %1659 = vmatmul.mubr.bf16.gmra.mrb[0].mxu0 %v1179
        %v1660 = vpop.f32.mrb[0].mxu0
        %v1661 = vadd.f32 %v484, %v1660
        %v1662 = vpop.f32.mrb[0].mxu0
        %v1663 = vpop.f32.mrb[0].mxu0
        %v1664 = vadd.f32 %v484, %v1663
        %v1665 = vpop.f32.mrb[0].mxu0
        %1666 = vmatprep.mubr.bf16.mxu0 0
        %1667 = vmatmul.mubr.bf16.gmra.mrb[0].mxu0 %v1182
        %v1668 = vpop.f32.mrb[0].mxu0
        %v1669 = vadd.f32 %v484, %v1668
        %v1670 = vpop.f32.mrb[0].mxu0
        %v1671 = vpop.f32.mrb[0].mxu0
        %v1672 = vadd.f32 %v484, %v1671
        %v1673 = vpop.f32.mrb[0].mxu0
        %1674 = vmatprep.mubr.bf16.mxu0 0
        %1675 = vmatmul.mubr.bf16.gmra.mrb[0].mxu0 %v1185
        %v1676 = vpop.f32.mrb[0].mxu0
        %v1677 = vadd.f32 %v484, %v1676
        %v1678 = vpop.f32.mrb[0].mxu0
        %v1679 = vpop.f32.mrb[0].mxu0
        %v1680 = vadd.f32 %v484, %v1679
        %v1681 = vpop.f32.mrb[0].mxu0
        %1682 = vmatprep.mubr.bf16.mxu0 0
        %1683 = vmatmul.mubr.bf16.gmra.mrb[0].mxu0 %v1188
        %v1684 = vpop.f32.mrb[0].mxu0
        %v1685 = vadd.f32 %v484, %v1684
        %v1686 = vpop.f32.mrb[0].mxu0
        %v1687 = vpop.f32.mrb[0].mxu0
        %v1688 = vadd.f32 %v484, %v1687
        %v1689 = vpop.f32.mrb[0].mxu0
        %1690 = vmatprep.mubr.bf16.mxu0 0
        %1691 = vmatmul.mubr.bf16.gmra.mrb[0].mxu0 %v1191
        %v1692 = vpop.f32.mrb[0].mxu0
        %v1693 = vadd.f32 %v484, %v1692
        %v1694 = vpop.f32.mrb[0].mxu0
        %v1695 = vpop.f32.mrb[0].mxu0
        %v1696 = vadd.f32 %v484, %v1695
        %v1697 = vpop.f32.mrb[0].mxu0
        %1698 = vmatprep.mubr.bf16.mxu0 0
        %1699 = vmatmul.mubr.bf16.gmra.mrb[0].mxu0 %v1194
        %v1700 = vpop.f32.mrb[0].mxu0
        %v1701 = vadd.f32 %v484, %v1700
        %v1702 = vpop.f32.mrb[0].mxu0
        %v1703 = vpop.f32.mrb[0].mxu0
        %v1704 = vadd.f32 %v484, %v1703
        %v1705 = vpop.f32.mrb[0].mxu0
        %1706 = vmatprep.mubr.bf16.mxu0 0
        %1707 = vmatmul.mubr.bf16.gmra.mrb[0].mxu0 %v1197
        %v1708 = vpop.f32.mrb[0].mxu0
        %v1709 = vadd.f32 %v484, %v1708
        %v1710 = vpop.f32.mrb[0].mxu0
        %v1711 = vpop.f32.mrb[0].mxu0
        %v1712 = vadd.f32 %v484, %v1711
        %v1713 = vpop.f32.mrb[0].mxu0
        %1714 = vmatprep.mubr.bf16.mxu0 0
        %1715 = vmatmul.mubr.bf16.gmra.mrb[0].mxu0 %v1200
        %v1716 = vpop.f32.mrb[0].mxu0
        %v1717 = vadd.f32 %v484, %v1716
        %v1718 = vpop.f32.mrb[0].mxu0
        %v1719 = vpop.f32.mrb[0].mxu0
        %v1720 = vadd.f32 %v484, %v1719
        %v1721 = vpop.f32.mrb[0].mxu0
        %1722 = vmatprep.mubr.bf16.mxu0 0
        %1723 = vmatmul.mubr.bf16.gmra.mrb[0].mxu0 %v1203
        %v1724 = vpop.f32.mrb[0].mxu0
        %v1725 = vadd.f32 %v484, %v1724
        %v1726 = vpop.f32.mrb[0].mxu0
        %v1727 = vpop.f32.mrb[0].mxu0
        %v1728 = vadd.f32 %v484, %v1727
        %v1729 = vpop.f32.mrb[0].mxu0
        %1730 = vmatprep.mubr.bf16.mxu0 0
        %1731 = vmatmul.mubr.bf16.gmra.mrb[0].mxu0 %v1206
        %v1732 = vpop.f32.mrb[0].mxu0
        %v1733 = vadd.f32 %v484, %v1732
        %v1734 = vpop.f32.mrb[0].mxu0
        %v1735 = vpop.f32.mrb[0].mxu0
        %v1736 = vadd.f32 %v484, %v1735
        %v1737 = vpop.f32.mrb[0].mxu0
        %1738 = vmatprep.mubr.bf16.mxu0 0
        %1739 = vmatmul.mubr.bf16.gmra.mrb[0].mxu0 %v1209
        %v1740 = vpop.f32.mrb[0].mxu0
        %v1741 = vadd.f32 %v484, %v1740
        %v1742 = vpop.f32.mrb[0].mxu0
        %v1743 = vpop.f32.mrb[0].mxu0
        %v1744 = vadd.f32 %v484, %v1743
        %v1745 = vpop.f32.mrb[0].mxu0
        %1746 = vmatprep.mubr.bf16.mxu0 0
        %1747 = vmatmul.mubr.bf16.gmra.mrb[0].mxu0 %v1212
        %v1748 = vpop.f32.mrb[0].mxu0
        %v1749 = vadd.f32 %v484, %v1748
        %v1750 = vpop.f32.mrb[0].mxu0
        %v1751 = vpop.f32.mrb[0].mxu0
        %v1752 = vadd.f32 %v484, %v1751
        %v1753 = vpop.f32.mrb[0].mxu0
        %1754 = vmatprep.mubr.bf16.mxu0 0
        %1755 = vmatmul.mubr.bf16.gmra.mrb[0].mxu0 %v1215
        %v1756 = vpop.f32.mrb[0].mxu0
        %v1757 = vadd.f32 %v484, %v1756
        %v1758 = vpop.f32.mrb[0].mxu0
        %v1759 = vpop.f32.mrb[0].mxu0
        %v1760 = vadd.f32 %v484, %v1759
        %v1761 = vpop.f32.mrb[0].mxu0
        %1762 = vmatprep.mubr.bf16.mxu0 0
        %1763 = vmatmul.mubr.bf16.gmra.mrb[0].mxu0 %v1218
        %v1764 = vpop.f32.mrb[0].mxu0
        %v1765 = vadd.f32 %v484, %v1764
        %v1766 = vpop.f32.mrb[0].mxu0
        %v1767 = vpop.f32.mrb[0].mxu0
        %v1768 = vadd.f32 %v484, %v1767
        %v1769 = vpop.f32.mrb[0].mxu0
        %1770 = vmatprep.mubr.bf16.mxu0 0
        %1771 = vmatmul.mubr.bf16.gmra.mrb[0].mxu0 %v1221
        %v1772 = vpop.f32.mrb[0].mxu0
        %v1773 = vadd.f32 %v484, %v1772
        %v1774 = vpop.f32.mrb[0].mxu0
        %v1775 = vpop.f32.mrb[0].mxu0
        %v1776 = vadd.f32 %v484, %v1775
        %v1777 = vpop.f32.mrb[0].mxu0
        %1778 = vmatprep.mubr.bf16.mxu0 0
        %1779 = vmatmul.mubr.bf16.gmra.mrb[0].mxu0 %v1224
        %v1780 = vpop.f32.mrb[0].mxu0
        %v1781 = vadd.f32 %v484, %v1780
        %v1782 = vpop.f32.mrb[0].mxu0
        %v1783 = vpop.f32.mrb[0].mxu0
        %v1784 = vadd.f32 %v484, %v1783
        %v1785 = vpop.f32.mrb[0].mxu0
        %1786 = vmatprep.mubr.bf16.mxu0 0
        %1787 = vmatmul.mubr.bf16.gmra.mrb[0].mxu0 %v1227
        %v1788 = vpop.f32.mrb[0].mxu0
        %v1789 = vadd.f32 %v484, %v1788
        %v1790 = vpop.f32.mrb[0].mxu0
        %v1791 = vpop.f32.mrb[0].mxu0
        %v1792 = vadd.f32 %v484, %v1791
        %v1793 = vpop.f32.mrb[0].mxu0
        %1794 = vmatprep.mubr.bf16.mxu0 0
        %1795 = vmatmul.mubr.bf16.gmra.mrb[0].mxu0 %v1230
        %v1796 = vpop.f32.mrb[0].mxu0
        %v1797 = vadd.f32 %v484, %v1796
        %v1798 = vpop.f32.mrb[0].mxu0
        %v1799 = vpop.f32.mrb[0].mxu0
        %v1800 = vadd.f32 %v484, %v1799
        %v1801 = vpop.f32.mrb[0].mxu0
        %1802 = vmatprep.mubr.bf16.mxu0 0
        %1803 = vmatmul.mubr.bf16.gmra.mrb[0].mxu0 %v1233
        %v1804 = vpop.f32.mrb[0].mxu0
        %v1805 = vadd.f32 %v484, %v1804
        %v1806 = vpop.f32.mrb[0].mxu0
        %v1807 = vpop.f32.mrb[0].mxu0
        %v1808 = vadd.f32 %v484, %v1807
        %v1809 = vpop.f32.mrb[0].mxu0
        %1810 = vmatprep.mubr.bf16.mxu0 0
        %1811 = vmatmul.mubr.bf16.gmra.mrb[0].mxu0 %v1236
        %v1812 = vpop.f32.mrb[0].mxu0
        %v1813 = vadd.f32 %v484, %v1812
        %v1814 = vpop.f32.mrb[0].mxu0
        %v1815 = vpop.f32.mrb[0].mxu0
        %v1816 = vadd.f32 %v484, %v1815
        %v1817 = vpop.f32.mrb[0].mxu0
        %1818 = vmatprep.mubr.bf16.mxu0 0
        %1819 = vmatmul.mubr.bf16.gmra.mrb[0].mxu0 %v1239
        %v1820 = vpop.f32.mrb[0].mxu0
        %v1821 = vadd.f32 %v484, %v1820
        %v1822 = vpop.f32.mrb[0].mxu0
        %v1823 = vpop.f32.mrb[0].mxu0
        %v1824 = vadd.f32 %v484, %v1823
        %v1825 = vpop.f32.mrb[0].mxu0
        %1826 = vmatprep.mubr.bf16.mxu0 0
        %1827 = vmatmul.mubr.bf16.gmra.mrb[0].mxu0 %v1242
        %v1828 = vpop.f32.mrb[0].mxu0
        %v1829 = vadd.f32 %v484, %v1828
        %v1830 = vpop.f32.mrb[0].mxu0
        %v1831 = vpop.f32.mrb[0].mxu0
        %v1832 = vadd.f32 %v484, %v1831
        %v1833 = vpop.f32.mrb[0].mxu0
        %1834 = vmatprep.mubr.bf16.mxu0 0
        %1835 = vmatmul.mubr.bf16.gmra.mrb[0].mxu0 %v1245
        %v1836 = vpop.f32.mrb[0].mxu0
        %v1837 = vadd.f32 %v484, %v1836
        %v1838 = vpop.f32.mrb[0].mxu0
        %v1839 = vpop.f32.mrb[0].mxu0
        %v1840 = vadd.f32 %v484, %v1839
        %v1841 = vpop.f32.mrb[0].mxu0
        %1842 = vmatprep.mubr.bf16.mxu0 0
        %1843 = vmatmul.mubr.bf16.gmra.mrb[0].mxu0 %v1248
        %v1844 = vpop.f32.mrb[0].mxu0
        %v1845 = vadd.f32 %v484, %v1844
        %v1846 = vpop.f32.mrb[0].mxu0
        %v1847 = vpop.f32.mrb[0].mxu0
        %v1848 = vadd.f32 %v484, %v1847
        %v1849 = vpop.f32.mrb[0].mxu0
        %1850 = vmatprep.mubr.bf16.mxu0 0
        %1851 = vmatmul.mubr.bf16.gmra.mrb[0].mxu0 %v1251
        %v1852 = vpop.f32.mrb[0].mxu0
        %v1853 = vadd.f32 %v484, %v1852
        %v1854 = vpop.f32.mrb[0].mxu0
        %v1855 = vpop.f32.mrb[0].mxu0
        %v1856 = vadd.f32 %v484, %v1855
        %v1857 = vpop.f32.mrb[0].mxu0
        %1858 = vmatprep.mubr.bf16.mxu0 0
        %1859 = vmatmul.mubr.bf16.gmra.mrb[0].mxu0 %v1254
        %v1860 = vpop.f32.mrb[0].mxu0
        %v1861 = vadd.f32 %v484, %v1860
        %v1862 = vpop.f32.mrb[0].mxu0
        %v1863 = vpop.f32.mrb[0].mxu0
        %v1864 = vadd.f32 %v484, %v1863
        %v1865 = vpop.f32.mrb[0].mxu0
        %1866 = vmatprep.mubr.bf16.mxu0 0
        %1867 = vmatmul.mubr.bf16.gmra.mrb[0].mxu0 %v1257
        %v1868 = vpop.f32.mrb[0].mxu0
        %v1869 = vadd.f32 %v484, %v1868
        %v1870 = vpop.f32.mrb[0].mxu0
        %v1871 = vpop.f32.mrb[0].mxu0
        %v1872 = vadd.f32 %v484, %v1871
        %v1873 = vpop.f32.mrb[0].mxu0
        %1874 = vmatprep.mubr.bf16.mxu0 0
        %1875 = vmatmul.mubr.bf16.gmra.mrb[0].mxu0 %v1260
        %v1876 = vpop.f32.mrb[0].mxu0
        %v1877 = vadd.f32 %v484, %v1876
        %v1878 = vpop.f32.mrb[0].mxu0
        %v1879 = vpop.f32.mrb[0].mxu0
        %v1880 = vadd.f32 %v484, %v1879
        %v1881 = vpop.f32.mrb[0].mxu0
        %1882 = vmatprep.mubr.bf16.mxu0 0
        %1883 = vmatmul.mubr.bf16.gmra.mrb[0].mxu0 %v1263
        %v1884 = vpop.f32.mrb[0].mxu0
        %v1885 = vadd.f32 %v484, %v1884
        %v1886 = vpop.f32.mrb[0].mxu0
        %v1887 = vpop.f32.mrb[0].mxu0
        %v1888 = vadd.f32 %v484, %v1887
        %v1889 = vpop.f32.mrb[0].mxu0
        %1890 = vmatprep.mubr.bf16.mxu0 0
        %1891 = vmatmul.mubr.bf16.gmra.mrb[0].mxu0 %v1266
        %v1892 = vpop.f32.mrb[0].mxu0
        %v1893 = vadd.f32 %v484, %v1892
        %v1894 = vpop.f32.mrb[0].mxu0
        %v1895 = vpop.f32.mrb[0].mxu0
        %v1896 = vadd.f32 %v484, %v1895
        %v1897 = vpop.f32.mrb[0].mxu0
        %1898 = vmatprep.mubr.bf16.mxu0 0
        %1899 = vmatmul.mubr.bf16.gmra.mrb[0].mxu0 %v1269
        %v1900 = vpop.f32.mrb[0].mxu0
        %v1901 = vadd.f32 %v484, %v1900
        %v1902 = vpop.f32.mrb[0].mxu0
        %v1903 = vpop.f32.mrb[0].mxu0
        %v1904 = vadd.f32 %v484, %v1903
        %v1905 = vpop.f32.mrb[0].mxu0
        %1906 = vmatprep.mubr.bf16.mxu0 0
        %1907 = vmatmul.mubr.bf16.gmra.mrb[0].mxu0 %v1272
        %v1908 = vpop.f32.mrb[0].mxu0
        %v1909 = vadd.f32 %v484, %v1908
        %v1910 = vpop.f32.mrb[0].mxu0
        %v1911 = vpop.f32.mrb[0].mxu0
        %v1912 = vadd.f32 %v484, %v1911
        %v1913 = vpop.f32.mrb[0].mxu0
        %1914 = vmatprep.mubr.bf16.mxu0 0
        %1915 = vmatmul.mubr.bf16.gmra.mrb[0].mxu0 %v1275
        %v1916 = vpop.f32.mrb[0].mxu0
        %v1917 = vadd.f32 %v484, %v1916
        %v1918 = vpop.f32.mrb[0].mxu0
        %v1919 = vpop.f32.mrb[0].mxu0
        %v1920 = vadd.f32 %v484, %v1919
        %v1921 = vpop.f32.mrb[0].mxu0
        %1922 = vmatprep.mubr.bf16.mxu0 0
        %1923 = vmatmul.mubr.bf16.gmra.mrb[0].mxu0 %v1278
        %v1924 = vpop.f32.mrb[0].mxu0
        %v1925 = vadd.f32 %v484, %v1924
        %v1926 = vpop.f32.mrb[0].mxu0
        %v1927 = vpop.f32.mrb[0].mxu0
        %v1928 = vadd.f32 %v484, %v1927
        %v1929 = vpop.f32.mrb[0].mxu0
        %1930 = vmatprep.mubr.bf16.mxu0 0
        %1931 = vmatmul.mubr.bf16.gmra.mrb[0].mxu0 %v1281
        %v1932 = vpop.f32.mrb[0].mxu0
        %v1933 = vadd.f32 %v484, %v1932
        %v1934 = vpop.f32.mrb[0].mxu0
        %v1935 = vpop.f32.mrb[0].mxu0
        %v1936 = vadd.f32 %v484, %v1935
        %v1937 = vpop.f32.mrb[0].mxu0
        %1938 = vmatprep.mubr.bf16.mxu0 0
        %1939 = vmatmul.mubr.bf16.gmra.mrb[0].mxu0 %v1284
        %v1940 = vpop.f32.mrb[0].mxu0
        %v1941 = vadd.f32 %v484, %v1940
        %v1942 = vpop.f32.mrb[0].mxu0
        %v1943 = vpop.f32.mrb[0].mxu0
        %v1944 = vadd.f32 %v484, %v1943
        %v1945 = vpop.f32.mrb[0].mxu0
        %1946 = vmatprep.mubr.bf16.mxu0 0
        %1947 = vmatmul.mubr.bf16.gmra.mrb[0].mxu0 %v1287
        %v1948 = vpop.f32.mrb[0].mxu0
        %v1949 = vadd.f32 %v484, %v1948
        %v1950 = vpop.f32.mrb[0].mxu0
        %v1951 = vpop.f32.mrb[0].mxu0
        %v1952 = vadd.f32 %v484, %v1951
        %v1953 = vpop.f32.mrb[0].mxu0
        %1954 = vmatprep.mubr.bf16.mxu0 0
        %1955 = vmatmul.mubr.bf16.gmra.mrb[0].mxu0 %v1290
        %v1956 = vpop.f32.mrb[0].mxu0
        %v1957 = vadd.f32 %v484, %v1956
        %v1958 = vpop.f32.mrb[0].mxu0
        %v1959 = vpop.f32.mrb[0].mxu0
        %v1960 = vadd.f32 %v484, %v1959
        %v1961 = vpop.f32.mrb[0].mxu0
        %1962 = vmatprep.mubr.bf16.mxu0 0
        %1963 = vmatmul.mubr.bf16.gmra.mrb[0].mxu0 %v1293
        %v1964 = vpop.f32.mrb[0].mxu0
        %v1965 = vadd.f32 %v484, %v1964
        %v1966 = vpop.f32.mrb[0].mxu0
        %v1967 = vpop.f32.mrb[0].mxu0
        %v1968 = vadd.f32 %v484, %v1967
        %v1969 = vpop.f32.mrb[0].mxu0
        %1970 = vmatprep.mubr.bf16.mxu0 0
        %1971 = vmatmul.mubr.bf16.gmra.mrb[0].mxu0 %v1296
        %v1972 = vpop.f32.mrb[0].mxu0
        %v1973 = vadd.f32 %v484, %v1972
        %v1974 = vpop.f32.mrb[0].mxu0
        %v1975 = vpop.f32.mrb[0].mxu0
        %v1976 = vadd.f32 %v484, %v1975
        %v1977 = vpop.f32.mrb[0].mxu0
        %1978 = vmatprep.mubr.bf16.mxu0 0
        %1979 = vmatmul.mubr.bf16.gmra.mrb[0].mxu0 %v1299
        %v1980 = vpop.f32.mrb[0].mxu0
        %v1981 = vadd.f32 %v484, %v1980
        %v1982 = vpop.f32.mrb[0].mxu0
        %v1983 = vpop.f32.mrb[0].mxu0
        %v1984 = vadd.f32 %v484, %v1983
        %v1985 = vpop.f32.mrb[0].mxu0
        %1986 = vmatprep.mubr.bf16.mxu0 0
        %1987 = vmatmul.mubr.bf16.gmra.mrb[0].mxu0 %v1302
        %v1988 = vpop.f32.mrb[0].mxu0
        %v1989 = vadd.f32 %v484, %v1988
        %v1990 = vpop.f32.mrb[0].mxu0
        %v1991 = vpop.f32.mrb[0].mxu0
        %v1992 = vadd.f32 %v484, %v1991
        %v1993 = vpop.f32.mrb[0].mxu0
        %1994 = vmatprep.mubr.bf16.mxu0 0
        %1995 = vmatmul.mubr.bf16.gmra.mrb[0].mxu0 %v1305
        %v1996 = vpop.f32.mrb[0].mxu0
        %v1997 = vadd.f32 %v484, %v1996
        %v1998 = vpop.f32.mrb[0].mxu0
        %v1999 = vpop.f32.mrb[0].mxu0
        %v2000 = vadd.f32 %v484, %v1999
        %v2001 = vpop.f32.mrb[0].mxu0
        %2002 = vmatprep.mubr.bf16.mxu0 0
        %2003 = vmatmul.mubr.bf16.gmra.mrb[0].mxu0 %v1308
        %v2004 = vpop.f32.mrb[0].mxu0
        %v2005 = vadd.f32 %v484, %v2004
        %v2006 = vpop.f32.mrb[0].mxu0
        %v2007 = vpop.f32.mrb[0].mxu0
        %v2008 = vadd.f32 %v484, %v2007
        %v2009 = vpop.f32.mrb[0].mxu0
        %2010 = vmatprep.mubr.bf16.mxu0 0
        %2011 = vmatmul.mubr.bf16.gmra.mrb[0].mxu0 %v1311
        %v2012 = vpop.f32.mrb[0].mxu0
        %v2013 = vadd.f32 %v484, %v2012
        %v2014 = vpop.f32.mrb[0].mxu0
        %v2015 = vpop.f32.mrb[0].mxu0
        %v2016 = vadd.f32 %v484, %v2015
        %v2017 = vpop.f32.mrb[0].mxu0
        %2018 = vmatprep.mubr.bf16.mxu0 0
        %2019 = vmatmul.mubr.bf16.gmra.mrb[0].mxu0 %v1314
        %v2020 = vpop.f32.mrb[0].mxu0
        %v2021 = vadd.f32 %v484, %v2020
        %v2022 = vpop.f32.mrb[0].mxu0
        %v2023 = vpop.f32.mrb[0].mxu0
        %v2024 = vadd.f32 %v484, %v2023
        %v2025 = vpop.f32.mrb[0].mxu0
        %2026 = vmatprep.mubr.bf16.mxu0 0
        %2027 = vmatmul.mubr.bf16.gmra.mrb[0].mxu0 %v1317
        %v2028 = vpop.f32.mrb[0].mxu0
        %v2029 = vadd.f32 %v484, %v2028
        %v2030 = vpop.f32.mrb[0].mxu0
        %v2031 = vpop.f32.mrb[0].mxu0
        %v2032 = vadd.f32 %v484, %v2031
        %v2033 = vpop.f32.mrb[0].mxu0
        %2034 = vmatprep.mubr.bf16.mxu0 0
        %2035 = vmatmul.mubr.bf16.gmra.mrb[0].mxu0 %v1320
        %v2036 = vpop.f32.mrb[0].mxu0
        %v2037 = vadd.f32 %v484, %v2036
        %v2038 = vpop.f32.mrb[0].mxu0
        %v2039 = vpop.f32.mrb[0].mxu0
        %v2040 = vadd.f32 %v484, %v2039
        %v2041 = vpop.f32.mrb[0].mxu0
        %2042 = vmatprep.mubr.bf16.mxu0 0
        %2043 = vmatmul.mubr.bf16.gmra.mrb[0].mxu0 %v1323
        %v2044 = vpop.f32.mrb[0].mxu0
        %v2045 = vadd.f32 %v484, %v2044
        %v2046 = vpop.f32.mrb[0].mxu0
        %v2047 = vpop.f32.mrb[0].mxu0
        %v2048 = vadd.f32 %v484, %v2047
        %v2049 = vpop.f32.mrb[0].mxu0
        %2050 = vmatprep.mubr.bf16.mxu0 0
        %2051 = vmatmul.mubr.bf16.gmra.mrb[0].mxu0 %v1326
        %v2052 = vpop.f32.mrb[0].mxu0
        %v2053 = vadd.f32 %v484, %v2052
        %v2054 = vpop.f32.mrb[0].mxu0
        %v2055 = vpop.f32.mrb[0].mxu0
        %v2056 = vadd.f32 %v484, %v2055
        %v2057 = vpop.f32.mrb[0].mxu0
        %2058 = vmatprep.mubr.bf16.mxu0 0
        %2059 = vmatmul.mubr.bf16.gmra.mrb[0].mxu0 %v1329
        %v2060 = vpop.f32.mrb[0].mxu0
        %v2061 = vadd.f32 %v484, %v2060
        %v2062 = vpop.f32.mrb[0].mxu0
        %v2063 = vpop.f32.mrb[0].mxu0
        %v2064 = vadd.f32 %v484, %v2063
        %v2065 = vpop.f32.mrb[0].mxu0
        %2066 = vmatprep.mubr.bf16.mxu0 0
        %2067 = vmatmul.mubr.bf16.gmra.mrb[0].mxu0 %v1332
        %v2068 = vpop.f32.mrb[0].mxu0
        %v2069 = vadd.f32 %v484, %v2068
        %v2070 = vpop.f32.mrb[0].mxu0
        %v2071 = vpop.f32.mrb[0].mxu0
        %v2072 = vadd.f32 %v484, %v2071
        %v2073 = vpop.f32.mrb[0].mxu0
        %2074 = vmatprep.mubr.bf16.mxu0 0
        %2075 = vmatmul.mubr.bf16.gmra.mrb[0].mxu0 %v1335
        %v2076 = vpop.f32.mrb[0].mxu0
        %v2077 = vadd.f32 %v484, %v2076
        %v2078 = vpop.f32.mrb[0].mxu0
        %v2079 = vpop.f32.mrb[0].mxu0
        %v2080 = vadd.f32 %v484, %v2079
        %v2081 = vpop.f32.mrb[0].mxu0
        %2082 = vmatprep.mubr.bf16.mxu0 0
        %2083 = vmatmul.mubr.bf16.gmra.mrb[0].mxu0 %v1338
        %v2084 = vpop.f32.mrb[0].mxu0
        %v2085 = vadd.f32 %v484, %v2084
        %v2086 = vpop.f32.mrb[0].mxu0
        %v2087 = vpop.f32.mrb[0].mxu0
        %v2088 = vadd.f32 %v484, %v2087
        %v2089 = vpop.f32.mrb[0].mxu0
        %2090 = vmatprep.mubr.bf16.mxu0 0
        %2091 = vmatmul.mubr.bf16.gmra.mrb[0].mxu0 %v1341
        %v2092 = vpop.f32.mrb[0].mxu0
        %v2093 = vadd.f32 %v484, %v2092
        %v2094 = vpop.f32.mrb[0].mxu0
        %v2095 = vpop.f32.mrb[0].mxu0
        %v2096 = vadd.f32 %v484, %v2095
        %v2097 = vpop.f32.mrb[0].mxu0
        %2098 = vmatprep.mubr.bf16.mxu0 0
        %2099 = vmatmul.mubr.bf16.gmra.mrb[0].mxu0 %v1344
        %v2100 = vpop.f32.mrb[0].mxu0
        %v2101 = vadd.f32 %v484, %v2100
        %v2102 = vpop.f32.mrb[0].mxu0
        %v2103 = vpop.f32.mrb[0].mxu0
        %v2104 = vadd.f32 %v484, %v2103
        %v2105 = vpop.f32.mrb[0].mxu0
        %2106 = vmatprep.mubr.bf16.mxu0 0
        %2107 = vmatmul.mubr.bf16.gmra.mrb[0].mxu0 %v1347
        %v2108 = vpop.f32.mrb[0].mxu0
        %v2109 = vadd.f32 %v484, %v2108
        %v2110 = vpop.f32.mrb[0].mxu0
        %v2111 = vpop.f32.mrb[0].mxu0
        %v2112 = vadd.f32 %v484, %v2111
        %v2113 = vpop.f32.mrb[0].mxu0
        %2114 = vmatprep.mubr.bf16.mxu0 0
        %2115 = vmatmul.mubr.bf16.gmra.mrb[0].mxu0 %v1350
        %v2116 = vpop.f32.mrb[0].mxu0
        %v2117 = vadd.f32 %v484, %v2116
        %v2118 = vpop.f32.mrb[0].mxu0
        %v2119 = vpop.f32.mrb[0].mxu0
        %v2120 = vadd.f32 %v484, %v2119
        %v2121 = vpop.f32.mrb[0].mxu0
        %2122 = vmatprep.mubr.bf16.mxu0 0
        %2123 = vmatmul.mubr.bf16.gmra.mrb[0].mxu0 %v1353
        %v2124 = vpop.f32.mrb[0].mxu0
        %v2125 = vadd.f32 %v484, %v2124
        %v2126 = vpop.f32.mrb[0].mxu0
        %v2127 = vpop.f32.mrb[0].mxu0
        %v2128 = vadd.f32 %v484, %v2127
        %v2129 = vpop.f32.mrb[0].mxu0
        %2130 = vmatprep.mubr.bf16.mxu0 0
        %2131 = vmatmul.mubr.bf16.gmra.mrb[0].mxu0 %v1356
        %v2132 = vpop.f32.mrb[0].mxu0
        %v2133 = vadd.f32 %v484, %v2132
        %v2134 = vpop.f32.mrb[0].mxu0
        %v2135 = vpop.f32.mrb[0].mxu0
        %v2136 = vadd.f32 %v484, %v2135
        %v2137 = vpop.f32.mrb[0].mxu0
        %2138 = vmatprep.mubr.bf16.mxu0 0
        %2139 = vmatmul.mubr.bf16.gmra.mrb[0].mxu0 %v1359
        %v2140 = vpop.f32.mrb[0].mxu0
        %v2141 = vadd.f32 %v484, %v2140
        %v2142 = vpop.f32.mrb[0].mxu0
        %v2143 = vpop.f32.mrb[0].mxu0
        %v2144 = vadd.f32 %v484, %v2143
        %v2145 = vpop.f32.mrb[0].mxu0
        %2146 = vmatprep.mubr.bf16.mxu0 0
        %2147 = vmatmul.mubr.bf16.gmra.mrb[0].mxu0 %v1362
        %v2148 = vpop.f32.mrb[0].mxu0
        %v2149 = vadd.f32 %v484, %v2148
        %v2150 = vpop.f32.mrb[0].mxu0
        %v2151 = vpop.f32.mrb[0].mxu0
        %v2152 = vadd.f32 %v484, %v2151
        %v2153 = vpop.f32.mrb[0].mxu0
        %2154 = vmatprep.mubr.bf16.mxu0 0
        %2155 = vmatmul.mubr.bf16.gmra.mrb[0].mxu0 %v1365
        %v2156 = vpop.f32.mrb[0].mxu0
        %v2157 = vadd.f32 %v484, %v2156
        %v2158 = vpop.f32.mrb[0].mxu0
        %v2159 = vpop.f32.mrb[0].mxu0
        %v2160 = vadd.f32 %v484, %v2159
        %v2161 = vpop.f32.mrb[0].mxu0
        %2162 = vmatprep.mubr.bf16.mxu0 0
        %2163 = vmatmul.mubr.bf16.gmra.mrb[0].mxu0 %v1368
        %v2164 = vpop.f32.mrb[0].mxu0
        %v2165 = vadd.f32 %v484, %v2164
        %v2166 = vpop.f32.mrb[0].mxu0
        %v2167 = vpop.f32.mrb[0].mxu0
        %v2168 = vadd.f32 %v484, %v2167
        %v2169 = vpop.f32.mrb[0].mxu0
        %2170 = vmatprep.mubr.bf16.mxu0 0
        %2171 = vmatmul.mubr.bf16.gmra.mrb[0].mxu0 %v1371
        %v2172 = vpop.f32.mrb[0].mxu0
        %v2173 = vadd.f32 %v484, %v2172
        %v2174 = vpop.f32.mrb[0].mxu0
        %v2175 = vpop.f32.mrb[0].mxu0
        %v2176 = vadd.f32 %v484, %v2175
        %v2177 = vpop.f32.mrb[0].mxu0
        %2178 = vmatprep.mubr.bf16.mxu0 0
        %2179 = vmatmul.mubr.bf16.gmra.mrb[0].mxu0 %v1374
        %v2180 = vpop.f32.mrb[0].mxu0
        %v2181 = vadd.f32 %v484, %v2180
        %v2182 = vpop.f32.mrb[0].mxu0
        %v2183 = vpop.f32.mrb[0].mxu0
        %v2184 = vadd.f32 %v484, %v2183
        %v2185 = vpop.f32.mrb[0].mxu0
        %2186 = vmatprep.mubr.bf16.mxu0 0
        %2187 = vmatmul.mubr.bf16.gmra.mrb[0].mxu0 %v1377
        %v2188 = vpop.f32.mrb[0].mxu0
        %v2189 = vadd.f32 %v484, %v2188
        %v2190 = vpop.f32.mrb[0].mxu0
        %v2191 = vpop.f32.mrb[0].mxu0
        %v2192 = vadd.f32 %v484, %v2191
        %v2193 = vpop.f32.mrb[0].mxu0
        %2194 = vmatprep.mubr.bf16.mxu0 0
        %2195 = vmatmul.mubr.bf16.gmra.mrb[0].mxu0 %v1380
        %v2196 = vpop.f32.mrb[0].mxu0
        %v2197 = vadd.f32 %v484, %v2196
        %v2198 = vpop.f32.mrb[0].mxu0
        %v2199 = vpop.f32.mrb[0].mxu0
        %v2200 = vadd.f32 %v484, %v2199
        %v2201 = vpop.f32.mrb[0].mxu0
        %2202 = vmatprep.mubr.bf16.mxu0 0
        %2203 = vmatmul.mubr.bf16.gmra.mrb[0].mxu0 %v1383
        %v2204 = vpop.f32.mrb[0].mxu0
        %v2205 = vadd.f32 %v484, %v2204
        %v2206 = vpop.f32.mrb[0].mxu0
        %v2207 = vpop.f32.mrb[0].mxu0
        %v2208 = vadd.f32 %v484, %v2207
        %v2209 = vpop.f32.mrb[0].mxu0
        %2210 = vmatprep.mubr.bf16.mxu0 0
        %2211 = vmatmul.mubr.bf16.gmra.mrb[0].mxu0 %v1386
        %v2212 = vpop.f32.mrb[0].mxu0
        %v2213 = vadd.f32 %v484, %v2212
        %v2214 = vpop.f32.mrb[0].mxu0
        %v2215 = vpop.f32.mrb[0].mxu0
        %v2216 = vadd.f32 %v484, %v2215
        %v2217 = vpop.f32.mrb[0].mxu0
        %2218 = vmatprep.mubr.bf16.mxu0 0
        %2219 = vmatmul.mubr.bf16.gmra.mrb[0].mxu0 %v1389
        %v2220 = vpop.f32.mrb[0].mxu0
        %v2221 = vadd.f32 %v484, %v2220
        %v2222 = vpop.f32.mrb[0].mxu0
        %v2223 = vpop.f32.mrb[0].mxu0
        %v2224 = vadd.f32 %v484, %v2223
        %v2225 = vpop.f32.mrb[0].mxu0
        %2226 = vmatprep.mubr.bf16.mxu0 0
        %2227 = vmatmul.mubr.bf16.gmra.mrb[0].mxu0 %v1392
        %v2228 = vpop.f32.mrb[0].mxu0
        %v2229 = vadd.f32 %v484, %v2228
        %v2230 = vpop.f32.mrb[0].mxu0
        %v2231 = vpop.f32.mrb[0].mxu0
        %v2232 = vadd.f32 %v484, %v2231
        %v2233 = vpop.f32.mrb[0].mxu0
        %2234 = vmatprep.mubr.bf16.mxu0 0
        %2235 = vmatmul.mubr.bf16.gmra.mrb[0].mxu0 %v1395
        %v2236 = vpop.f32.mrb[0].mxu0
        %v2237 = vadd.f32 %v484, %v2236
        %v2238 = vpop.f32.mrb[0].mxu0
        %v2239 = vpop.f32.mrb[0].mxu0
        %v2240 = vadd.f32 %v484, %v2239
        %v2241 = vpop.f32.mrb[0].mxu0
        %2242 = vmatprep.mubr.bf16.mxu0 0
        %2243 = vmatmul.mubr.bf16.gmra.mrb[0].mxu0 %v1398
        %v2244 = vpop.f32.mrb[0].mxu0
        %v2245 = vadd.f32 %v484, %v2244
        %v2246 = vpop.f32.mrb[0].mxu0
        %v2247 = vpop.f32.mrb[0].mxu0
        %v2248 = vadd.f32 %v484, %v2247
        %v2249 = vpop.f32.mrb[0].mxu0
        %2250 = vmatprep.mubr.bf16.mxu0 0
        %2251 = vmatmul.mubr.bf16.gmra.mrb[0].mxu0 %v1401
        %v2252 = vpop.f32.mrb[0].mxu0
        %v2253 = vadd.f32 %v484, %v2252
        %v2254 = vpop.f32.mrb[0].mxu0
        %v2255 = vpop.f32.mrb[0].mxu0
        %v2256 = vadd.f32 %v484, %v2255
        %v2257 = vpop.f32.mrb[0].mxu0
        %2258 = vmatprep.mubr.bf16.mxu0 0
        %2259 = vmatmul.mubr.bf16.gmra.mrb[0].mxu0 %v1404
        %v2260 = vpop.f32.mrb[0].mxu0
        %v2261 = vadd.f32 %v484, %v2260
        %v2262 = vpop.f32.mrb[0].mxu0
        %v2263 = vpop.f32.mrb[0].mxu0
        %v2264 = vadd.f32 %v484, %v2263
        %v2265 = vpop.f32.mrb[0].mxu0
        %2266 = vmatprep.mubr.bf16.mxu0 0
        %2267 = vmatmul.mubr.bf16.gmra.mrb[0].mxu0 %v1407
        %v2268 = vpop.f32.mrb[0].mxu0
        %v2269 = vadd.f32 %v484, %v2268
        %v2270 = vpop.f32.mrb[0].mxu0
        %v2271 = vpop.f32.mrb[0].mxu0
        %v2272 = vadd.f32 %v484, %v2271
        %v2273 = vpop.f32.mrb[0].mxu0
        %2274 = vmatprep.mubr.bf16.mxu0 0
        %2275 = vmatmul.mubr.bf16.gmra.mrb[0].mxu0 %v1410
        %v2276 = vpop.f32.mrb[0].mxu0
        %v2277 = vadd.f32 %v484, %v2276
        %v2278 = vpop.f32.mrb[0].mxu0
        %v2279 = vpop.f32.mrb[0].mxu0
        %v2280 = vadd.f32 %v484, %v2279
        %v2281 = vpop.f32.mrb[0].mxu0
        %2282 = vmatprep.mubr.bf16.mxu0 0
        %2283 = vmatmul.mubr.bf16.gmra.mrb[0].mxu0 %v1413
        %v2284 = vpop.f32.mrb[0].mxu0
        %v2285 = vadd.f32 %v484, %v2284
        %v2286 = vpop.f32.mrb[0].mxu0
        %v2287 = vpop.f32.mrb[0].mxu0
        %v2288 = vadd.f32 %v484, %v2287
        %v2289 = vpop.f32.mrb[0].mxu0
        %2290 = vmatprep.mubr.bf16.mxu0 0
        %2291 = vmatmul.mubr.bf16.gmra.mrb[0].mxu0 %v1416
        %v2292 = vpop.f32.mrb[0].mxu0
        %v2293 = vadd.f32 %v484, %v2292
        %v2294 = vpop.f32.mrb[0].mxu0
        %v2295 = vpop.f32.mrb[0].mxu0
        %v2296 = vadd.f32 %v484, %v2295
        %v2297 = vpop.f32.mrb[0].mxu0
        %2298 = vmatprep.mubr.bf16.mxu0 0
        %2299 = vmatmul.mubr.bf16.gmra.mrb[0].mxu0 %v1419
        %v2300 = vpop.f32.mrb[0].mxu0
        %v2301 = vadd.f32 %v484, %v2300
        %v2302 = vpop.f32.mrb[0].mxu0
        %v2303 = vpop.f32.mrb[0].mxu0
        %v2304 = vadd.f32 %v484, %v2303
        %v2305 = vpop.f32.mrb[0].mxu0
        %2306 = vmatprep.mubr.bf16.mxu0 0
        %2307 = vmatmul.mubr.bf16.gmra.mrb[0].mxu0 %v1422
        %v2308 = vpop.f32.mrb[0].mxu0
        %v2309 = vadd.f32 %v484, %v2308
        %v2310 = vpop.f32.mrb[0].mxu0
        %v2311 = vpop.f32.mrb[0].mxu0
        %v2312 = vadd.f32 %v484, %v2311
        %v2313 = vpop.f32.mrb[0].mxu0
        %2314 = vmatprep.mubr.bf16.mxu0 0
        %2315 = vmatmul.mubr.bf16.gmra.mrb[0].mxu0 %v1425
        %v2316 = vpop.f32.mrb[0].mxu0
        %v2317 = vadd.f32 %v484, %v2316
        %v2318 = vpop.f32.mrb[0].mxu0
        %v2319 = vpop.f32.mrb[0].mxu0
        %v2320 = vadd.f32 %v484, %v2319
        %v2321 = vpop.f32.mrb[0].mxu0
        %2322 = vmatprep.mubr.bf16.mxu0 0
        %2323 = vmatmul.mubr.bf16.gmra.mrb[0].mxu0 %v1428
        %v2324 = vpop.f32.mrb[0].mxu0
        %v2325 = vadd.f32 %v484, %v2324
        %v2326 = vpop.f32.mrb[0].mxu0
        %v2327 = vpop.f32.mrb[0].mxu0
        %v2328 = vadd.f32 %v484, %v2327
        %v2329 = vpop.f32.mrb[0].mxu0
        %2330 = vmatprep.mubr.bf16.mxu0 0
        %2331 = vmatmul.mubr.bf16.gmra.mrb[0].mxu0 %v1431
        %v2332 = vpop.f32.mrb[0].mxu0
        %v2333 = vadd.f32 %v484, %v2332
        %v2334 = vpop.f32.mrb[0].mxu0
        %v2335 = vpop.f32.mrb[0].mxu0
        %v2336 = vadd.f32 %v484, %v2335
        %v2337 = vpop.f32.mrb[0].mxu0
        %2338 = vmatprep.mubr.bf16.mxu0 0
        %2339 = vmatmul.mubr.bf16.gmra.mrb[0].mxu0 %v1434
        %v2340 = vpop.f32.mrb[0].mxu0
        %v2341 = vadd.f32 %v484, %v2340
        %v2342 = vpop.f32.mrb[0].mxu0
        %v2343 = vpop.f32.mrb[0].mxu0
        %v2344 = vadd.f32 %v484, %v2343
        %v2345 = vpop.f32.mrb[0].mxu0
        %2346 = vmatprep.mubr.bf16.mxu0 0
        %2347 = vmatmul.mubr.bf16.gmra.mrb[0].mxu0 %v1437
        %v2348 = vpop.f32.mrb[0].mxu0
        %v2349 = vadd.f32 %v484, %v2348
        %v2350 = vpop.f32.mrb[0].mxu0
        %v2351 = vpop.f32.mrb[0].mxu0
        %v2352 = vadd.f32 %v484, %v2351
        %v2353 = vpop.f32.mrb[0].mxu0
        %2354 = vmatprep.mubr.bf16.mxu0 0
        %2355 = vmatmul.mubr.bf16.gmra.mrb[0].mxu0 %v1440
        %v2356 = vpop.f32.mrb[0].mxu0
        %v2357 = vadd.f32 %v484, %v2356
        %v2358 = vpop.f32.mrb[0].mxu0
        %v2359 = vpop.f32.mrb[0].mxu0
        %v2360 = vadd.f32 %v484, %v2359
        %v2361 = vpop.f32.mrb[0].mxu0
        %2362 = vmatprep.mubr.bf16.mxu0 0
        %2363 = vmatmul.mubr.bf16.gmra.mrb[0].mxu0 %v1443
        %v2364 = vpop.f32.mrb[0].mxu0
        %v2365 = vadd.f32 %v484, %v2364
        %v2366 = vpop.f32.mrb[0].mxu0
        %v2367 = vpop.f32.mrb[0].mxu0
        %v2368 = vadd.f32 %v484, %v2367
        %v2369 = vpop.f32.mrb[0].mxu0
        %2370 = vmatprep.mubr.bf16.mxu0 0
        %2371 = vmatmul.mubr.bf16.gmra.mrb[0].mxu0 %v1446
        %v2372 = vpop.f32.mrb[0].mxu0
        %v2373 = vadd.f32 %v484, %v2372
        %v2374 = vpop.f32.mrb[0].mxu0
        %v2375 = vpop.f32.mrb[0].mxu0
        %v2376 = vadd.f32 %v484, %v2375
        %v2377 = vpop.f32.mrb[0].mxu0
        %2378 = vmatprep.mubr.bf16.mxu0 0
        %2379 = vmatmul.mubr.bf16.gmra.mrb[0].mxu0 %v1449
        %v2380 = vpop.f32.mrb[0].mxu0
        %v2381 = vadd.f32 %v484, %v2380
        %v2382 = vpop.f32.mrb[0].mxu0
        %v2383 = vpop.f32.mrb[0].mxu0
        %v2384 = vadd.f32 %v484, %v2383
        %v2385 = vpop.f32.mrb[0].mxu0
        %2386 = vmatprep.mubr.bf16.mxu0 0
        %2387 = vmatmul.mubr.bf16.gmra.mrb[0].mxu0 %v1452
        %v2388 = vpop.f32.mrb[0].mxu0
        %v2389 = vadd.f32 %v484, %v2388
        %v2390 = vpop.f32.mrb[0].mxu0
        %v2391 = vpop.f32.mrb[0].mxu0
        %v2392 = vadd.f32 %v484, %v2391
        %v2393 = vpop.f32.mrb[0].mxu0
        %2394 = vmatprep.mubr.bf16.mxu0 0
        %2395 = vmatmul.mubr.bf16.gmra.mrb[0].mxu0 %v1455
        %v2396 = vpop.f32.mrb[0].mxu0
        %v2397 = vadd.f32 %v484, %v2396
        %v2398 = vpop.f32.mrb[0].mxu0
        %v2399 = vpop.f32.mrb[0].mxu0
        %v2400 = vadd.f32 %v484, %v2399
        %v2401 = vpop.f32.mrb[0].mxu0
        %2402 = vmatprep.mubr.bf16.mxu0 0
        %2403 = vmatmul.mubr.bf16.gmra.mrb[0].mxu0 %v1458
        %v2404 = vpop.f32.mrb[0].mxu0
        %v2405 = vadd.f32 %v484, %v2404
        %v2406 = vpop.f32.mrb[0].mxu0
        %v2407 = vpop.f32.mrb[0].mxu0
        %v2408 = vadd.f32 %v484, %v2407
        %v2409 = vpop.f32.mrb[0].mxu0
        %2410 = vmatprep.mubr.bf16.mxu0 0
        %2411 = vmatmul.mubr.bf16.gmra.mrb[0].mxu0 %v1461
        %v2412 = vpop.f32.mrb[0].mxu0
        %v2413 = vadd.f32 %v484, %v2412
        %v2414 = vpop.f32.mrb[0].mxu0
        %v2415 = vpop.f32.mrb[0].mxu0
        %v2416 = vadd.f32 %v484, %v2415
        %v2417 = vpop.f32.mrb[0].mxu0
        %2418 = vmatprep.mubr.bf16.mxu0 0
        %2419 = vmatmul.mubr.bf16.gmra.mrb[0].mxu0 %v1464
        %v2420 = vpop.f32.mrb[0].mxu0
        %v2421 = vadd.f32 %v484, %v2420
        %v2422 = vpop.f32.mrb[0].mxu0
        %v2423 = vpop.f32.mrb[0].mxu0
        %v2424 = vadd.f32 %v484, %v2423
        %v2425 = vpop.f32.mrb[0].mxu0
        %2426 = vmatprep.mubr.bf16.mxu0 0
        %2427 = vmatmul.mubr.bf16.gmra.mrb[0].mxu0 %v1467
        %v2428 = vpop.f32.mrb[0].mxu0
        %v2429 = vadd.f32 %v484, %v2428
        %v2430 = vpop.f32.mrb[0].mxu0
        %v2431 = vpop.f32.mrb[0].mxu0
        %v2432 = vadd.f32 %v484, %v2431
        %v2433 = vpop.f32.mrb[0].mxu0
        %2434 = vmatprep.mubr.bf16.mxu0 0
        %2435 = vmatmul.mubr.bf16.gmra.mrb[0].mxu0 %v1470
        %v2436 = vpop.f32.mrb[0].mxu0
        %v2437 = vadd.f32 %v484, %v2436
        %v2438 = vpop.f32.mrb[0].mxu0
        %v2439 = vpop.f32.mrb[0].mxu0
        %v2440 = vadd.f32 %v484, %v2439
        %v2441 = vpop.f32.mrb[0].mxu0
        %2442 = vmatprep.mubr.bf16.mxu0 0
        %2443 = vmatmul.mubr.bf16.gmra.mrb[0].mxu0 %v1473
        %v2444 = vpop.f32.mrb[0].mxu0
        %v2445 = vadd.f32 %v484, %v2444
        %v2446 = vpop.f32.mrb[0].mxu0
        %v2447 = vpop.f32.mrb[0].mxu0
        %v2448 = vadd.f32 %v484, %v2447
        %v2449 = vpop.f32.mrb[0].mxu0
        %2450 = vmatprep.mubr.bf16.mxu0 0
        %2451 = vmatmul.mubr.bf16.gmra.mrb[0].mxu0 %v1476
        %v2452 = vpop.f32.mrb[0].mxu0
        %v2453 = vadd.f32 %v484, %v2452
        %v2454 = vpop.f32.mrb[0].mxu0
        %v2455 = vpop.f32.mrb[0].mxu0
        %v2456 = vadd.f32 %v484, %v2455
        %v2457 = vpop.f32.mrb[0].mxu0
        %2458 = vmatprep.mubr.bf16.mxu0 0
        %2459 = vmatmul.mubr.bf16.gmra.mrb[0].mxu0 %v1479
        %v2460 = vpop.f32.mrb[0].mxu0
        %v2461 = vadd.f32 %v484, %v2460
        %v2462 = vpop.f32.mrb[0].mxu0
        %v2463 = vpop.f32.mrb[0].mxu0
        %v2464 = vadd.f32 %v484, %v2463
        %v2465 = vpop.f32.mrb[0].mxu0
        %2466 = vmatprep.mubr.bf16.mxu0 0
        %2467 = vmatmul.mubr.bf16.gmra.mrb[0].mxu0 %v1482
        %v2468 = vpop.f32.mrb[0].mxu0
        %v2469 = vadd.f32 %v484, %v2468
        %v2470 = vpop.f32.mrb[0].mxu0
        %v2471 = vpop.f32.mrb[0].mxu0
        %v2472 = vadd.f32 %v484, %v2471
        %v2473 = vpop.f32.mrb[0].mxu0
        %2474 = vmatprep.mubr.bf16.mxu0 0
        %2475 = vmatmul.mubr.bf16.gmra.mrb[0].mxu0 %v1485
        %v2476 = vpop.f32.mrb[0].mxu0
        %v2477 = vadd.f32 %v484, %v2476
        %v2478 = vpop.f32.mrb[0].mxu0
        %v2479 = vpop.f32.mrb[0].mxu0
        %v2480 = vadd.f32 %v484, %v2479
        %v2481 = vpop.f32.mrb[0].mxu0
        %2482 = vmatprep.mubr.bf16.mxu0 0
        %2483 = vmatmul.mubr.bf16.gmra.mrb[0].mxu0 %v1488
        %v2484 = vpop.f32.mrb[0].mxu0
        %v2485 = vadd.f32 %v484, %v2484
        %v2486 = vpop.f32.mrb[0].mxu0
        %v2487 = vpop.f32.mrb[0].mxu0
        %v2488 = vadd.f32 %v484, %v2487
        %v2489 = vpop.f32.mrb[0].mxu0
        %2490 = vmatprep.mubr.bf16.mxu0 0
        %2491 = vmatmul.mubr.bf16.gmra.mrb[0].mxu0 %v1491
        %v2492 = vpop.f32.mrb[0].mxu0
        %v2493 = vadd.f32 %v484, %v2492
        %v2494 = vpop.f32.mrb[0].mxu0
        %v2495 = vpop.f32.mrb[0].mxu0
        %v2496 = vadd.f32 %v484, %v2495
        %v2497 = vpop.f32.mrb[0].mxu0
        %2498 = vmatprep.mubr.bf16.mxu0 0
        %2499 = vmatmul.mubr.bf16.gmra.mrb[0].mxu0 %v1494
        %v2500 = vpop.f32.mrb[0].mxu0
        %v2501 = vadd.f32 %v484, %v2500
        %v2502 = vpop.f32.mrb[0].mxu0
        %v2503 = vpop.f32.mrb[0].mxu0
        %v2504 = vadd.f32 %v484, %v2503
        %v2505 = vpop.f32.mrb[0].mxu0
        %2506 = vmatprep.mubr.bf16.mxu0 0
        %2507 = vmatmul.mubr.bf16.gmra.mrb[0].mxu0 %v1497
        %v2508 = vpop.f32.mrb[0].mxu0
        %v2509 = vadd.f32 %v484, %v2508
        %v2510 = vpop.f32.mrb[0].mxu0
        %v2511 = vpop.f32.mrb[0].mxu0
        %v2512 = vadd.f32 %v484, %v2511
        %v2513 = vpop.f32.mrb[0].mxu0
        %2514 = vmatprep.mubr.bf16.mxu0 0
        %2515 = vmatmul.mubr.bf16.gmra.mrb[0].mxu0 %v1500
        %v2516 = vpop.f32.mrb[0].mxu0
        %v2517 = vadd.f32 %v484, %v2516
        %v2518 = vpop.f32.mrb[0].mxu0
        %v2519 = vpop.f32.mrb[0].mxu0
        %v2520 = vadd.f32 %v484, %v2519
        %v2521 = vpop.f32.mrb[0].mxu0
        %2522 = vmatprep.mubr.bf16.mxu0 0
        %2523 = vmatmul.mubr.bf16.gmra.mrb[0].mxu0 %v1503
        %v2524 = vpop.f32.mrb[0].mxu0
        %v2525 = vadd.f32 %v484, %v2524
        %v2526 = vpop.f32.mrb[0].mxu0
        %v2527 = vpop.f32.mrb[0].mxu0
        %v2528 = vadd.f32 %v484, %v2527
        %v2529 = vpop.f32.mrb[0].mxu0
        %2530 = vmatprep.mubr.bf16.mxu0 0
        %2531 = vmatmul.mubr.bf16.gmra.mrb[0].mxu0 %v1506
        %v2532 = vpop.f32.mrb[0].mxu0
        %v2533 = vadd.f32 %v484, %v2532
        %v2534 = vpop.f32.mrb[0].mxu0
        %v2535 = vpop.f32.mrb[0].mxu0
        %v2536 = vadd.f32 %v484, %v2535
        %v2537 = vpop.f32.mrb[0].mxu0
        %2538 = vmatprep.mubr.bf16.mxu0 0
        %2539 = vmatmul.mubr.bf16.gmra.mrb[0].mxu0 %v1509
        %v2540 = vpop.f32.mrb[0].mxu0
        %v2541 = vadd.f32 %v484, %v2540
        %v2542 = vpop.f32.mrb[0].mxu0
        %v2543 = vpop.f32.mrb[0].mxu0
        %v2544 = vadd.f32 %v484, %v2543
        %v2545 = vpop.f32.mrb[0].mxu0
        %2546 = vmatprep.mubr.bf16.mxu0 0
        %2547 = vmatmul.mubr.bf16.gmra.mrb[0].mxu0 %v1512
        %v2548 = vpop.f32.mrb[0].mxu0
        %v2549 = vadd.f32 %v484, %v2548
        %v2550 = vpop.f32.mrb[0].mxu0
        %v2551 = vpop.f32.mrb[0].mxu0
        %v2552 = vadd.f32 %v484, %v2551
        %v2553 = vpop.f32.mrb[0].mxu0
        %2554 = vmatprep.mubr.bf16.mxu0 0
        %2555 = vmatmul.mubr.bf16.gmra.mrb[0].mxu0 %v1515
        %v2556 = vpop.f32.mrb[0].mxu0
        %v2557 = vadd.f32 %v484, %v2556
        %v2558 = vpop.f32.mrb[0].mxu0
        %v2559 = vpop.f32.mrb[0].mxu0
        %v2560 = vadd.f32 %v484, %v2559
        %v2561 = vpop.f32.mrb[0].mxu0
        %2562 = vmatprep.mubr.bf16.mxu0 0
        %2563 = vmatmul.mubr.bf16.gmra.mrb[0].mxu0 %v1518
        %v2564 = vpop.f32.mrb[0].mxu0
        %v2565 = vadd.f32 %v484, %v2564
        %v2566 = vpop.f32.mrb[0].mxu0
        %v2567 = vpop.f32.mrb[0].mxu0
        %v2568 = vadd.f32 %v484, %v2567
        %v2569 = vpop.f32.mrb[0].mxu0
        %2570 = vmatprep.mubr.bf16.mxu0 0
        %2571 = vmatmul.mubr.bf16.gmra.mrb[0].mxu0 %v1521
        %v2572 = vpop.f32.mrb[0].mxu0
        %v2573 = vadd.f32 %v484, %v2572
        %v2574 = vpop.f32.mrb[0].mxu0
        %v2575 = vpop.f32.mrb[0].mxu0
        %v2576 = vadd.f32 %v484, %v2575
        %v2577 = vpop.f32.mrb[0].mxu0
        %2578 = vmatprep.mubr.bf16.mxu0 0
        %2579 = vmatmul.mubr.bf16.gmra.mrb[0].mxu0 %v1524
        %v2580 = vpop.f32.mrb[0].mxu0
        %v2581 = vadd.f32 %v484, %v2580
        %v2582 = vpop.f32.mrb[0].mxu0
        %v2583 = vpop.f32.mrb[0].mxu0
        %v2584 = vadd.f32 %v484, %v2583
        %v2585 = vpop.f32.mrb[0].mxu0
        %2586 = vdwg.mxu0
        %v2587 = vmax.f32 %v1565, 0.0
        %v2588 = vmax.f32 %v1568, 0.0
        %v2589 = vmax.f32 %v1573, 0.0
        %v2590 = vmax.f32 %v1576, 0.0
        %v2591 = vmax.f32 %v1581, 0.0
        %v2592 = vmax.f32 %v1584, 0.0
        %v2593 = vmax.f32 %v1589, 0.0
        %v2594 = vmax.f32 %v1592, 0.0
        %v2595 = vmax.f32 %v1597, 0.0
        %v2596 = vmax.f32 %v1600, 0.0
        %v2597 = vmax.f32 %v1605, 0.0
        %v2598 = vmax.f32 %v1608, 0.0
        %v2599 = vmax.f32 %v1613, 0.0
        %v2600 = vmax.f32 %v1616, 0.0
        %v2601 = vmax.f32 %v1621, 0.0
        %v2602 = vmax.f32 %v1624, 0.0
        %v2603 = vmax.f32 %v1629, 0.0
        %v2604 = vmax.f32 %v1632, 0.0
        %v2605 = vmax.f32 %v1637, 0.0
        %v2606 = vmax.f32 %v1640, 0.0
        %v2607 = vmax.f32 %v1645, 0.0
        %v2608 = vmax.f32 %v1648, 0.0
        %v2609 = vmax.f32 %v1653, 0.0
        %v2610 = vmax.f32 %v1656, 0.0
        %v2611 = vmax.f32 %v1661, 0.0
        %v2612 = vmax.f32 %v1664, 0.0
        %v2613 = vmax.f32 %v1669, 0.0
        %v2614 = vmax.f32 %v1672, 0.0
        %v2615 = vmax.f32 %v1677, 0.0
        %v2616 = vmax.f32 %v1680, 0.0
        %v2617 = vmax.f32 %v1685, 0.0
        %v2618 = vmax.f32 %v1688, 0.0
        %v2619 = vmax.f32 %v1693, 0.0
        %v2620 = vmax.f32 %v1696, 0.0
        %v2621 = vmax.f32 %v1701, 0.0
        %v2622 = vmax.f32 %v1704, 0.0
        %v2623 = vmax.f32 %v1709, 0.0
        %v2624 = vmax.f32 %v1712, 0.0
        %v2625 = vmax.f32 %v1717, 0.0
        %v2626 = vmax.f32 %v1720, 0.0
        %v2627 = vmax.f32 %v1725, 0.0
        %v2628 = vmax.f32 %v1728, 0.0
        %v2629 = vmax.f32 %v1733, 0.0
        %v2630 = vmax.f32 %v1736, 0.0
        %v2631 = vmax.f32 %v1741, 0.0
        %v2632 = vmax.f32 %v1744, 0.0
        %v2633 = vmax.f32 %v1749, 0.0
        %v2634 = vmax.f32 %v1752, 0.0
        %v2635 = vmax.f32 %v1757, 0.0
        %v2636 = vmax.f32 %v1760, 0.0
        %v2637 = vmax.f32 %v1765, 0.0
        %v2638 = vmax.f32 %v1768, 0.0
        %v2639 = vmax.f32 %v1773, 0.0
        %v2640 = vmax.f32 %v1776, 0.0
        %v2641 = vmax.f32 %v1781, 0.0
        %v2642 = vmax.f32 %v1784, 0.0
        %v2643 = vmax.f32 %v1789, 0.0
        %v2644 = vmax.f32 %v1792, 0.0
        %v2645 = vmax.f32 %v1797, 0.0
        %v2646 = vmax.f32 %v1800, 0.0
        %v2647 = vmax.f32 %v1805, 0.0
        %v2648 = vmax.f32 %v1808, 0.0
        %v2649 = vmax.f32 %v1813, 0.0
        %v2650 = vmax.f32 %v1816, 0.0
        %v2651 = vmax.f32 %v1821, 0.0
        %v2652 = vmax.f32 %v1824, 0.0
        %v2653 = vmax.f32 %v1829, 0.0
        %v2654 = vmax.f32 %v1832, 0.0
        %v2655 = vmax.f32 %v1837, 0.0
        %v2656 = vmax.f32 %v1840, 0.0
        %v2657 = vmax.f32 %v1845, 0.0
        %v2658 = vmax.f32 %v1848, 0.0
        %v2659 = vmax.f32 %v1853, 0.0
        %v2660 = vmax.f32 %v1856, 0.0
        %v2661 = vmax.f32 %v1861, 0.0
        %v2662 = vmax.f32 %v1864, 0.0
        %v2663 = vmax.f32 %v1869, 0.0
        %v2664 = vmax.f32 %v1872, 0.0
        %v2665 = vmax.f32 %v1877, 0.0
        %v2666 = vmax.f32 %v1880, 0.0
        %v2667 = vmax.f32 %v1885, 0.0
        %v2668 = vmax.f32 %v1888, 0.0
        %v2669 = vmax.f32 %v1893, 0.0
        %v2670 = vmax.f32 %v1896, 0.0
        %v2671 = vmax.f32 %v1901, 0.0
        %v2672 = vmax.f32 %v1904, 0.0
        %v2673 = vmax.f32 %v1909, 0.0
        %v2674 = vmax.f32 %v1912, 0.0
        %v2675 = vmax.f32 %v1917, 0.0
        %v2676 = vmax.f32 %v1920, 0.0
        %v2677 = vmax.f32 %v1925, 0.0
        %v2678 = vmax.f32 %v1928, 0.0
        %v2679 = vmax.f32 %v1933, 0.0
        %v2680 = vmax.f32 %v1936, 0.0
        %v2681 = vmax.f32 %v1941, 0.0
        %v2682 = vmax.f32 %v1944, 0.0
        %v2683 = vmax.f32 %v1949, 0.0
        %v2684 = vmax.f32 %v1952, 0.0
        %v2685 = vmax.f32 %v1957, 0.0
        %v2686 = vmax.f32 %v1960, 0.0
        %v2687 = vmax.f32 %v1965, 0.0
        %v2688 = vmax.f32 %v1968, 0.0
        %v2689 = vmax.f32 %v1973, 0.0
        %v2690 = vmax.f32 %v1976, 0.0
        %v2691 = vmax.f32 %v1981, 0.0
        %v2692 = vmax.f32 %v1984, 0.0
        %v2693 = vmax.f32 %v1989, 0.0
        %v2694 = vmax.f32 %v1992, 0.0
        %v2695 = vmax.f32 %v1997, 0.0
        %v2696 = vmax.f32 %v2000, 0.0
        %v2697 = vmax.f32 %v2005, 0.0
        %v2698 = vmax.f32 %v2008, 0.0
        %v2699 = vmax.f32 %v2013, 0.0
        %v2700 = vmax.f32 %v2016, 0.0
        %v2701 = vmax.f32 %v2021, 0.0
        %v2702 = vmax.f32 %v2024, 0.0
        %v2703 = vmax.f32 %v2029, 0.0
        %v2704 = vmax.f32 %v2032, 0.0
        %v2705 = vmax.f32 %v2037, 0.0
        %v2706 = vmax.f32 %v2040, 0.0
        %v2707 = vmax.f32 %v2045, 0.0
        %v2708 = vmax.f32 %v2048, 0.0
        %v2709 = vmax.f32 %v2053, 0.0
        %v2710 = vmax.f32 %v2056, 0.0
        %v2711 = vmax.f32 %v2061, 0.0
        %v2712 = vmax.f32 %v2064, 0.0
        %v2713 = vmax.f32 %v2069, 0.0
        %v2714 = vmax.f32 %v2072, 0.0
        %v2715 = vmax.f32 %v2077, 0.0
        %v2716 = vmax.f32 %v2080, 0.0
        %v2717 = vmax.f32 %v2085, 0.0
        %v2718 = vmax.f32 %v2088, 0.0
        %v2719 = vmax.f32 %v2093, 0.0
        %v2720 = vmax.f32 %v2096, 0.0
        %v2721 = vmax.f32 %v2101, 0.0
        %v2722 = vmax.f32 %v2104, 0.0
        %v2723 = vmax.f32 %v2109, 0.0
        %v2724 = vmax.f32 %v2112, 0.0
        %v2725 = vmax.f32 %v2117, 0.0
        %v2726 = vmax.f32 %v2120, 0.0
        %v2727 = vmax.f32 %v2125, 0.0
        %v2728 = vmax.f32 %v2128, 0.0
        %v2729 = vmax.f32 %v2133, 0.0
        %v2730 = vmax.f32 %v2136, 0.0
        %v2731 = vmax.f32 %v2141, 0.0
        %v2732 = vmax.f32 %v2144, 0.0
        %v2733 = vmax.f32 %v2149, 0.0
        %v2734 = vmax.f32 %v2152, 0.0
        %v2735 = vmax.f32 %v2157, 0.0
        %v2736 = vmax.f32 %v2160, 0.0
        %v2737 = vmax.f32 %v2165, 0.0
        %v2738 = vmax.f32 %v2168, 0.0
        %v2739 = vmax.f32 %v2173, 0.0
        %v2740 = vmax.f32 %v2176, 0.0
        %v2741 = vmax.f32 %v2181, 0.0
        %v2742 = vmax.f32 %v2184, 0.0
        %v2743 = vmax.f32 %v2189, 0.0
        %v2744 = vmax.f32 %v2192, 0.0
        %v2745 = vmax.f32 %v2197, 0.0
        %v2746 = vmax.f32 %v2200, 0.0
        %v2747 = vmax.f32 %v2205, 0.0
        %v2748 = vmax.f32 %v2208, 0.0
        %v2749 = vmax.f32 %v2213, 0.0
        %v2750 = vmax.f32 %v2216, 0.0
        %v2751 = vmax.f32 %v2221, 0.0
        %v2752 = vmax.f32 %v2224, 0.0
        %v2753 = vmax.f32 %v2229, 0.0
        %v2754 = vmax.f32 %v2232, 0.0
        %v2755 = vmax.f32 %v2237, 0.0
        %v2756 = vmax.f32 %v2240, 0.0
        %v2757 = vmax.f32 %v2245, 0.0
        %v2758 = vmax.f32 %v2248, 0.0
        %v2759 = vmax.f32 %v2253, 0.0
        %v2760 = vmax.f32 %v2256, 0.0
        %v2761 = vmax.f32 %v2261, 0.0
        %v2762 = vmax.f32 %v2264, 0.0
        %v2763 = vmax.f32 %v2269, 0.0
        %v2764 = vmax.f32 %v2272, 0.0
        %v2765 = vmax.f32 %v2277, 0.0
        %v2766 = vmax.f32 %v2280, 0.0
        %v2767 = vmax.f32 %v2285, 0.0
        %v2768 = vmax.f32 %v2288, 0.0
        %v2769 = vmax.f32 %v2293, 0.0
        %v2770 = vmax.f32 %v2296, 0.0
        %v2771 = vmax.f32 %v2301, 0.0
        %v2772 = vmax.f32 %v2304, 0.0
        %v2773 = vmax.f32 %v2309, 0.0
        %v2774 = vmax.f32 %v2312, 0.0
        %v2775 = vmax.f32 %v2317, 0.0
        %v2776 = vmax.f32 %v2320, 0.0
        %v2777 = vmax.f32 %v2325, 0.0
        %v2778 = vmax.f32 %v2328, 0.0
        %v2779 = vmax.f32 %v2333, 0.0
        %v2780 = vmax.f32 %v2336, 0.0
        %v2781 = vmax.f32 %v2341, 0.0
        %v2782 = vmax.f32 %v2344, 0.0
        %v2783 = vmax.f32 %v2349, 0.0
        %v2784 = vmax.f32 %v2352, 0.0
        %v2785 = vmax.f32 %v2357, 0.0
        %v2786 = vmax.f32 %v2360, 0.0
        %v2787 = vmax.f32 %v2365, 0.0
        %v2788 = vmax.f32 %v2368, 0.0
        %v2789 = vmax.f32 %v2373, 0.0
        %v2790 = vmax.f32 %v2376, 0.0
        %v2791 = vmax.f32 %v2381, 0.0
        %v2792 = vmax.f32 %v2384, 0.0
        %v2793 = vmax.f32 %v2389, 0.0
        %v2794 = vmax.f32 %v2392, 0.0
        %v2795 = vmax.f32 %v2397, 0.0
        %v2796 = vmax.f32 %v2400, 0.0
        %v2797 = vmax.f32 %v2405, 0.0
        %v2798 = vmax.f32 %v2408, 0.0
        %v2799 = vmax.f32 %v2413, 0.0
        %v2800 = vmax.f32 %v2416, 0.0
        %v2801 = vmax.f32 %v2421, 0.0
        %v2802 = vmax.f32 %v2424, 0.0
        %v2803 = vmax.f32 %v2429, 0.0
        %v2804 = vmax.f32 %v2432, 0.0
        %v2805 = vmax.f32 %v2437, 0.0
        %v2806 = vmax.f32 %v2440, 0.0
        %v2807 = vmax.f32 %v2445, 0.0
        %v2808 = vmax.f32 %v2448, 0.0
        %v2809 = vmax.f32 %v2453, 0.0
        %v2810 = vmax.f32 %v2456, 0.0
        %v2811 = vmax.f32 %v2461, 0.0
        %v2812 = vmax.f32 %v2464, 0.0
        %v2813 = vmax.f32 %v2469, 0.0
        %v2814 = vmax.f32 %v2472, 0.0
        %v2815 = vmax.f32 %v2477, 0.0
        %v2816 = vmax.f32 %v2480, 0.0
        %v2817 = vmax.f32 %v2485, 0.0
        %v2818 = vmax.f32 %v2488, 0.0
        %v2819 = vmax.f32 %v2493, 0.0
        %v2820 = vmax.f32 %v2496, 0.0
        %v2821 = vmax.f32 %v2501, 0.0
        %v2822 = vmax.f32 %v2504, 0.0
        %v2823 = vmax.f32 %v2509, 0.0
        %v2824 = vmax.f32 %v2512, 0.0
        %v2825 = vmax.f32 %v2517, 0.0
        %v2826 = vmax.f32 %v2520, 0.0
        %v2827 = vmax.f32 %v2525, 0.0
        %v2828 = vmax.f32 %v2528, 0.0
        %v2829 = vmax.f32 %v2533, 0.0
        %v2830 = vmax.f32 %v2536, 0.0
        %v2831 = vmax.f32 %v2541, 0.0
        %v2832 = vmax.f32 %v2544, 0.0
        %v2833 = vmax.f32 %v2549, 0.0
        %v2834 = vmax.f32 %v2552, 0.0
        %v2835 = vmax.f32 %v2557, 0.0
        %v2836 = vmax.f32 %v2560, 0.0
        %v2837 = vmax.f32 %v2565, 0.0
        %v2838 = vmax.f32 %v2568, 0.0
        %v2839 = vmax.f32 %v2573, 0.0
        %v2840 = vmax.f32 %v2576, 0.0
        %v2841 = vmax.f32 %v2581, 0.0
        %v2842 = vmax.f32 %v2584, 0.0
        %vm2843 = vcmask 261120
        %v2844 = vsel %vm2843, %v2587, 0.0
        %v2845 = vsel %vm2843, %v2588, 0.0
        %v2846 = vadd.f32 %v2844, %v2845
        %v2847 = vsel %vm2843, %v2589, 0.0
        %v2848 = vadd.f32 %v2846, %v2847
        %v2849 = vsel %vm2843, %v2590, 0.0
        %v2850 = vadd.f32 %v2848, %v2849
        %v2851 = vsel %vm2843, %v2591, 0.0
        %v2852 = vadd.f32 %v2850, %v2851
        %v2853 = vsel %vm2843, %v2592, 0.0
        %v2854 = vadd.f32 %v2852, %v2853
        %v2855 = vsel %vm2843, %v2593, 0.0
        %v2856 = vadd.f32 %v2854, %v2855
        %v2857 = vsel %vm2843, %v2594, 0.0
        %v2858 = vadd.f32 %v2856, %v2857
        %v2859 = vsel %vm2843, %v2595, 0.0
        %v2860 = vadd.f32 %v2858, %v2859
        %v2861 = vsel %vm2843, %v2596, 0.0
        %v2862 = vadd.f32 %v2860, %v2861
        %v2863 = vsel %vm2843, %v2597, 0.0
        %v2864 = vadd.f32 %v2862, %v2863
        %v2865 = vsel %vm2843, %v2598, 0.0
        %v2866 = vadd.f32 %v2864, %v2865
        %v2867 = vsel %vm2843, %v2599, 0.0
        %v2868 = vadd.f32 %v2866, %v2867
        %v2869 = vsel %vm2843, %v2600, 0.0
        %v2870 = vadd.f32 %v2868, %v2869
        %v2871 = vsel %vm2843, %v2601, 0.0
        %v2872 = vadd.f32 %v2870, %v2871
        %v2873 = vsel %vm2843, %v2602, 0.0
        %v2874 = vadd.f32 %v2872, %v2873
        %v2875 = vsel %vm2843, %v2603, 0.0
        %v2876 = vadd.f32 %v2874, %v2875
        %v2877 = vsel %vm2843, %v2604, 0.0
        %v2878 = vadd.f32 %v2876, %v2877
        %v2879 = vsel %vm2843, %v2605, 0.0
        %v2880 = vadd.f32 %v2878, %v2879
        %v2881 = vsel %vm2843, %v2606, 0.0
        %v2882 = vadd.f32 %v2880, %v2881
        %v2883 = vsel %vm2843, %v2607, 0.0
        %v2884 = vadd.f32 %v2882, %v2883
        %v2885 = vsel %vm2843, %v2608, 0.0
        %v2886 = vadd.f32 %v2884, %v2885
        %v2887 = vsel %vm2843, %v2609, 0.0
        %v2888 = vadd.f32 %v2886, %v2887
        %v2889 = vsel %vm2843, %v2610, 0.0
        %v2890 = vadd.f32 %v2888, %v2889
        %v2891 = vsel %vm2843, %v2611, 0.0
        %v2892 = vadd.f32 %v2890, %v2891
        %v2893 = vsel %vm2843, %v2612, 0.0
        %v2894 = vadd.f32 %v2892, %v2893
        %v2895 = vsel %vm2843, %v2613, 0.0
        %v2896 = vadd.f32 %v2894, %v2895
        %v2897 = vsel %vm2843, %v2614, 0.0
        %v2898 = vadd.f32 %v2896, %v2897
        %v2899 = vsel %vm2843, %v2615, 0.0
        %v2900 = vadd.f32 %v2898, %v2899
        %v2901 = vsel %vm2843, %v2616, 0.0
        %v2902 = vadd.f32 %v2900, %v2901
        %v2903 = vsel %vm2843, %v2617, 0.0
        %v2904 = vadd.f32 %v2902, %v2903
        %v2905 = vsel %vm2843, %v2618, 0.0
        %v2906 = vadd.f32 %v2904, %v2905
        %v2907 = vrot.slane %v2906, 4
        %v2908 = vadd.f32 %v2906, %v2907
        %v2909 = vrot.slane %v2908, 2
        %v2910 = vadd.f32 %v2908, %v2909
        %v2911 = vrot.slane %v2910, 1
        %v2912 = vadd.f32 %v2910, %v2911
        %v2913 = vsel %vm2843, %v2619, 0.0
        %v2914 = vsel %vm2843, %v2620, 0.0
        %v2915 = vadd.f32 %v2913, %v2914
        %v2916 = vsel %vm2843, %v2621, 0.0
        %v2917 = vadd.f32 %v2915, %v2916
        %v2918 = vsel %vm2843, %v2622, 0.0
        %v2919 = vadd.f32 %v2917, %v2918
        %v2920 = vsel %vm2843, %v2623, 0.0
        %v2921 = vadd.f32 %v2919, %v2920
        %v2922 = vsel %vm2843, %v2624, 0.0
        %v2923 = vadd.f32 %v2921, %v2922
        %v2924 = vsel %vm2843, %v2625, 0.0
        %v2925 = vadd.f32 %v2923, %v2924
        %v2926 = vsel %vm2843, %v2626, 0.0
        %v2927 = vadd.f32 %v2925, %v2926
        %v2928 = vsel %vm2843, %v2627, 0.0
        %v2929 = vadd.f32 %v2927, %v2928
        %v2930 = vsel %vm2843, %v2628, 0.0
        %v2931 = vadd.f32 %v2929, %v2930
        %v2932 = vsel %vm2843, %v2629, 0.0
        %v2933 = vadd.f32 %v2931, %v2932
        %v2934 = vsel %vm2843, %v2630, 0.0
        %v2935 = vadd.f32 %v2933, %v2934
        %v2936 = vsel %vm2843, %v2631, 0.0
        %v2937 = vadd.f32 %v2935, %v2936
        %v2938 = vsel %vm2843, %v2632, 0.0
        %v2939 = vadd.f32 %v2937, %v2938
        %v2940 = vsel %vm2843, %v2633, 0.0
        %v2941 = vadd.f32 %v2939, %v2940
        %v2942 = vsel %vm2843, %v2634, 0.0
        %v2943 = vadd.f32 %v2941, %v2942
        %v2944 = vsel %vm2843, %v2635, 0.0
        %v2945 = vadd.f32 %v2943, %v2944
        %v2946 = vsel %vm2843, %v2636, 0.0
        %v2947 = vadd.f32 %v2945, %v2946
        %v2948 = vsel %vm2843, %v2637, 0.0
        %v2949 = vadd.f32 %v2947, %v2948
        %v2950 = vsel %vm2843, %v2638, 0.0
        %v2951 = vadd.f32 %v2949, %v2950
        %v2952 = vsel %vm2843, %v2639, 0.0
        %v2953 = vadd.f32 %v2951, %v2952
        %v2954 = vsel %vm2843, %v2640, 0.0
        %v2955 = vadd.f32 %v2953, %v2954
        %v2956 = vsel %vm2843, %v2641, 0.0
        %v2957 = vadd.f32 %v2955, %v2956
        %v2958 = vsel %vm2843, %v2642, 0.0
        %v2959 = vadd.f32 %v2957, %v2958
        %v2960 = vsel %vm2843, %v2643, 0.0
        %v2961 = vadd.f32 %v2959, %v2960
        %v2962 = vsel %vm2843, %v2644, 0.0
        %v2963 = vadd.f32 %v2961, %v2962
        %v2964 = vsel %vm2843, %v2645, 0.0
        %v2965 = vadd.f32 %v2963, %v2964
        %v2966 = vsel %vm2843, %v2646, 0.0
        %v2967 = vadd.f32 %v2965, %v2966
        %v2968 = vsel %vm2843, %v2647, 0.0
        %v2969 = vadd.f32 %v2967, %v2968
        %v2970 = vsel %vm2843, %v2648, 0.0
        %v2971 = vadd.f32 %v2969, %v2970
        %v2972 = vsel %vm2843, %v2649, 0.0
        %v2973 = vadd.f32 %v2971, %v2972
        %v2974 = vsel %vm2843, %v2650, 0.0
        %v2975 = vadd.f32 %v2973, %v2974
        %v2976 = vrot.slane %v2975, 4
        %v2977 = vadd.f32 %v2975, %v2976
        %v2978 = vrot.slane %v2977, 2
        %v2979 = vadd.f32 %v2977, %v2978
        %v2980 = vrot.slane %v2979, 1
        %v2981 = vadd.f32 %v2979, %v2980
        %v2982 = vsel %vm2843, %v2651, 0.0
        %v2983 = vsel %vm2843, %v2652, 0.0
        %v2984 = vadd.f32 %v2982, %v2983
        %v2985 = vsel %vm2843, %v2653, 0.0
        %v2986 = vadd.f32 %v2984, %v2985
        %v2987 = vsel %vm2843, %v2654, 0.0
        %v2988 = vadd.f32 %v2986, %v2987
        %v2989 = vsel %vm2843, %v2655, 0.0
        %v2990 = vadd.f32 %v2988, %v2989
        %v2991 = vsel %vm2843, %v2656, 0.0
        %v2992 = vadd.f32 %v2990, %v2991
        %v2993 = vsel %vm2843, %v2657, 0.0
        %v2994 = vadd.f32 %v2992, %v2993
        %v2995 = vsel %vm2843, %v2658, 0.0
        %v2996 = vadd.f32 %v2994, %v2995
        %v2997 = vsel %vm2843, %v2659, 0.0
        %v2998 = vadd.f32 %v2996, %v2997
        %v2999 = vsel %vm2843, %v2660, 0.0
        %v3000 = vadd.f32 %v2998, %v2999
        %v3001 = vsel %vm2843, %v2661, 0.0
        %v3002 = vadd.f32 %v3000, %v3001
        %v3003 = vsel %vm2843, %v2662, 0.0
        %v3004 = vadd.f32 %v3002, %v3003
        %v3005 = vsel %vm2843, %v2663, 0.0
        %v3006 = vadd.f32 %v3004, %v3005
        %v3007 = vsel %vm2843, %v2664, 0.0
        %v3008 = vadd.f32 %v3006, %v3007
        %v3009 = vsel %vm2843, %v2665, 0.0
        %v3010 = vadd.f32 %v3008, %v3009
        %v3011 = vsel %vm2843, %v2666, 0.0
        %v3012 = vadd.f32 %v3010, %v3011
        %v3013 = vsel %vm2843, %v2667, 0.0
        %v3014 = vadd.f32 %v3012, %v3013
        %v3015 = vsel %vm2843, %v2668, 0.0
        %v3016 = vadd.f32 %v3014, %v3015
        %v3017 = vsel %vm2843, %v2669, 0.0
        %v3018 = vadd.f32 %v3016, %v3017
        %v3019 = vsel %vm2843, %v2670, 0.0
        %v3020 = vadd.f32 %v3018, %v3019
        %v3021 = vsel %vm2843, %v2671, 0.0
        %v3022 = vadd.f32 %v3020, %v3021
        %v3023 = vsel %vm2843, %v2672, 0.0
        %v3024 = vadd.f32 %v3022, %v3023
        %v3025 = vsel %vm2843, %v2673, 0.0
        %v3026 = vadd.f32 %v3024, %v3025
        %v3027 = vsel %vm2843, %v2674, 0.0
        %v3028 = vadd.f32 %v3026, %v3027
        %v3029 = vsel %vm2843, %v2675, 0.0
        %v3030 = vadd.f32 %v3028, %v3029
        %v3031 = vsel %vm2843, %v2676, 0.0
        %v3032 = vadd.f32 %v3030, %v3031
        %v3033 = vsel %vm2843, %v2677, 0.0
        %v3034 = vadd.f32 %v3032, %v3033
        %v3035 = vsel %vm2843, %v2678, 0.0
        %v3036 = vadd.f32 %v3034, %v3035
        %v3037 = vsel %vm2843, %v2679, 0.0
        %v3038 = vadd.f32 %v3036, %v3037
        %v3039 = vsel %vm2843, %v2680, 0.0
        %v3040 = vadd.f32 %v3038, %v3039
        %v3041 = vsel %vm2843, %v2681, 0.0
        %v3042 = vadd.f32 %v3040, %v3041
        %v3043 = vsel %vm2843, %v2682, 0.0
        %v3044 = vadd.f32 %v3042, %v3043
        %v3045 = vrot.slane %v3044, 4
        %v3046 = vadd.f32 %v3044, %v3045
        %v3047 = vrot.slane %v3046, 2
        %v3048 = vadd.f32 %v3046, %v3047
        %v3049 = vrot.slane %v3048, 1
        %v3050 = vadd.f32 %v3048, %v3049
        %v3051 = vsel %vm2843, %v2683, 0.0
        %v3052 = vsel %vm2843, %v2684, 0.0
        %v3053 = vadd.f32 %v3051, %v3052
        %v3054 = vsel %vm2843, %v2685, 0.0
        %v3055 = vadd.f32 %v3053, %v3054
        %v3056 = vsel %vm2843, %v2686, 0.0
        %v3057 = vadd.f32 %v3055, %v3056
        %v3058 = vsel %vm2843, %v2687, 0.0
        %v3059 = vadd.f32 %v3057, %v3058
        %v3060 = vsel %vm2843, %v2688, 0.0
        %v3061 = vadd.f32 %v3059, %v3060
        %v3062 = vsel %vm2843, %v2689, 0.0
        %v3063 = vadd.f32 %v3061, %v3062
        %v3064 = vsel %vm2843, %v2690, 0.0
        %v3065 = vadd.f32 %v3063, %v3064
        %v3066 = vsel %vm2843, %v2691, 0.0
        %v3067 = vadd.f32 %v3065, %v3066
        %v3068 = vsel %vm2843, %v2692, 0.0
        %v3069 = vadd.f32 %v3067, %v3068
        %v3070 = vsel %vm2843, %v2693, 0.0
        %v3071 = vadd.f32 %v3069, %v3070
        %v3072 = vsel %vm2843, %v2694, 0.0
        %v3073 = vadd.f32 %v3071, %v3072
        %v3074 = vsel %vm2843, %v2695, 0.0
        %v3075 = vadd.f32 %v3073, %v3074
        %v3076 = vsel %vm2843, %v2696, 0.0
        %v3077 = vadd.f32 %v3075, %v3076
        %v3078 = vsel %vm2843, %v2697, 0.0
        %v3079 = vadd.f32 %v3077, %v3078
        %v3080 = vsel %vm2843, %v2698, 0.0
        %v3081 = vadd.f32 %v3079, %v3080
        %v3082 = vsel %vm2843, %v2699, 0.0
        %v3083 = vadd.f32 %v3081, %v3082
        %v3084 = vsel %vm2843, %v2700, 0.0
        %v3085 = vadd.f32 %v3083, %v3084
        %v3086 = vsel %vm2843, %v2701, 0.0
        %v3087 = vadd.f32 %v3085, %v3086
        %v3088 = vsel %vm2843, %v2702, 0.0
        %v3089 = vadd.f32 %v3087, %v3088
        %v3090 = vsel %vm2843, %v2703, 0.0
        %v3091 = vadd.f32 %v3089, %v3090
        %v3092 = vsel %vm2843, %v2704, 0.0
        %v3093 = vadd.f32 %v3091, %v3092
        %v3094 = vsel %vm2843, %v2705, 0.0
        %v3095 = vadd.f32 %v3093, %v3094
        %v3096 = vsel %vm2843, %v2706, 0.0
        %v3097 = vadd.f32 %v3095, %v3096
        %v3098 = vsel %vm2843, %v2707, 0.0
        %v3099 = vadd.f32 %v3097, %v3098
        %v3100 = vsel %vm2843, %v2708, 0.0
        %v3101 = vadd.f32 %v3099, %v3100
        %v3102 = vsel %vm2843, %v2709, 0.0
        %v3103 = vadd.f32 %v3101, %v3102
        %v3104 = vsel %vm2843, %v2710, 0.0
        %v3105 = vadd.f32 %v3103, %v3104
        %v3106 = vsel %vm2843, %v2711, 0.0
        %v3107 = vadd.f32 %v3105, %v3106
        %v3108 = vsel %vm2843, %v2712, 0.0
        %v3109 = vadd.f32 %v3107, %v3108
        %v3110 = vsel %vm2843, %v2713, 0.0
        %v3111 = vadd.f32 %v3109, %v3110
        %v3112 = vsel %vm2843, %v2714, 0.0
        %v3113 = vadd.f32 %v3111, %v3112
        %v3114 = vrot.slane %v3113, 4
        %v3115 = vadd.f32 %v3113, %v3114
        %v3116 = vrot.slane %v3115, 2
        %v3117 = vadd.f32 %v3115, %v3116
        %v3118 = vrot.slane %v3117, 1
        %v3119 = vadd.f32 %v3117, %v3118
        %v3120 = vsel %vm2843, %v2715, 0.0
        %v3121 = vsel %vm2843, %v2716, 0.0
        %v3122 = vadd.f32 %v3120, %v3121
        %v3123 = vsel %vm2843, %v2717, 0.0
        %v3124 = vadd.f32 %v3122, %v3123
        %v3125 = vsel %vm2843, %v2718, 0.0
        %v3126 = vadd.f32 %v3124, %v3125
        %v3127 = vsel %vm2843, %v2719, 0.0
        %v3128 = vadd.f32 %v3126, %v3127
        %v3129 = vsel %vm2843, %v2720, 0.0
        %v3130 = vadd.f32 %v3128, %v3129
        %v3131 = vsel %vm2843, %v2721, 0.0
        %v3132 = vadd.f32 %v3130, %v3131
        %v3133 = vsel %vm2843, %v2722, 0.0
        %v3134 = vadd.f32 %v3132, %v3133
        %v3135 = vsel %vm2843, %v2723, 0.0
        %v3136 = vadd.f32 %v3134, %v3135
        %v3137 = vsel %vm2843, %v2724, 0.0
        %v3138 = vadd.f32 %v3136, %v3137
        %v3139 = vsel %vm2843, %v2725, 0.0
        %v3140 = vadd.f32 %v3138, %v3139
        %v3141 = vsel %vm2843, %v2726, 0.0
        %v3142 = vadd.f32 %v3140, %v3141
        %v3143 = vsel %vm2843, %v2727, 0.0
        %v3144 = vadd.f32 %v3142, %v3143
        %v3145 = vsel %vm2843, %v2728, 0.0
        %v3146 = vadd.f32 %v3144, %v3145
        %v3147 = vsel %vm2843, %v2729, 0.0
        %v3148 = vadd.f32 %v3146, %v3147
        %v3149 = vsel %vm2843, %v2730, 0.0
        %v3150 = vadd.f32 %v3148, %v3149
        %v3151 = vsel %vm2843, %v2731, 0.0
        %v3152 = vadd.f32 %v3150, %v3151
        %v3153 = vsel %vm2843, %v2732, 0.0
        %v3154 = vadd.f32 %v3152, %v3153
        %v3155 = vsel %vm2843, %v2733, 0.0
        %v3156 = vadd.f32 %v3154, %v3155
        %v3157 = vsel %vm2843, %v2734, 0.0
        %v3158 = vadd.f32 %v3156, %v3157
        %v3159 = vsel %vm2843, %v2735, 0.0
        %v3160 = vadd.f32 %v3158, %v3159
        %v3161 = vsel %vm2843, %v2736, 0.0
        %v3162 = vadd.f32 %v3160, %v3161
        %v3163 = vsel %vm2843, %v2737, 0.0
        %v3164 = vadd.f32 %v3162, %v3163
        %v3165 = vsel %vm2843, %v2738, 0.0
        %v3166 = vadd.f32 %v3164, %v3165
        %v3167 = vsel %vm2843, %v2739, 0.0
        %v3168 = vadd.f32 %v3166, %v3167
        %v3169 = vsel %vm2843, %v2740, 0.0
        %v3170 = vadd.f32 %v3168, %v3169
        %v3171 = vsel %vm2843, %v2741, 0.0
        %v3172 = vadd.f32 %v3170, %v3171
        %v3173 = vsel %vm2843, %v2742, 0.0
        %v3174 = vadd.f32 %v3172, %v3173
        %v3175 = vsel %vm2843, %v2743, 0.0
        %v3176 = vadd.f32 %v3174, %v3175
        %v3177 = vsel %vm2843, %v2744, 0.0
        %v3178 = vadd.f32 %v3176, %v3177
        %v3179 = vsel %vm2843, %v2745, 0.0
        %v3180 = vadd.f32 %v3178, %v3179
        %v3181 = vsel %vm2843, %v2746, 0.0
        %v3182 = vadd.f32 %v3180, %v3181
        %v3183 = vrot.slane %v3182, 4
        %v3184 = vadd.f32 %v3182, %v3183
        %v3185 = vrot.slane %v3184, 2
        %v3186 = vadd.f32 %v3184, %v3185
        %v3187 = vrot.slane %v3186, 1
        %v3188 = vadd.f32 %v3186, %v3187
        %v3189 = vsel %vm2843, %v2747, 0.0
        %v3190 = vsel %vm2843, %v2748, 0.0
        %v3191 = vadd.f32 %v3189, %v3190
        %v3192 = vsel %vm2843, %v2749, 0.0
        %v3193 = vadd.f32 %v3191, %v3192
        %v3194 = vsel %vm2843, %v2750, 0.0
        %v3195 = vadd.f32 %v3193, %v3194
        %v3196 = vsel %vm2843, %v2751, 0.0
        %v3197 = vadd.f32 %v3195, %v3196
        %v3198 = vsel %vm2843, %v2752, 0.0
        %v3199 = vadd.f32 %v3197, %v3198
        %v3200 = vsel %vm2843, %v2753, 0.0
        %v3201 = vadd.f32 %v3199, %v3200
        %v3202 = vsel %vm2843, %v2754, 0.0
        %v3203 = vadd.f32 %v3201, %v3202
        %v3204 = vsel %vm2843, %v2755, 0.0
        %v3205 = vadd.f32 %v3203, %v3204
        %v3206 = vsel %vm2843, %v2756, 0.0
        %v3207 = vadd.f32 %v3205, %v3206
        %v3208 = vsel %vm2843, %v2757, 0.0
        %v3209 = vadd.f32 %v3207, %v3208
        %v3210 = vsel %vm2843, %v2758, 0.0
        %v3211 = vadd.f32 %v3209, %v3210
        %v3212 = vsel %vm2843, %v2759, 0.0
        %v3213 = vadd.f32 %v3211, %v3212
        %v3214 = vsel %vm2843, %v2760, 0.0
        %v3215 = vadd.f32 %v3213, %v3214
        %v3216 = vsel %vm2843, %v2761, 0.0
        %v3217 = vadd.f32 %v3215, %v3216
        %v3218 = vsel %vm2843, %v2762, 0.0
        %v3219 = vadd.f32 %v3217, %v3218
        %v3220 = vsel %vm2843, %v2763, 0.0
        %v3221 = vadd.f32 %v3219, %v3220
        %v3222 = vsel %vm2843, %v2764, 0.0
        %v3223 = vadd.f32 %v3221, %v3222
        %v3224 = vsel %vm2843, %v2765, 0.0
        %v3225 = vadd.f32 %v3223, %v3224
        %v3226 = vsel %vm2843, %v2766, 0.0
        %v3227 = vadd.f32 %v3225, %v3226
        %v3228 = vsel %vm2843, %v2767, 0.0
        %v3229 = vadd.f32 %v3227, %v3228
        %v3230 = vsel %vm2843, %v2768, 0.0
        %v3231 = vadd.f32 %v3229, %v3230
        %v3232 = vsel %vm2843, %v2769, 0.0
        %v3233 = vadd.f32 %v3231, %v3232
        %v3234 = vsel %vm2843, %v2770, 0.0
        %v3235 = vadd.f32 %v3233, %v3234
        %v3236 = vsel %vm2843, %v2771, 0.0
        %v3237 = vadd.f32 %v3235, %v3236
        %v3238 = vsel %vm2843, %v2772, 0.0
        %v3239 = vadd.f32 %v3237, %v3238
        %v3240 = vsel %vm2843, %v2773, 0.0
        %v3241 = vadd.f32 %v3239, %v3240
        %v3242 = vsel %vm2843, %v2774, 0.0
        %v3243 = vadd.f32 %v3241, %v3242
        %v3244 = vsel %vm2843, %v2775, 0.0
        %v3245 = vadd.f32 %v3243, %v3244
        %v3246 = vsel %vm2843, %v2776, 0.0
        %v3247 = vadd.f32 %v3245, %v3246
        %v3248 = vsel %vm2843, %v2777, 0.0
        %v3249 = vadd.f32 %v3247, %v3248
        %v3250 = vsel %vm2843, %v2778, 0.0
        %v3251 = vadd.f32 %v3249, %v3250
        %v3252 = vrot.slane %v3251, 4
        %v3253 = vadd.f32 %v3251, %v3252
        %v3254 = vrot.slane %v3253, 2
        %v3255 = vadd.f32 %v3253, %v3254
        %v3256 = vrot.slane %v3255, 1
        %v3257 = vadd.f32 %v3255, %v3256
        %v3258 = vsel %vm2843, %v2779, 0.0
        %v3259 = vsel %vm2843, %v2780, 0.0
        %v3260 = vadd.f32 %v3258, %v3259
        %v3261 = vsel %vm2843, %v2781, 0.0
        %v3262 = vadd.f32 %v3260, %v3261
        %v3263 = vsel %vm2843, %v2782, 0.0
        %v3264 = vadd.f32 %v3262, %v3263
        %v3265 = vsel %vm2843, %v2783, 0.0
        %v3266 = vadd.f32 %v3264, %v3265
        %v3267 = vsel %vm2843, %v2784, 0.0
        %v3268 = vadd.f32 %v3266, %v3267
        %v3269 = vsel %vm2843, %v2785, 0.0
        %v3270 = vadd.f32 %v3268, %v3269
        %v3271 = vsel %vm2843, %v2786, 0.0
        %v3272 = vadd.f32 %v3270, %v3271
        %v3273 = vsel %vm2843, %v2787, 0.0
        %v3274 = vadd.f32 %v3272, %v3273
        %v3275 = vsel %vm2843, %v2788, 0.0
        %v3276 = vadd.f32 %v3274, %v3275
        %v3277 = vsel %vm2843, %v2789, 0.0
        %v3278 = vadd.f32 %v3276, %v3277
        %v3279 = vsel %vm2843, %v2790, 0.0
        %v3280 = vadd.f32 %v3278, %v3279
        %v3281 = vsel %vm2843, %v2791, 0.0
        %v3282 = vadd.f32 %v3280, %v3281
        %v3283 = vsel %vm2843, %v2792, 0.0
        %v3284 = vadd.f32 %v3282, %v3283
        %v3285 = vsel %vm2843, %v2793, 0.0
        %v3286 = vadd.f32 %v3284, %v3285
        %v3287 = vsel %vm2843, %v2794, 0.0
        %v3288 = vadd.f32 %v3286, %v3287
        %v3289 = vsel %vm2843, %v2795, 0.0
        %v3290 = vadd.f32 %v3288, %v3289
        %v3291 = vsel %vm2843, %v2796, 0.0
        %v3292 = vadd.f32 %v3290, %v3291
        %v3293 = vsel %vm2843, %v2797, 0.0
        %v3294 = vadd.f32 %v3292, %v3293
        %v3295 = vsel %vm2843, %v2798, 0.0
        %v3296 = vadd.f32 %v3294, %v3295
        %v3297 = vsel %vm2843, %v2799, 0.0
        %v3298 = vadd.f32 %v3296, %v3297
        %v3299 = vsel %vm2843, %v2800, 0.0
        %v3300 = vadd.f32 %v3298, %v3299
        %v3301 = vsel %vm2843, %v2801, 0.0
        %v3302 = vadd.f32 %v3300, %v3301
        %v3303 = vsel %vm2843, %v2802, 0.0
        %v3304 = vadd.f32 %v3302, %v3303
        %v3305 = vsel %vm2843, %v2803, 0.0
        %v3306 = vadd.f32 %v3304, %v3305
        %v3307 = vsel %vm2843, %v2804, 0.0
        %v3308 = vadd.f32 %v3306, %v3307
        %v3309 = vsel %vm2843, %v2805, 0.0
        %v3310 = vadd.f32 %v3308, %v3309
        %v3311 = vsel %vm2843, %v2806, 0.0
        %v3312 = vadd.f32 %v3310, %v3311
        %v3313 = vsel %vm2843, %v2807, 0.0
        %v3314 = vadd.f32 %v3312, %v3313
        %v3315 = vsel %vm2843, %v2808, 0.0
        %v3316 = vadd.f32 %v3314, %v3315
        %v3317 = vsel %vm2843, %v2809, 0.0
        %v3318 = vadd.f32 %v3316, %v3317
        %v3319 = vsel %vm2843, %v2810, 0.0
        %v3320 = vadd.f32 %v3318, %v3319
        %v3321 = vrot.slane %v3320, 4
        %v3322 = vadd.f32 %v3320, %v3321
        %v3323 = vrot.slane %v3322, 2
        %v3324 = vadd.f32 %v3322, %v3323
        %v3325 = vrot.slane %v3324, 1
        %v3326 = vadd.f32 %v3324, %v3325
        %v3327 = vsel %vm2843, %v2811, 0.0
        %v3328 = vsel %vm2843, %v2812, 0.0
        %v3329 = vadd.f32 %v3327, %v3328
        %v3330 = vsel %vm2843, %v2813, 0.0
        %v3331 = vadd.f32 %v3329, %v3330
        %v3332 = vsel %vm2843, %v2814, 0.0
        %v3333 = vadd.f32 %v3331, %v3332
        %v3334 = vsel %vm2843, %v2815, 0.0
        %v3335 = vadd.f32 %v3333, %v3334
        %v3336 = vsel %vm2843, %v2816, 0.0
        %v3337 = vadd.f32 %v3335, %v3336
        %v3338 = vsel %vm2843, %v2817, 0.0
        %v3339 = vadd.f32 %v3337, %v3338
        %v3340 = vsel %vm2843, %v2818, 0.0
        %v3341 = vadd.f32 %v3339, %v3340
        %v3342 = vsel %vm2843, %v2819, 0.0
        %v3343 = vadd.f32 %v3341, %v3342
        %v3344 = vsel %vm2843, %v2820, 0.0
        %v3345 = vadd.f32 %v3343, %v3344
        %v3346 = vsel %vm2843, %v2821, 0.0
        %v3347 = vadd.f32 %v3345, %v3346
        %v3348 = vsel %vm2843, %v2822, 0.0
        %v3349 = vadd.f32 %v3347, %v3348
        %v3350 = vsel %vm2843, %v2823, 0.0
        %v3351 = vadd.f32 %v3349, %v3350
        %v3352 = vsel %vm2843, %v2824, 0.0
        %v3353 = vadd.f32 %v3351, %v3352
        %v3354 = vsel %vm2843, %v2825, 0.0
        %v3355 = vadd.f32 %v3353, %v3354
        %v3356 = vsel %vm2843, %v2826, 0.0
        %v3357 = vadd.f32 %v3355, %v3356
        %v3358 = vsel %vm2843, %v2827, 0.0
        %v3359 = vadd.f32 %v3357, %v3358
        %v3360 = vsel %vm2843, %v2828, 0.0
        %v3361 = vadd.f32 %v3359, %v3360
        %v3362 = vsel %vm2843, %v2829, 0.0
        %v3363 = vadd.f32 %v3361, %v3362
        %v3364 = vsel %vm2843, %v2830, 0.0
        %v3365 = vadd.f32 %v3363, %v3364
        %v3366 = vsel %vm2843, %v2831, 0.0
        %v3367 = vadd.f32 %v3365, %v3366
        %v3368 = vsel %vm2843, %v2832, 0.0
        %v3369 = vadd.f32 %v3367, %v3368
        %v3370 = vsel %vm2843, %v2833, 0.0
        %v3371 = vadd.f32 %v3369, %v3370
        %v3372 = vsel %vm2843, %v2834, 0.0
        %v3373 = vadd.f32 %v3371, %v3372
        %v3374 = vsel %vm2843, %v2835, 0.0
        %v3375 = vadd.f32 %v3373, %v3374
        %v3376 = vsel %vm2843, %v2836, 0.0
        %v3377 = vadd.f32 %v3375, %v3376
        %v3378 = vsel %vm2843, %v2837, 0.0
        %v3379 = vadd.f32 %v3377, %v3378
        %v3380 = vsel %vm2843, %v2838, 0.0
        %v3381 = vadd.f32 %v3379, %v3380
        %v3382 = vsel %vm2843, %v2839, 0.0
        %v3383 = vadd.f32 %v3381, %v3382
        %v3384 = vsel %vm2843, %v2840, 0.0
        %v3385 = vadd.f32 %v3383, %v3384
        %v3386 = vsel %vm2843, %v2841, 0.0
        %v3387 = vadd.f32 %v3385, %v3386
        %v3388 = vsel %vm2843, %v2842, 0.0
        %v3389 = vadd.f32 %v3387, %v3388
        %v3390 = vrot.slane %v3389, 4
        %v3391 = vadd.f32 %v3389, %v3390
        %v3392 = vrot.slane %v3391, 2
        %v3393 = vadd.f32 %v3391, %v3392
        %v3394 = vrot.slane %v3393, 1
        %v3395 = vadd.f32 %v3393, %v3394
        %v3396 = vmul.f32 %v2912, 0.00390625
        %v3397 = vmul.f32 %v2981, 0.00390625
        %v3398 = vmul.f32 %v3050, 0.00390625
        %v3399 = vmul.f32 %v3119, 0.00390625
        %v3400 = vmul.f32 %v3188, 0.00390625
        %v3401 = vmul.f32 %v3257, 0.00390625
        %v3402 = vmul.f32 %v3326, 0.00390625
        %v3403 = vmul.f32 %v3395, 0.00390625
        %v3404 = vpack.c.bf16 %v3396, %v3396
        %v3405 = vpack.c.bf16 %v3397, %v3397
        %v3406 = vpack.c.bf16 %v3398, %v3398
        %v3407 = vpack.c.bf16 %v3399, %v3399
        %v3408 = vpack.c.bf16 %v3400, %v3400
        %v3409 = vpack.c.bf16 %v3401, %v3401
        %v3410 = vpack.c.bf16 %v3402, %v3402
        %v3411 = vpack.c.bf16 %v3403, %v3403
        %v3420 = vunpack.c.l.b16 %v3404
        %v3421 = vunpack.c.l.b16 %v3405
        %v3422 = vunpack.c.l.b16 %v3406
        %v3423 = vunpack.c.l.b16 %v3407
        %v3424 = vunpack.c.l.b16 %v3408
        %v3425 = vunpack.c.l.b16 %v3409
        %v3426 = vunpack.c.l.b16 %v3410
        %v3427 = vunpack.c.l.b16 %v3411
        %v3428 = vpack.c.b16 %v3420, %v3420
        %v3429 = vpack.c.b16 %v3421, %v3421
        %v3430 = vpack.c.b16 %v3422, %v3422
        %v3431 = vpack.c.b16 %v3423, %v3423
        %v3432 = vpack.c.b16 %v3424, %v3424
        %v3433 = vpack.c.b16 %v3425, %v3425
        %v3434 = vpack.c.b16 %v3426, %v3426
        %v3435 = vpack.c.b16 %v3427, %v3427
        %v3436 = vunpack.c.l.b16 %v3428
        %v3437 = vunpack.c.l.b16 %v3429
        %v3438 = vunpack.c.l.b16 %v3430
        %v3439 = vunpack.c.l.b16 %v3431
        %v3440 = vunpack.c.l.b16 %v3432
        %v3441 = vunpack.c.l.b16 %v3433
        %v3442 = vunpack.c.l.b16 %v3434
        %v3443 = vunpack.c.l.b16 %v3435
        %vm3444 = vcmask 1041409
        %v3445 = vsel %vm3444, %v3437, %v3436
        %vm3446 = vcmask 1042434
        %v3447 = vsel %vm3446, %v3438, %v3445
        %vm3448 = vcmask 1043459
        %v3449 = vsel %vm3448, %v3439, %v3447
        %vm3450 = vcmask 1044484
        %v3451 = vsel %vm3450, %v3440, %v3449
        %vm3452 = vcmask 1045509
        %v3453 = vsel %vm3452, %v3441, %v3451
        %vm3454 = vcmask 1046534
        %v3455 = vsel %vm3454, %v3442, %v3453
        %vm3456 = vcmask 1047559
        %v3457 = vsel %vm3456, %v3443, %v3455
        %v3458 = vpack.c.b16 %v3457, %v3457
        %vm3460 = vcmask 257024
        %3461 = vst.msk [vmem:[%s215] sm:$0xf] %vm3460, %v3458
        %s3462 = sand.u32 %s97, 1
        %s3463 = scalar_lea.sflag [#allocation4], %s3462
        %s3464 = sand.u32 %s97, 1
        %s3465 = smul.addr %s3464, 4
        %s3466 = scalar_lea.vmem [#allocation8], %s3465
        // Predicated region
        $region45: #{_recognition_forward.2} parent=31 // pred_check
          %p3467 = pneg %p107
        $region46: #{_recognition_forward.2} parent=31 // pred_check_branch
          %3469 = sbr.rel (%p3467) target = $region48
        $region47: #{_recognition_forward.2} parent=31 // pred_region
          %s3471 = ssub.s32 64, 64
          %3472 = vsyncadd %s3463, %s3471
          %s3473 = smul.addr %s21, 64
          %s3474 = scalar_lea.hbm %s3, %s3473
          %s3476 = sshll.u32 %s3466, 4
          %s3477 = int_to_ptr.vmem [resolvable:$true] %s3476
          %3479 = dma.vmem_to_hbm [thread:$0]  %s3477, 64, %s3474, %s3463
        $region48: #{_recognition_forward.2} parent=31 // pred_fallthru
          _
      $region32: #{_recognition_forward.2} parent=5 // pred_fallthru
        _
      %p3480 = scmp.le.s32.totalorder 2, %s16
      // Predicated region
      $region49: #{_recognition_forward.2} parent=5 // pred_check
        %p3481 = pneg %p3480
      $region50: #{_recognition_forward.2} parent=5 // pred_check_branch
        %3483 = sbr.rel (%p3481) target = $region52
      $region51: #{_recognition_forward.2} parent=5 // pred_region
        %s3484 = ssub.s32 %s16, 2
        // Predicated region
        $region53: #{_recognition_forward.2} parent=51 // pred_check
          %p3485 = pneg %p113
        $region54: #{_recognition_forward.2} parent=51 // pred_check_branch
          %3487 = sbr.rel (%p3485) target = $region56
        $region55: #{_recognition_forward.2} parent=51 // pred_region
          %s3488 = sand.u32 %s98, 1
          %s3489 = scalar_lea.sflag [#allocation4], %s3488
          %s3490 = sand.u32 %s98, 1
          %s3491 = smul.addr %s3490, 4
          %s3492 = scalar_lea.vmem [#allocation8], %s3491
          %3493 = dma.done %s3489, 64
        $region56: #{_recognition_forward.2} parent=51 // pred_fallthru
          _
      $region52: #{_recognition_forward.2} parent=5 // pred_fallthru
        _
    $region6: #{_recognition_forward.2} parent=1 // loop_footer
      %s20 = sadd.s32 1, %s16
    $region7: #{_recognition_forward.2} parent=1 // loop_footer_branch
      %15 = sbr.rel target = $region3
    $region8: #{_recognition_forward.2} parent=1 // loop_exit
      _
    %3494 = vsyncpa [#allocation3], 1
    %s3495 = scalar_lea.sflag [#allocation3], 1
    %3496 = vsyncpa %s3495, 1
    %3497 = vsyncpa [#allocation6], 1
    %3498 = vsyncpa [#allocation4], 1
    %s3499 = scalar_lea.sflag [#allocation4], 1
    %3500 = vsyncpa %s3499, 1

</llo_original>
